<compile_context>
chip_gen: v5e
topology: v5e:2x2
jax: 0.10.0
libtpu: 0.0.40
codegen_flags: <defaults>
</compile_context>

<pallas_src>
import math
import functools

import jax
import jax.numpy as jnp
from jax.experimental import pallas as pl
from jax.experimental.pallas import tpu as pltpu


def _layer_norm(x, gamma, beta, eps):
    mu = jnp.mean(x, axis=-1, keepdims=True)
    var = jnp.mean(jnp.square(x - mu), axis=-1, keepdims=True)
    return (x - mu) * jax.lax.rsqrt(var + eps) * gamma + beta


def encoder_layer_kernel(
    x_ref,      # (Bb, S, D)  activations, original dtype (residuals stay f32)
    wqkv_ref,   # (D, 3D)     in_proj weight, pre-transposed (K,N), bf16
    bqkv_ref,   # (1, 3D)     in_proj bias, f32
    wo_ref,     # (D, D)      out_proj weight, pre-transposed (K,N), bf16
    bo_ref,     # (1, D)
    ln1_g_ref,  # (1, D)
    ln1_b_ref,  # (1, D)
    w1_ref,     # (D, F)      ffn linear1 weight, pre-transposed, bf16
    b1_ref,     # (1, F)
    w2_ref,     # (F, D)      ffn linear2 weight, pre-transposed, bf16
    b2_ref,     # (1, D)
    ln2_g_ref,  # (1, D)
    ln2_b_ref,  # (1, D)
    o_ref,      # (Bb, S, D)  output, original dtype
    *,
    nhead: int,
    eps: float,
    approx_recip: bool,
):
    Bb, S, D = x_ref.shape
    hd = D // nhead
    M = Bb * S
    f32 = jnp.float32
    cd = wqkv_ref.dtype                         # matmul operand dtype (bf16)
    scale = 1.0 / math.sqrt(hd)

    # Row-collapse the batch block: residual path stays f32.
    x = x_ref[...].astype(f32).reshape(M, D)    # (M, D)

    # ---- self attention ---------------------------------------------------
    # One (M, D) x (D, 3D) MXU matmul for Q, K, V with f32 accumulation.
    qkv = jnp.dot(x.astype(cd), wqkv_ref[...],
                  preferred_element_type=f32) + bqkv_ref[...]
    q = qkv[:, 0 * D:1 * D] * scale             # fold 1/sqrt(hd) into q
    k = qkv[:, 1 * D:2 * D]                     # lane-aligned slices (D mult.)
    v = qkv[:, 2 * D:3 * D]

    def to_heads(t):                            # (M, D) -> (Bb*H, S, hd)
        t4 = t.reshape(Bb, S, nhead, hd)
        return jnp.transpose(t4, (0, 2, 1, 3)).reshape(Bb * nhead, S, hd)

    qh = to_heads(q).astype(cd)
    kh = to_heads(k).astype(cd)
    vh = to_heads(v).astype(cd)

    # Batched attention over the merged (batch, head) leading dim; softmax
    # statistics stay f32.
    # TODO(synk): switch to KV-tiled online softmax for long sequences.
    s = jnp.einsum("bqd,bkd->bqk", qh, kh, preferred_element_type=f32)
    s = s - jnp.max(s, axis=-1, keepdims=True)
    p = jnp.exp(s)
    denom = jnp.sum(p, axis=-1, keepdims=True)
    if approx_recip:
        p = p * pl.reciprocal(denom, approx=True)   # EUP slot; ~1e-3 rel err
    else:
        p = p / denom
    o = jnp.einsum("bqk,bkd->bqd", p.astype(cd), vh,
                   preferred_element_type=f32)      # (Bb*H, S, hd)

    # Merge heads back onto lanes; ONE (M, D) x (D, D) output projection.
    om = jnp.transpose(o.reshape(Bb, nhead, S, hd), (0, 2, 1, 3)).reshape(M, D)
    attn = jnp.dot(om.astype(cd), wo_ref[...],
                   preferred_element_type=f32) + bo_ref[...]

    # residual + LayerNorm1 (norm_first=False), f32 math.
    x1 = _layer_norm(x + attn, ln1_g_ref[...], ln1_b_ref[...], eps)

    # ---- feed-forward: gbo1 -> relu -> gbo2 -------------------------------
    # TODO(synk): tile over F and accumulate into an (M, D) f32 scratch for
    # large dim_feedforward so h1 (M, F) is never fully resident.
    h1 = jnp.dot(x1.astype(cd), w1_ref[...],
                 preferred_element_type=f32) + b1_ref[...]
    h1 = jnp.maximum(h1, 0.0)                   # relu
    ff = jnp.dot(h1.astype(cd), w2_ref[...],
                 preferred_element_type=f32) + b2_ref[...]

    # residual + LayerNorm2.
    y = _layer_norm(x1 + ff, ln2_g_ref[...], ln2_b_ref[...], eps)
    o_ref[...] = y.reshape(Bb, S, D).astype(o_ref.dtype)


def _vmem_limit_bytes():
    """~80% of physical VMEM: headroom for compiler scratch / pipelining."""
    cap = None
    if hasattr(pltpu, "get_tpu_info"):
        try:
            cap = getattr(pltpu.get_tpu_info(), "vmem_capacity_bytes", None)
        except Exception:   # hardware query unavailable on this backend
            cap = None
    if not cap:
        cap = 64 * 1024 * 1024   # conservative fallback (v7x physical size)
    return int(cap * 0.8)


def _pick_block_b(B, S, target_rows=512):
    """Largest divisor of B with block_b*S <= target_rows, keeping >=2 grid
    steps when the batch allows it (megacore sharding on v7x)."""
    best = 1
    for cand in range(1, B + 1):
        if B % cand == 0 and cand * S <= target_rows:
            best = cand
    if best == B and B > 1:
        for cand in range(best - 1, 0, -1):
            if B % cand == 0:
                return cand
    return best


def transformer_encoder_layer(src, params, *, nhead, eps=1e-5,
                              batch_first=False,
                              compute_dtype=jnp.bfloat16,
                              block_b=None,
                              approx_recip=True):
    """PyTorch TransformerEncoderLayer forward (eval mode, post-norm).

    src: (seq, batch, d_model) if batch_first=False (PyTorch default), else
         (batch, seq, d_model) -- the latter avoids the HBM transposes.
    """
    x_bsd = src if batch_first else jnp.transpose(src, (1, 0, 2))
    B, S, D = x_bsd.shape
    F = params["w1"].shape[0]
    assert D % nhead == 0

    if block_b is None:
        block_b = _pick_block_b(B, S)
    assert B % block_b == 0

    cd, f32 = compute_dtype, jnp.float32
    # One-time wrapper-side transposes to (K, N) layout (free relative to the
    # kernel); weights in bf16, biases / LayerNorm params in f32.
    wqkv = jnp.transpose(params["in_w"]).astype(cd)     # (D, 3D)
    wo = jnp.transpose(params["out_w"]).astype(cd)      # (D, D)
    w1t = jnp.transpose(params["w1"]).astype(cd)        # (D, F)
    w2t = jnp.transpose(params["w2"]).astype(cd)        # (F, D)
    in_b = params["in_b"].astype(f32)
    out_b = params["out_b"].astype(f32)
    b1 = params["b1"].astype(f32)
    b2 = params["b2"].astype(f32)
    ln1_g = params["ln1_g"].astype(f32)
    ln1_b = params["ln1_b"].astype(f32)
    ln2_g = params["ln2_g"].astype(f32)
    ln2_b = params["ln2_b"].astype(f32)

    kernel = functools.partial(encoder_layer_kernel, nhead=nhead, eps=eps,
                               approx_recip=approx_recip)

    def const_spec(shape, single_buffer):
        index_map = lambda b, _nd=len(shape): (0,) * _nd
        if single_buffer:
            # Grid-invariant weights: one VMEM buffer suffices (halves their
            # footprint; matters on v7x's 64 MiB VMEM per TensorCore).
            return pl.BlockSpec(shape, index_map, pipeline_mode=pl.Buffered(1))
        return pl.BlockSpec(shape, index_map)

    def run(single_buffer_weights):
        w = functools.partial(const_spec, single_buffer=single_buffer_weights)
        return pl.pallas_call(
            kernel,
            out_shape=jax.ShapeDtypeStruct((B, S, D), src.dtype),
            grid_spec=pltpu.PrefetchScalarGridSpec(
                num_scalar_prefetch=0,
                grid=(B // block_b,),
                in_specs=[
                    pl.BlockSpec((block_b, S, D), lambda b: (b, 0, 0)),
                    w((D, 3 * D)),   # in_proj weight (K, N)
                    w((1, 3 * D)),   # in_proj bias
                    w((D, D)),       # out_proj weight (K, N)
                    w((1, D)),       # out_proj bias
                    w((1, D)),       # ln1 gamma
                    w((1, D)),       # ln1 beta
                    w((D, F)),       # ffn linear1 weight (K, N)
                    w((1, F)),       # ffn linear1 bias
                    w((F, D)),       # ffn linear2 weight (K, N)
                    w((1, D)),       # ffn linear2 bias
                    w((1, D)),       # ln2 gamma
                    w((1, D)),       # ln2 beta
                ],
                out_specs=pl.BlockSpec((block_b, S, D), lambda b: (b, 0, 0)),
            ),
            compiler_params=pltpu.CompilerParams(
                # "parallel" shards grid steps across the 2 TCs on v7x; it is
                # a no-op on v5e/v6e (1 TC) where the grid is a serial loop.
                dimension_semantics=("parallel",),
                vmem_limit_bytes=_vmem_limit_bytes()),
        )(x_bsd, wqkv, in_b, wo, out_b, ln1_g, ln1_b,
          w1t, b1, w2t, b2, ln2_g, ln2_b)

    if hasattr(pl, "Buffered"):
        try:
            out_bsd = run(single_buffer_weights=True)
        except (ValueError, TypeError, NotImplementedError,
                pltpu.LoweringException):
            # This Pallas build rejects pipeline_mode=Buffered(1); identical
            # numerics with default double-buffered weights.
            out_bsd = run(single_buffer_weights=False)
    else:
        out_bsd = run(single_buffer_weights=False)

    return out_bsd if batch_first else jnp.transpose(out_bsd, (1, 0, 2))


# ---------------------------------------------------------------------------
# pure-JAX reference (same math) for a correctness check
# ---------------------------------------------------------------------------
def reference(src, params, *, nhead, eps=1e-5):
    S, B, D = src.shape
    hd = D // nhead
    x = jnp.transpose(src, (1, 0, 2))                                  # (B,S,D)
    qkv = jnp.einsum("bsd,ed->bse", x, params["in_w"]) + params["in_b"][0]
    q, k, v = qkv[..., :D], qkv[..., D:2 * D], qkv[..., 2 * D:]

    def split(t):  # (B,S,D) -> (B,H,S,hd)
        return jnp.transpose(t.reshape(B, S, nhead, hd), (0, 2, 1, 3))

    qh, kh, vh = split(q), split(k), split(v)
    s = jnp.einsum("bhqd,bhkd->bhqk", qh, kh) / math.sqrt(hd)
    p = jax.nn.softmax(s, axis=-1)
    o = jnp.einsum("bhqk,bhkd->bhqd", p, vh)
    o = jnp.transpose(o, (0, 2, 1, 3)).reshape(B, S, D)
    attn = jnp.einsum("bsd,ed->bse", o, params["out_w"]) + params["out_b"][0]

    def ln(t, g, b):
        mu = jnp.mean(t, axis=-1, keepdims=True)
        var = jnp.mean((t - mu) ** 2, axis=-1, keepdims=True)
        return (t - mu) * jax.lax.rsqrt(var + eps) * g[0] + b[0]

    x1 = ln(x + attn, params["ln1_g"], params["ln1_b"])
    h1 = jnp.maximum(
        jnp.einsum("bsd,fd->bsf", x1, params["w1"]) + params["b1"][0], 0.0)
    ff = jnp.einsum("bsf,df->bsd", h1, params["w2"]) + params["b2"][0]
    y = ln(x1 + ff, params["ln2_g"], params["ln2_b"])
    return jnp.transpose(y, (1, 0, 2))


if __name__ == "__main__":
    # small shapes consistent with the module; d_model is lane-dense (128)
    S, B, D, H, F = 16, 4, 128, 4, 256
    key = jax.random.PRNGKey(0)
    ks = jax.random.split(key, 12)

    def rnd(k, shape, scale=0.1):
        return (scale * jax.random.normal(k, shape)).astype(jnp.float32)

    params = {
        "in_w":  rnd(ks[0], (3 * D, D)),
        "in_b":  rnd(ks[1], (1, 3 * D)),
        "out_w": rnd(ks[2], (D, D)),
        "out_b": rnd(ks[3], (1, D)),
        "ln1_g": jnp.ones((1, D), jnp.float32),
        "ln1_b": jnp.zeros((1, D), jnp.float32),
        "w1":    rnd(ks[4], (F, D)),
        "b1":    rnd(ks[5], (1, F)),
        "w2":    rnd(ks[6], (D, F)),
        "b2":    rnd(ks[7], (1, D)),
        "ln2_g": jnp.ones((1, D), jnp.float32),
        "ln2_b": jnp.zeros((1, D), jnp.float32),
    }

    src = rnd(ks[8], (S, B, D), scale=1.0)

    out = transformer_encoder_layer(src, params, nhead=H)
    out = jax.block_until_ready(out)
    assert out.shape == (S, B, D)
    assert out.dtype == src.dtype

    # Reference with the same bf16-quantized weights the kernel uses; the
    # remaining diff is the in-kernel bf16 cast of matmul activations and the
    # approximate softmax reciprocal (residual / LayerNorm math stays f32).
    def qcast(a):
        return a.astype(jnp.bfloat16).astype(jnp.float32)

    params_q = dict(params)
    for name in ("in_w", "out_w", "w1", "w2"):
        params_q[name] = qcast(params[name])
    ref = reference(src, params_q, nhead=H)

    err = float(jnp.max(jnp.abs(out - ref)))
    assert err < 5e-2, f"max abs diff {err}"
    print("KERNEL_OK")
</pallas_src>

<mosaic_0001>
module attributes {stable_mosaic.version = 11 : i64} {
  func.func @encoder_layer_kernel(%arg0: i32, %arg1: memref<2x16x128xf32, #tpu.memory_space<vmem>>, %arg2: memref<128x384xbf16, #tpu.memory_space<vmem>>, %arg3: memref<1x384xf32, #tpu.memory_space<vmem>>, %arg4: memref<128x128xbf16, #tpu.memory_space<vmem>>, %arg5: memref<1x128xf32, #tpu.memory_space<vmem>>, %arg6: memref<1x128xf32, #tpu.memory_space<vmem>>, %arg7: memref<1x128xf32, #tpu.memory_space<vmem>>, %arg8: memref<128x256xbf16, #tpu.memory_space<vmem>>, %arg9: memref<1x256xf32, #tpu.memory_space<vmem>>, %arg10: memref<256x128xbf16, #tpu.memory_space<vmem>>, %arg11: memref<1x128xf32, #tpu.memory_space<vmem>>, %arg12: memref<1x128xf32, #tpu.memory_space<vmem>>, %arg13: memref<1x128xf32, #tpu.memory_space<vmem>>, %arg14: memref<2x16x128xf32, #tpu.memory_space<vmem>>) attributes {dimension_semantics = [#tpu.dimension_semantics<parallel>], iteration_bounds = array<i64: 2>, scalar_prefetch = 0 : i64, scratch_operands = 0 : i64, tpu.core_type = #tpu.core_type<tc>, window_params = [{transform_indices = @transform_0, window_bounds = array<i64: 2, 16, 128>}, {pipeline_mode = #tpu.pipeline_mode<synchronous>, transform_indices = @transform_1, window_bounds = array<i64: 128, 384>}, {pipeline_mode = #tpu.pipeline_mode<synchronous>, transform_indices = @transform_2, window_bounds = array<i64: 1, 384>}, {pipeline_mode = #tpu.pipeline_mode<synchronous>, transform_indices = @transform_3, window_bounds = array<i64: 128, 128>}, {pipeline_mode = #tpu.pipeline_mode<synchronous>, transform_indices = @transform_4, window_bounds = array<i64: 1, 128>}, {pipeline_mode = #tpu.pipeline_mode<synchronous>, transform_indices = @transform_5, window_bounds = array<i64: 1, 128>}, {pipeline_mode = #tpu.pipeline_mode<synchronous>, transform_indices = @transform_6, window_bounds = array<i64: 1, 128>}, {pipeline_mode = #tpu.pipeline_mode<synchronous>, transform_indices = @transform_7, window_bounds = array<i64: 128, 256>}, {pipeline_mode = #tpu.pipeline_mode<synchronous>, transform_indices = @transform_8, window_bounds = array<i64: 1, 256>}, {pipeline_mode = #tpu.pipeline_mode<synchronous>, transform_indices = @transform_9, window_bounds = array<i64: 256, 128>}, {pipeline_mode = #tpu.pipeline_mode<synchronous>, transform_indices = @transform_10, window_bounds = array<i64: 1, 128>}, {pipeline_mode = #tpu.pipeline_mode<synchronous>, transform_indices = @transform_11, window_bounds = array<i64: 1, 128>}, {pipeline_mode = #tpu.pipeline_mode<synchronous>, transform_indices = @transform_12, window_bounds = array<i64: 1, 128>}, {transform_indices = @transform_13, window_bounds = array<i64: 2, 16, 128>}]} {
    %c0 = arith.constant 0 : index
    %c0_0 = arith.constant 0 : index
    %c0_1 = arith.constant 0 : index
    %0 = vector.load %arg1[%c0, %c0_0, %c0_1] : memref<2x16x128xf32, #tpu.memory_space<vmem>>, vector<2x16x128xf32>
    %1 = vector.shape_cast %0 : vector<2x16x128xf32> to vector<32x128xf32>
    %2 = arith.truncf %1 : vector<32x128xf32> to vector<32x128xbf16>
    %c0_2 = arith.constant 0 : index
    %c0_3 = arith.constant 0 : index
    %3 = vector.load %arg2[%c0_2, %c0_3] : memref<128x384xbf16, #tpu.memory_space<vmem>>, vector<128x384xbf16>
    %cst = arith.constant dense<0.000000e+00> : vector<32x384xf32>
    %4 = tpu.matmul %2, %3, %cst {dimension_numbers = #tpu.dot_dimension_numbers<[1], [0], [0], [1], [0, 0, 1, 1], [], []>} : vector<32x128xbf16>, vector<128x384xbf16>, vector<32x384xf32> -> vector<32x384xf32>
    %c0_4 = arith.constant 0 : index
    %c0_5 = arith.constant 0 : index
    %5 = vector.load %arg3[%c0_4, %c0_5] : memref<1x384xf32, #tpu.memory_space<vmem>>, vector<1x384xf32>
    %6 = vector.broadcast %5 : vector<1x384xf32> to vector<32x384xf32>
    %7 = arith.addf %4, %6 : vector<32x384xf32>
    %8 = vector.extract_strided_slice %7 {offsets = [0, 0], sizes = [32, 128], strides = [1, 1]} : vector<32x384xf32> to vector<32x128xf32>
    %cst_6 = arith.constant 0.176776692 : f32
    %9 = vector.broadcast %cst_6 : f32 to vector<32x128xf32>
    %10 = arith.mulf %8, %9 : vector<32x128xf32>
    %11 = vector.extract_strided_slice %7 {offsets = [0, 128], sizes = [32, 128], strides = [1, 1]} : vector<32x384xf32> to vector<32x128xf32>
    %12 = vector.extract_strided_slice %7 {offsets = [0, 256], sizes = [32, 128], strides = [1, 1]} : vector<32x384xf32> to vector<32x128xf32>
    %13 = vector.shape_cast %10 : vector<32x128xf32> to vector<2x16x4x32xf32>
    %14 = tpu.transpose %13, [0, 2, 1, 3] : vector<2x16x4x32xf32> -> vector<2x4x16x32xf32>
    %15 = vector.shape_cast %14 : vector<2x4x16x32xf32> to vector<8x16x32xf32>
    %16 = arith.truncf %15 : vector<8x16x32xf32> to vector<8x16x32xbf16>
    %17 = vector.shape_cast %11 : vector<32x128xf32> to vector<2x16x4x32xf32>
    %18 = tpu.transpose %17, [0, 2, 1, 3] : vector<2x16x4x32xf32> -> vector<2x4x16x32xf32>
    %19 = vector.shape_cast %18 : vector<2x4x16x32xf32> to vector<8x16x32xf32>
    %20 = arith.truncf %19 : vector<8x16x32xf32> to vector<8x16x32xbf16>
    %21 = vector.shape_cast %12 : vector<32x128xf32> to vector<2x16x4x32xf32>
    %22 = tpu.transpose %21, [0, 2, 1, 3] : vector<2x16x4x32xf32> -> vector<2x4x16x32xf32>
    %23 = vector.shape_cast %22 : vector<2x4x16x32xf32> to vector<8x16x32xf32>
    %24 = arith.truncf %23 : vector<8x16x32xf32> to vector<8x16x32xbf16>
    "tpu.trace_start"() <{level = 10 : i32, message = "bqd,bkd->bqk"}> : () -> ()
    %cst_7 = arith.constant dense<0.000000e+00> : vector<8x16x16xf32>
    %25 = tpu.matmul %16, %20, %cst_7 {dimension_numbers = #tpu.dot_dimension_numbers<[2], [2], [1], [1], [0, 0, 0, 1, 1, 1], [0], [0]>} : vector<8x16x32xbf16>, vector<8x16x32xbf16>, vector<8x16x16xf32> -> vector<8x16x16xf32>
    "tpu.trace_stop"() : () -> ()
    %cst_8 = arith.constant dense<0xFF800000> : vector<8x16xf32>
    %26 = vector.multi_reduction <maximumf>, %25, %cst_8 [2] : vector<8x16x16xf32> to vector<8x16xf32>
    %27 = vector.shape_cast %26 : vector<8x16xf32> to vector<8x16x1xf32>
    %28 = vector.broadcast %27 : vector<8x16x1xf32> to vector<8x16x16xf32>
    %29 = arith.subf %25, %28 : vector<8x16x16xf32>
    %30 = math.exp %29 : vector<8x16x16xf32>
    %cst_9 = arith.constant dense<0.000000e+00> : vector<8x16xf32>
    %31 = vector.multi_reduction <add>, %30, %cst_9 [2] : vector<8x16x16xf32> to vector<8x16xf32>
    %32 = vector.shape_cast %31 : vector<8x16xf32> to vector<8x16x1xf32>
    %33 = tpu.reciprocal %32 {approx = true} : vector<8x16x1xf32> -> vector<8x16x1xf32>
    %34 = vector.broadcast %33 : vector<8x16x1xf32> to vector<8x16x16xf32>
    %35 = arith.mulf %30, %34 : vector<8x16x16xf32>
    %36 = arith.truncf %35 : vector<8x16x16xf32> to vector<8x16x16xbf16>
    "tpu.trace_start"() <{level = 10 : i32, message = "bqk,bkd->bqd"}> : () -> ()
    %cst_10 = arith.constant dense<0.000000e+00> : vector<8x16x32xf32>
    %37 = tpu.matmul %36, %24, %cst_10 {dimension_numbers = #tpu.dot_dimension_numbers<[2], [1], [1], [2], [0, 0, 0, 1, 1, 2], [0], [0]>} : vector<8x16x16xbf16>, vector<8x16x32xbf16>, vector<8x16x32xf32> -> vector<8x16x32xf32>
    "tpu.trace_stop"() : () -> ()
    %38 = vector.shape_cast %37 : vector<8x16x32xf32> to vector<2x4x16x32xf32>
    %39 = tpu.transpose %38, [0, 2, 1, 3] : vector<2x4x16x32xf32> -> vector<2x16x4x32xf32>
    %40 = vector.shape_cast %39 : vector<2x16x4x32xf32> to vector<32x128xf32>
    %41 = arith.truncf %40 : vector<32x128xf32> to vector<32x128xbf16>
    %c0_11 = arith.constant 0 : index
    %c0_12 = arith.constant 0 : index
    %42 = vector.load %arg4[%c0_11, %c0_12] : memref<128x128xbf16, #tpu.memory_space<vmem>>, vector<128x128xbf16>
    %cst_13 = arith.constant dense<0.000000e+00> : vector<32x128xf32>
    %43 = tpu.matmul %41, %42, %cst_13 {dimension_numbers = #tpu.dot_dimension_numbers<[1], [0], [0], [1], [0, 0, 1, 1], [], []>} : vector<32x128xbf16>, vector<128x128xbf16>, vector<32x128xf32> -> vector<32x128xf32>
    %c0_14 = arith.constant 0 : index
    %c0_15 = arith.constant 0 : index
    %44 = vector.load %arg5[%c0_14, %c0_15] : memref<1x128xf32, #tpu.memory_space<vmem>>, vector<1x128xf32>
    %45 = vector.broadcast %44 : vector<1x128xf32> to vector<32x128xf32>
    %46 = arith.addf %43, %45 : vector<32x128xf32>
    %47 = arith.addf %1, %46 : vector<32x128xf32>
    %c0_16 = arith.constant 0 : index
    %c0_17 = arith.constant 0 : index
    %48 = vector.load %arg6[%c0_16, %c0_17] : memref<1x128xf32, #tpu.memory_space<vmem>>, vector<1x128xf32>
    %c0_18 = arith.constant 0 : index
    %c0_19 = arith.constant 0 : index
    %49 = vector.load %arg7[%c0_18, %c0_19] : memref<1x128xf32, #tpu.memory_space<vmem>>, vector<1x128xf32>
    %cst_20 = arith.constant dense<0.000000e+00> : vector<32xf32>
    %50 = vector.multi_reduction <add>, %47, %cst_20 [1] : vector<32x128xf32> to vector<32xf32>
    %51 = vector.shape_cast %50 : vector<32xf32> to vector<32x1xf32>
    %cst_21 = arith.constant 1.280000e+02 : f32
    %52 = vector.broadcast %cst_21 : f32 to vector<32x1xf32>
    %53 = arith.divf %51, %52 : vector<32x1xf32>
    %54 = vector.broadcast %53 : vector<32x1xf32> to vector<32x128xf32>
    %55 = arith.subf %47, %54 : vector<32x128xf32>
    %56 = arith.mulf %55, %55 : vector<32x128xf32>
    %cst_22 = arith.constant dense<0.000000e+00> : vector<32xf32>
    %57 = vector.multi_reduction <add>, %56, %cst_22 [1] : vector<32x128xf32> to vector<32xf32>
    %58 = vector.shape_cast %57 : vector<32xf32> to vector<32x1xf32>
    %cst_23 = arith.constant 1.280000e+02 : f32
    %59 = vector.broadcast %cst_23 : f32 to vector<32x1xf32>
    %60 = arith.divf %58, %59 : vector<32x1xf32>
    %61 = vector.broadcast %53 : vector<32x1xf32> to vector<32x128xf32>
    %62 = arith.subf %47, %61 : vector<32x128xf32>
    %cst_24 = arith.constant 9.99999974E-6 : f32
    %63 = vector.broadcast %cst_24 : f32 to vector<32x1xf32>
    %64 = arith.addf %60, %63 : vector<32x1xf32>
    %65 = math.rsqrt %64 : vector<32x1xf32>
    %66 = vector.broadcast %65 : vector<32x1xf32> to vector<32x128xf32>
    %67 = arith.mulf %62, %66 : vector<32x128xf32>
    %68 = vector.broadcast %48 : vector<1x128xf32> to vector<32x128xf32>
    %69 = arith.mulf %67, %68 : vector<32x128xf32>
    %70 = vector.broadcast %49 : vector<1x128xf32> to vector<32x128xf32>
    %71 = arith.addf %69, %70 : vector<32x128xf32>
    %72 = arith.truncf %71 : vector<32x128xf32> to vector<32x128xbf16>
    %c0_25 = arith.constant 0 : index
    %c0_26 = arith.constant 0 : index
    %73 = vector.load %arg8[%c0_25, %c0_26] : memref<128x256xbf16, #tpu.memory_space<vmem>>, vector<128x256xbf16>
    %cst_27 = arith.constant dense<0.000000e+00> : vector<32x256xf32>
    %74 = tpu.matmul %72, %73, %cst_27 {dimension_numbers = #tpu.dot_dimension_numbers<[1], [0], [0], [1], [0, 0, 1, 1], [], []>} : vector<32x128xbf16>, vector<128x256xbf16>, vector<32x256xf32> -> vector<32x256xf32>
    %c0_28 = arith.constant 0 : index
    %c0_29 = arith.constant 0 : index
    %75 = vector.load %arg9[%c0_28, %c0_29] : memref<1x256xf32, #tpu.memory_space<vmem>>, vector<1x256xf32>
    %76 = vector.broadcast %75 : vector<1x256xf32> to vector<32x256xf32>
    %77 = arith.addf %74, %76 : vector<32x256xf32>
    %cst_30 = arith.constant 0.000000e+00 : f32
    %78 = vector.broadcast %cst_30 : f32 to vector<32x256xf32>
    %79 = arith.maximumf %77, %78 : vector<32x256xf32>
    %80 = arith.truncf %79 : vector<32x256xf32> to vector<32x256xbf16>
    %c0_31 = arith.constant 0 : index
    %c0_32 = arith.constant 0 : index
    %81 = vector.load %arg10[%c0_31, %c0_32] : memref<256x128xbf16, #tpu.memory_space<vmem>>, vector<256x128xbf16>
    %cst_33 = arith.constant dense<0.000000e+00> : vector<32x128xf32>
    %82 = tpu.matmul %80, %81, %cst_33 {dimension_numbers = #tpu.dot_dimension_numbers<[1], [0], [0], [1], [0, 0, 1, 1], [], []>} : vector<32x256xbf16>, vector<256x128xbf16>, vector<32x128xf32> -> vector<32x128xf32>
    %c0_34 = arith.constant 0 : index
    %c0_35 = arith.constant 0 : index
    %83 = vector.load %arg11[%c0_34, %c0_35] : memref<1x128xf32, #tpu.memory_space<vmem>>, vector<1x128xf32>
    %84 = vector.broadcast %83 : vector<1x128xf32> to vector<32x128xf32>
    %85 = arith.addf %82, %84 : vector<32x128xf32>
    %86 = arith.addf %71, %85 : vector<32x128xf32>
    %c0_36 = arith.constant 0 : index
    %c0_37 = arith.constant 0 : index
    %87 = vector.load %arg12[%c0_36, %c0_37] : memref<1x128xf32, #tpu.memory_space<vmem>>, vector<1x128xf32>
    %c0_38 = arith.constant 0 : index
    %c0_39 = arith.constant 0 : index
    %88 = vector.load %arg13[%c0_38, %c0_39] : memref<1x128xf32, #tpu.memory_space<vmem>>, vector<1x128xf32>
    %cst_40 = arith.constant dense<0.000000e+00> : vector<32xf32>
    %89 = vector.multi_reduction <add>, %86, %cst_40 [1] : vector<32x128xf32> to vector<32xf32>
    %90 = vector.shape_cast %89 : vector<32xf32> to vector<32x1xf32>
    %cst_41 = arith.constant 1.280000e+02 : f32
    %91 = vector.broadcast %cst_41 : f32 to vector<32x1xf32>
    %92 = arith.divf %90, %91 : vector<32x1xf32>
    %93 = vector.broadcast %92 : vector<32x1xf32> to vector<32x128xf32>
    %94 = arith.subf %86, %93 : vector<32x128xf32>
    %95 = arith.mulf %94, %94 : vector<32x128xf32>
    %cst_42 = arith.constant dense<0.000000e+00> : vector<32xf32>
    %96 = vector.multi_reduction <add>, %95, %cst_42 [1] : vector<32x128xf32> to vector<32xf32>
    %97 = vector.shape_cast %96 : vector<32xf32> to vector<32x1xf32>
    %cst_43 = arith.constant 1.280000e+02 : f32
    %98 = vector.broadcast %cst_43 : f32 to vector<32x1xf32>
    %99 = arith.divf %97, %98 : vector<32x1xf32>
    %100 = vector.broadcast %92 : vector<32x1xf32> to vector<32x128xf32>
    %101 = arith.subf %86, %100 : vector<32x128xf32>
    %cst_44 = arith.constant 9.99999974E-6 : f32
    %102 = vector.broadcast %cst_44 : f32 to vector<32x1xf32>
    %103 = arith.addf %99, %102 : vector<32x1xf32>
    %104 = math.rsqrt %103 : vector<32x1xf32>
    %105 = vector.broadcast %104 : vector<32x1xf32> to vector<32x128xf32>
    %106 = arith.mulf %101, %105 : vector<32x128xf32>
    %107 = vector.broadcast %87 : vector<1x128xf32> to vector<32x128xf32>
    %108 = arith.mulf %106, %107 : vector<32x128xf32>
    %109 = vector.broadcast %88 : vector<1x128xf32> to vector<32x128xf32>
    %110 = arith.addf %108, %109 : vector<32x128xf32>
    %111 = vector.shape_cast %110 : vector<32x128xf32> to vector<2x16x128xf32>
    %c0_45 = arith.constant 0 : index
    %c0_46 = arith.constant 0 : index
    %c0_47 = arith.constant 0 : index
    %112 = vector.load %arg14[%c0_45, %c0_46, %c0_47] : memref<2x16x128xf32, #tpu.memory_space<vmem>>, vector<2x16x128xf32>
    tpu.vector_store %arg14[%c0_45, %c0_46, %c0_47], %111 {strides = array<i32>} : memref<2x16x128xf32, #tpu.memory_space<vmem>>, vector<2x16x128xf32>,
    return
  }
  func.func @transform_0(%arg0: i32) -> (i32, i32, i32) {
    %c0_i32 = arith.constant 0 : i32
    %c0_i32_0 = arith.constant 0 : i32
    %c0_i32_1 = arith.constant 0 : i32
    return %arg0, %c0_i32, %c0_i32_0 : i32, i32, i32
  }
  func.func @transform_1(%arg0: i32) -> (i32, i32) {
    %c0_i32 = arith.constant 0 : i32
    %c0_i32_0 = arith.constant 0 : i32
    %c0_i32_1 = arith.constant 0 : i32
    return %c0_i32, %c0_i32_0 : i32, i32
  }
  func.func @transform_2(%arg0: i32) -> (i32, i32) {
    %c0_i32 = arith.constant 0 : i32
    %c0_i32_0 = arith.constant 0 : i32
    %c0_i32_1 = arith.constant 0 : i32
    return %c0_i32, %c0_i32_0 : i32, i32
  }
  func.func @transform_3(%arg0: i32) -> (i32, i32) {
    %c0_i32 = arith.constant 0 : i32
    %c0_i32_0 = arith.constant 0 : i32
    %c0_i32_1 = arith.constant 0 : i32
    return %c0_i32, %c0_i32_0 : i32, i32
  }
  func.func @transform_4(%arg0: i32) -> (i32, i32) {
    %c0_i32 = arith.constant 0 : i32
    %c0_i32_0 = arith.constant 0 : i32
    %c0_i32_1 = arith.constant 0 : i32
    return %c0_i32, %c0_i32_0 : i32, i32
  }
  func.func @transform_5(%arg0: i32) -> (i32, i32) {
    %c0_i32 = arith.constant 0 : i32
    %c0_i32_0 = arith.constant 0 : i32
    %c0_i32_1 = arith.constant 0 : i32
    return %c0_i32, %c0_i32_0 : i32, i32
  }
  func.func @transform_6(%arg0: i32) -> (i32, i32) {
    %c0_i32 = arith.constant 0 : i32
    %c0_i32_0 = arith.constant 0 : i32
    %c0_i32_1 = arith.constant 0 : i32
    return %c0_i32, %c0_i32_0 : i32, i32
  }
  func.func @transform_7(%arg0: i32) -> (i32, i32) {
    %c0_i32 = arith.constant 0 : i32
    %c0_i32_0 = arith.constant 0 : i32
    %c0_i32_1 = arith.constant 0 : i32
    return %c0_i32, %c0_i32_0 : i32, i32
  }
  func.func @transform_8(%arg0: i32) -> (i32, i32) {
    %c0_i32 = arith.constant 0 : i32
    %c0_i32_0 = arith.constant 0 : i32
    %c0_i32_1 = arith.constant 0 : i32
    return %c0_i32, %c0_i32_0 : i32, i32
  }
  func.func @transform_9(%arg0: i32) -> (i32, i32) {
    %c0_i32 = arith.constant 0 : i32
    %c0_i32_0 = arith.constant 0 : i32
    %c0_i32_1 = arith.constant 0 : i32
    return %c0_i32, %c0_i32_0 : i32, i32
  }
  func.func @transform_10(%arg0: i32) -> (i32, i32) {
    %c0_i32 = arith.constant 0 : i32
    %c0_i32_0 = arith.constant 0 : i32
    %c0_i32_1 = arith.constant 0 : i32
    return %c0_i32, %c0_i32_0 : i32, i32
  }
  func.func @transform_11(%arg0: i32) -> (i32, i32) {
    %c0_i32 = arith.constant 0 : i32
    %c0_i32_0 = arith.constant 0 : i32
    %c0_i32_1 = arith.constant 0 : i32
    return %c0_i32, %c0_i32_0 : i32, i32
  }
  func.func @transform_12(%arg0: i32) -> (i32, i32) {
    %c0_i32 = arith.constant 0 : i32
    %c0_i32_0 = arith.constant 0 : i32
    %c0_i32_1 = arith.constant 0 : i32
    return %c0_i32, %c0_i32_0 : i32, i32
  }
  func.func @transform_13(%arg0: i32) -> (i32, i32, i32) {
    %c0_i32 = arith.constant 0 : i32
    %c0_i32_0 = arith.constant 0 : i32
    %c0_i32_1 = arith.constant 0 : i32
    return %arg0, %c0_i32, %c0_i32_0 : i32, i32, i32
  }
}

</mosaic_0001>

<llo_original>
// kernel: tpu_custom_call.1
$region0: #{tpu_custom_call.1}
  #allocation0 [shape = 'u32[]', space=smem, size = 0x4, offset = 0x4, fixed_abs, tag = 'smem constant byte address 0x4 - core index']
  #allocation1 [shape = 'u32[72,128]{1,0:T(1,128)}', space=vmem, size = 0x9000, scoped, tag = 'internal scratch']
  %s0 = inlined_call_operand.hbm [shape: f32[4,16,128], index: 0, kind: input, shape index: {}]
  %s1 = inlined_call_operand.hbm [shape: bf16[128,384], index: 1, kind: input, shape index: {}]
  %s2 = inlined_call_operand.hbm [shape: f32[1,384], index: 2, kind: input, shape index: {}]
  %s3 = inlined_call_operand.hbm [shape: bf16[128,128], index: 3, kind: input, shape index: {}]
  %s4 = inlined_call_operand.vmem [shape: f32[1,128], index: 4, kind: input, shape index: {}]
  %s5 = inlined_call_operand.vmem [shape: f32[1,128], index: 5, kind: input, shape index: {}]
  %s6 = inlined_call_operand.vmem [shape: f32[1,128], index: 6, kind: input, shape index: {}]
  %s7 = inlined_call_operand.hbm [shape: bf16[128,256], index: 7, kind: input, shape index: {}]
  %s8 = inlined_call_operand.vmem [shape: f32[1,256], index: 8, kind: input, shape index: {}]
  %s9 = inlined_call_operand.hbm [shape: bf16[256,128], index: 9, kind: input, shape index: {}]
  %s10 = inlined_call_operand.vmem [shape: f32[1,128], index: 10, kind: input, shape index: {}]
  %s11 = inlined_call_operand.vmem [shape: f32[1,128], index: 11, kind: input, shape index: {}]
  %s12 = inlined_call_operand.vmem [shape: f32[1,128], index: 12, kind: input, shape index: {}]
  %s13 = inlined_call_operand.hbm [shape: f32[4,16,128], index: 13, kind: output, shape index: {}]
  %s14 = sld [smem:[#allocation0]]
  $region109: #{tpu_custom_call.1} parent=0
    _
  %s16 = ssub.s32 1, %s14
  %s17 = scalar_select 0, %s16, %s14
  $region1: #{tpu_custom_call.1} parent=0
    #allocation2 [shape = 'u8[32768]{0}', space=vmem, size = 0x8000, scoped, tag = 'input window, operand 0']
    #allocation3 [shape = 's32[2]{0}', space=sflag, size = 0x8, scoped, tag = 'scoped memory for tpu_custom_call.1']
    #allocation4 [shape = 's32[2]{0}', space=sflag, size = 0x8, scoped, tag = 'scoped memory for tpu_custom_call.1']
    #allocation5 [shape = 'u8[98304]{0}', space=vmem, size = 0x18000, scoped, tag = 'input window, operand 1, single buffered']
    #allocation6 [shape = 's32[1]{0}', space=sflag, size = 0x4, scoped, tag = 'scoped memory for tpu_custom_call.1']
    #allocation7 [shape = 'u8[1536]{0}', space=vmem, size = 0x800, scoped, tag = 'input window, operand 2, single buffered']
    #allocation8 [shape = 'u8[32768]{0}', space=vmem, size = 0x8000, scoped, tag = 'input window, operand 3, single buffered']
    #allocation9 [shape = 's32[1]{0}', space=sflag, size = 0x4, scoped, tag = 'scoped memory for tpu_custom_call.1']
    #allocation10 [shape = 'u8[65536]{0}', space=vmem, size = 0x10000, scoped, tag = 'input window, operand 7, single buffered']
    #allocation11 [shape = 'u8[65536]{0}', space=vmem, size = 0x10000, scoped, tag = 'input window, operand 9, single buffered']
    #allocation12 [shape = 's32[1]{0}', space=sflag, size = 0x4, scoped, tag = 'scoped memory for tpu_custom_call.1']
    #allocation13 [shape = 'u8[32768]{0}', space=vmem, size = 0x8000, scoped, tag = 'output window, operand 0']
    %18 = vsyncpa [#allocation3], 0
    %s19 = scalar_lea.sflag [#allocation3], 1
    %20 = vsyncpa %s19, 0
    %21 = vsyncpa [#allocation6], 0
    %22 = vsyncpa [#allocation9], 0
    %23 = vsyncpa [#allocation12], 0
    %24 = vsyncpa [#allocation4], 0
    %s25 = scalar_lea.sflag [#allocation4], 1
    %26 = vsyncpa %s25, 0
    loop: start=0, step=1, limit=4
    $region2: #{tpu_custom_call.1} parent=1 // loop_pre_header
      _
    $region3: #{tpu_custom_call.1} parent=1 // loop_header
      %s28 = sphi 0, %s32
      %p29 = scmp.ge.s32.totalorder %s28, 4
      %s38 = sphi 0, %s40
      %s41 = sphi 0, %s38
      %s42 = sphi 0, %s41
      %s58 = sphi 0, %s42
      %s62 = sphi 0, %s62
      %s64 = sphi 0, %s62
      %s65 = sphi 0, %s64
      %s79 = sphi 0, %s65
      %s83 = sphi 0, %s83
      %s85 = sphi 0, %s83
      %s86 = sphi 0, %s85
      %s100 = sphi 0, %s86
      %s104 = sphi 0, %s104
      %s106 = sphi 0, %s104
      %s107 = sphi 0, %s106
      %s121 = sphi 0, %s107
      %s125 = sphi 0, %s125
      %s127 = sphi 0, %s125
      %s128 = sphi 0, %s127
      %s142 = sphi 0, %s128
      %s146 = sphi 0, %s146
      %s148 = sphi 0, %s146
      %s149 = sphi 0, %s148
      %s163 = sphi 0, %s149
      %s167 = sphi 0, %s167
      %s169 = sphi 0, %s167
      %s170 = sphi 0, %s169
      %s184 = sphi 0, %s170
      %s188 = sphi 0, %s188
      %s190 = sphi 0, %s188
      %s191 = sphi 0, %s190
      %s205 = sphi 0, %s191
      %s209 = sphi 0, %s209
      %s211 = sphi 0, %s209
      %s212 = sphi 0, %s211
      %s226 = sphi 0, %s212
      %s230 = sphi 0, %s230
      %s232 = sphi 0, %s230
      %s233 = sphi 0, %s232
      %s247 = sphi 0, %s233
      %s251 = sphi 0, %s251
      %s253 = sphi 0, %s251
      %s254 = sphi 0, %s253
      %s268 = sphi 0, %s254
      %s272 = sphi 0, %s272
      %s274 = sphi 0, %s272
      %s275 = sphi 0, %s274
      %s289 = sphi 0, %s275
      %s293 = sphi 0, %s293
      %s295 = sphi 0, %s293
      %s296 = sphi 0, %s295
      %s310 = sphi 0, %s296
      %s316 = sphi 0, %s318
      %s319 = sphi 0, %s316
      %s320 = sphi 0, %s319
      %s336 = sphi 0, %s320
    $region4: #{tpu_custom_call.1} parent=1 // loop_header_branch
      %31 = sbr.rel (%p29) target = $region8
    $region5: #{tpu_custom_call.1} parent=1 // loop_body
      %s33 = ssub.s32 %s28, 1
      %s34 = ssub.s32 %s28, 2
      %s35 = sadd.s32 %s28, 1
      %s36 = ssub.s32 %s28, %s35
      %p37 = scmp.eq.s32.totalorder %s36, 0
      %s39 = sadd.s32 %s38, 1
      %s40 = scalar_select %p37, %s38, %s39
      %p43 = pneg %p37
      %p44 = scmp.eq.s32.totalorder %s28, 1
      %p45 = por %p43, %p44
      %p46 = scmp.ne.s32.totalorder %s38, %s41
      %p47 = scmp.eq.s32.totalorder %s28, 0
      %p48 = por %p46, %p47
      %p49 = scmp.ne.s32.totalorder %s38, %s41
      %p50 = scmp.eq.s32.totalorder %s33, 1
      %p51 = por %p49, %p50
      %p52 = scmp.ne.s32.totalorder %s41, %s42
      %p53 = scmp.eq.s32.totalorder %s33, 0
      %p54 = por %p52, %p53
      %p55 = scmp.ne.s32.totalorder %s41, %s42
      %p56 = scmp.eq.s32.totalorder %s34, 1
      %p57 = por %p55, %p56
      %p59 = scmp.ne.s32.totalorder %s42, %s58
      %p60 = scmp.eq.s32.totalorder %s34, 0
      %p61 = por %p59, %p60
      %s63 = sadd.s32 %s62, 1
      %p66 = scmp.eq.s32.totalorder %s28, 1
      %p67 = scmp.ne.s32.totalorder %s62, %s64
      %p68 = scmp.eq.s32.totalorder %s28, 0
      %p69 = por %p67, %p68
      %p70 = scmp.ne.s32.totalorder %s62, %s64
      %p71 = scmp.eq.s32.totalorder %s33, 1
      %p72 = por %p70, %p71
      %p73 = scmp.ne.s32.totalorder %s64, %s65
      %p74 = scmp.eq.s32.totalorder %s33, 0
      %p75 = por %p73, %p74
      %p76 = scmp.ne.s32.totalorder %s64, %s65
      %p77 = scmp.eq.s32.totalorder %s34, 1
      %p78 = por %p76, %p77
      %p80 = scmp.ne.s32.totalorder %s65, %s79
      %p81 = scmp.eq.s32.totalorder %s34, 0
      %p82 = por %p80, %p81
      %s84 = sadd.s32 %s83, 1
      %p87 = scmp.eq.s32.totalorder %s28, 1
      %p88 = scmp.ne.s32.totalorder %s83, %s85
      %p89 = scmp.eq.s32.totalorder %s28, 0
      %p90 = por %p88, %p89
      %p91 = scmp.ne.s32.totalorder %s83, %s85
      %p92 = scmp.eq.s32.totalorder %s33, 1
      %p93 = por %p91, %p92
      %p94 = scmp.ne.s32.totalorder %s85, %s86
      %p95 = scmp.eq.s32.totalorder %s33, 0
      %p96 = por %p94, %p95
      %p97 = scmp.ne.s32.totalorder %s85, %s86
      %p98 = scmp.eq.s32.totalorder %s34, 1
      %p99 = por %p97, %p98
      %p101 = scmp.ne.s32.totalorder %s86, %s100
      %p102 = scmp.eq.s32.totalorder %s34, 0
      %p103 = por %p101, %p102
      %s105 = sadd.s32 %s104, 1
      %p108 = scmp.eq.s32.totalorder %s28, 1
      %p109 = scmp.ne.s32.totalorder %s104, %s106
      %p110 = scmp.eq.s32.totalorder %s28, 0
      %p111 = por %p109, %p110
      %p112 = scmp.ne.s32.totalorder %s104, %s106
      %p113 = scmp.eq.s32.totalorder %s33, 1
      %p114 = por %p112, %p113
      %p115 = scmp.ne.s32.totalorder %s106, %s107
      %p116 = scmp.eq.s32.totalorder %s33, 0
      %p117 = por %p115, %p116
      %p118 = scmp.ne.s32.totalorder %s106, %s107
      %p119 = scmp.eq.s32.totalorder %s34, 1
      %p120 = por %p118, %p119
      %p122 = scmp.ne.s32.totalorder %s107, %s121
      %p123 = scmp.eq.s32.totalorder %s34, 0
      %p124 = por %p122, %p123
      %s126 = sadd.s32 %s125, 1
      %p129 = scmp.eq.s32.totalorder %s28, 1
      %p130 = scmp.ne.s32.totalorder %s125, %s127
      %p131 = scmp.eq.s32.totalorder %s28, 0
      %p132 = por %p130, %p131
      %p133 = scmp.ne.s32.totalorder %s125, %s127
      %p134 = scmp.eq.s32.totalorder %s33, 1
      %p135 = por %p133, %p134
      %p136 = scmp.ne.s32.totalorder %s127, %s128
      %p137 = scmp.eq.s32.totalorder %s33, 0
      %p138 = por %p136, %p137
      %p139 = scmp.ne.s32.totalorder %s127, %s128
      %p140 = scmp.eq.s32.totalorder %s34, 1
      %p141 = por %p139, %p140
      %p143 = scmp.ne.s32.totalorder %s128, %s142
      %p144 = scmp.eq.s32.totalorder %s34, 0
      %p145 = por %p143, %p144
      %s147 = sadd.s32 %s146, 1
      %p150 = scmp.eq.s32.totalorder %s28, 1
      %p151 = scmp.ne.s32.totalorder %s146, %s148
      %p152 = scmp.eq.s32.totalorder %s28, 0
      %p153 = por %p151, %p152
      %p154 = scmp.ne.s32.totalorder %s146, %s148
      %p155 = scmp.eq.s32.totalorder %s33, 1
      %p156 = por %p154, %p155
      %p157 = scmp.ne.s32.totalorder %s148, %s149
      %p158 = scmp.eq.s32.totalorder %s33, 0
      %p159 = por %p157, %p158
      %p160 = scmp.ne.s32.totalorder %s148, %s149
      %p161 = scmp.eq.s32.totalorder %s34, 1
      %p162 = por %p160, %p161
      %p164 = scmp.ne.s32.totalorder %s149, %s163
      %p165 = scmp.eq.s32.totalorder %s34, 0
      %p166 = por %p164, %p165
      %s168 = sadd.s32 %s167, 1
      %p171 = scmp.eq.s32.totalorder %s28, 1
      %p172 = scmp.ne.s32.totalorder %s167, %s169
      %p173 = scmp.eq.s32.totalorder %s28, 0
      %p174 = por %p172, %p173
      %p175 = scmp.ne.s32.totalorder %s167, %s169
      %p176 = scmp.eq.s32.totalorder %s33, 1
      %p177 = por %p175, %p176
      %p178 = scmp.ne.s32.totalorder %s169, %s170
      %p179 = scmp.eq.s32.totalorder %s33, 0
      %p180 = por %p178, %p179
      %p181 = scmp.ne.s32.totalorder %s169, %s170
      %p182 = scmp.eq.s32.totalorder %s34, 1
      %p183 = por %p181, %p182
      %p185 = scmp.ne.s32.totalorder %s170, %s184
      %p186 = scmp.eq.s32.totalorder %s34, 0
      %p187 = por %p185, %p186
      %s189 = sadd.s32 %s188, 1
      %p192 = scmp.eq.s32.totalorder %s28, 1
      %p193 = scmp.ne.s32.totalorder %s188, %s190
      %p194 = scmp.eq.s32.totalorder %s28, 0
      %p195 = por %p193, %p194
      %p196 = scmp.ne.s32.totalorder %s188, %s190
      %p197 = scmp.eq.s32.totalorder %s33, 1
      %p198 = por %p196, %p197
      %p199 = scmp.ne.s32.totalorder %s190, %s191
      %p200 = scmp.eq.s32.totalorder %s33, 0
      %p201 = por %p199, %p200
      %p202 = scmp.ne.s32.totalorder %s190, %s191
      %p203 = scmp.eq.s32.totalorder %s34, 1
      %p204 = por %p202, %p203
      %p206 = scmp.ne.s32.totalorder %s191, %s205
      %p207 = scmp.eq.s32.totalorder %s34, 0
      %p208 = por %p206, %p207
      %s210 = sadd.s32 %s209, 1
      %p213 = scmp.eq.s32.totalorder %s28, 1
      %p214 = scmp.ne.s32.totalorder %s209, %s211
      %p215 = scmp.eq.s32.totalorder %s28, 0
      %p216 = por %p214, %p215
      %p217 = scmp.ne.s32.totalorder %s209, %s211
      %p218 = scmp.eq.s32.totalorder %s33, 1
      %p219 = por %p217, %p218
      %p220 = scmp.ne.s32.totalorder %s211, %s212
      %p221 = scmp.eq.s32.totalorder %s33, 0
      %p222 = por %p220, %p221
      %p223 = scmp.ne.s32.totalorder %s211, %s212
      %p224 = scmp.eq.s32.totalorder %s34, 1
      %p225 = por %p223, %p224
      %p227 = scmp.ne.s32.totalorder %s212, %s226
      %p228 = scmp.eq.s32.totalorder %s34, 0
      %p229 = por %p227, %p228
      %s231 = sadd.s32 %s230, 1
      %p234 = scmp.eq.s32.totalorder %s28, 1
      %p235 = scmp.ne.s32.totalorder %s230, %s232
      %p236 = scmp.eq.s32.totalorder %s28, 0
      %p237 = por %p235, %p236
      %p238 = scmp.ne.s32.totalorder %s230, %s232
      %p239 = scmp.eq.s32.totalorder %s33, 1
      %p240 = por %p238, %p239
      %p241 = scmp.ne.s32.totalorder %s232, %s233
      %p242 = scmp.eq.s32.totalorder %s33, 0
      %p243 = por %p241, %p242
      %p244 = scmp.ne.s32.totalorder %s232, %s233
      %p245 = scmp.eq.s32.totalorder %s34, 1
      %p246 = por %p244, %p245
      %p248 = scmp.ne.s32.totalorder %s233, %s247
      %p249 = scmp.eq.s32.totalorder %s34, 0
      %p250 = por %p248, %p249
      %s252 = sadd.s32 %s251, 1
      %p255 = scmp.eq.s32.totalorder %s28, 1
      %p256 = scmp.ne.s32.totalorder %s251, %s253
      %p257 = scmp.eq.s32.totalorder %s28, 0
      %p258 = por %p256, %p257
      %p259 = scmp.ne.s32.totalorder %s251, %s253
      %p260 = scmp.eq.s32.totalorder %s33, 1
      %p261 = por %p259, %p260
      %p262 = scmp.ne.s32.totalorder %s253, %s254
      %p263 = scmp.eq.s32.totalorder %s33, 0
      %p264 = por %p262, %p263
      %p265 = scmp.ne.s32.totalorder %s253, %s254
      %p266 = scmp.eq.s32.totalorder %s34, 1
      %p267 = por %p265, %p266
      %p269 = scmp.ne.s32.totalorder %s254, %s268
      %p270 = scmp.eq.s32.totalorder %s34, 0
      %p271 = por %p269, %p270
      %s273 = sadd.s32 %s272, 1
      %p276 = scmp.eq.s32.totalorder %s28, 1
      %p277 = scmp.ne.s32.totalorder %s272, %s274
      %p278 = scmp.eq.s32.totalorder %s28, 0
      %p279 = por %p277, %p278
      %p280 = scmp.ne.s32.totalorder %s272, %s274
      %p281 = scmp.eq.s32.totalorder %s33, 1
      %p282 = por %p280, %p281
      %p283 = scmp.ne.s32.totalorder %s274, %s275
      %p284 = scmp.eq.s32.totalorder %s33, 0
      %p285 = por %p283, %p284
      %p286 = scmp.ne.s32.totalorder %s274, %s275
      %p287 = scmp.eq.s32.totalorder %s34, 1
      %p288 = por %p286, %p287
      %p290 = scmp.ne.s32.totalorder %s275, %s289
      %p291 = scmp.eq.s32.totalorder %s34, 0
      %p292 = por %p290, %p291
      %s294 = sadd.s32 %s293, 1
      %p297 = scmp.eq.s32.totalorder %s28, 1
      %p298 = scmp.ne.s32.totalorder %s293, %s295
      %p299 = scmp.eq.s32.totalorder %s28, 0
      %p300 = por %p298, %p299
      %p301 = scmp.ne.s32.totalorder %s293, %s295
      %p302 = scmp.eq.s32.totalorder %s33, 1
      %p303 = por %p301, %p302
      %p304 = scmp.ne.s32.totalorder %s295, %s296
      %p305 = scmp.eq.s32.totalorder %s33, 0
      %p306 = por %p304, %p305
      %p307 = scmp.ne.s32.totalorder %s295, %s296
      %p308 = scmp.eq.s32.totalorder %s34, 1
      %p309 = por %p307, %p308
      %p311 = scmp.ne.s32.totalorder %s296, %s310
      %p312 = scmp.eq.s32.totalorder %s34, 0
      %p313 = por %p311, %p312
      %s314 = ssub.s32 %s28, %s35
      %p315 = scmp.eq.s32.totalorder %s314, 0
      %s317 = sadd.s32 %s316, 1
      %s318 = scalar_select %p315, %s316, %s317
      %p321 = pneg %p315
      %p322 = scmp.eq.s32.totalorder %s28, 1
      %p323 = por %p321, %p322
      %p324 = scmp.ne.s32.totalorder %s316, %s319
      %p325 = scmp.eq.s32.totalorder %s28, 0
      %p326 = por %p324, %p325
      %p327 = scmp.ne.s32.totalorder %s316, %s319
      %p328 = scmp.eq.s32.totalorder %s33, 1
      %p329 = por %p327, %p328
      %p330 = scmp.ne.s32.totalorder %s319, %s320
      %p331 = scmp.eq.s32.totalorder %s33, 0
      %p332 = por %p330, %p331
      %p333 = scmp.ne.s32.totalorder %s319, %s320
      %p334 = scmp.eq.s32.totalorder %s34, 1
      %p335 = por %p333, %p334
      %p337 = scmp.ne.s32.totalorder %s320, %s336
      %p338 = scmp.eq.s32.totalorder %s34, 0
      %p339 = por %p337, %p338
      %p340 = scmp.le.s32.totalorder 1, %s28
      %p341 = scmp.lt.s32.totalorder %s28, 3
      %p342 = pnand %p340, %p341
      %p343 = pneg %p342
      // Predicated region
      $region9: #{tpu_custom_call.1} parent=5 // pred_check
        _
      $region10: #{tpu_custom_call.1} parent=5 // pred_check_branch
        %345 = sbr.rel (%p342) target = $region12
      $region11: #{tpu_custom_call.1} parent=5 // pred_region
        %s346 = ssub.s32 %s28, 1
        // Predicated region
        $region13: #{tpu_custom_call.1} parent=11 // pred_check
          %p347 = pneg %p75
        $region14: #{tpu_custom_call.1} parent=11 // pred_check_branch
          %349 = sbr.rel (%p347) target = $region16
        $region15: #{tpu_custom_call.1} parent=11 // pred_region
          %351 = vsyncadd [#allocation6], 0
          %s352 = sshll.u32 %s1, 4
          %s353 = int_to_ptr.hbm [resolvable:$true] %s352
          %s354 = sshll.u32 [#allocation5], 4
          %s355 = int_to_ptr.vmem [resolvable:$true] %s354
          %360 = dma.hbm_to_vmem [thread:$0]  %s353, 3072, %s355, [#allocation6], 192, 192, 12
        $region16: #{tpu_custom_call.1} parent=11 // pred_fallthru
          _
        // Predicated region
        $region17: #{tpu_custom_call.1} parent=11 // pred_check
          %p361 = pneg %p96
        $region18: #{tpu_custom_call.1} parent=11 // pred_check_branch
          %363 = sbr.rel (%p361) target = $region20
        $region19: #{tpu_custom_call.1} parent=11 // pred_region
          %365 = vsyncadd [#allocation6], 0
          %s367 = sshll.u32 %s2, 4
          %s368 = int_to_ptr.hbm [resolvable:$true] %s367
          %s369 = sshll.u32 [#allocation7], 4
          %s370 = int_to_ptr.vmem [resolvable:$true] %s369
          %372 = dma.hbm_to_vmem [thread:$0]  %s368, 48, %s370, [#allocation6]
        $region20: #{tpu_custom_call.1} parent=11 // pred_fallthru
          _
        // Predicated region
        $region21: #{tpu_custom_call.1} parent=11 // pred_check
          %p373 = pneg %p117
        $region22: #{tpu_custom_call.1} parent=11 // pred_check_branch
          %375 = sbr.rel (%p373) target = $region24
        $region23: #{tpu_custom_call.1} parent=11 // pred_region
          %377 = vsyncadd [#allocation9], 0
          %s378 = sshll.u32 %s3, 4
          %s379 = int_to_ptr.hbm [resolvable:$true] %s378
          %s380 = sshll.u32 [#allocation8], 4
          %s381 = int_to_ptr.vmem [resolvable:$true] %s380
          %386 = dma.hbm_to_vmem [thread:$0]  %s379, 1024, %s381, [#allocation9], 64, 64, 4
        $region24: #{tpu_custom_call.1} parent=11 // pred_fallthru
          _
        // Predicated region
        $region25: #{tpu_custom_call.1} parent=11 // pred_check
          %p387 = pneg %p138
        $region26: #{tpu_custom_call.1} parent=11 // pred_check_branch
          %389 = sbr.rel (%p387) target = $region28
        $region27: #{tpu_custom_call.1} parent=11 // pred_region
          _
        $region28: #{tpu_custom_call.1} parent=11 // pred_fallthru
          _
        // Predicated region
        $region29: #{tpu_custom_call.1} parent=11 // pred_check
          %p390 = pneg %p159
        $region30: #{tpu_custom_call.1} parent=11 // pred_check_branch
          %392 = sbr.rel (%p390) target = $region32
        $region31: #{tpu_custom_call.1} parent=11 // pred_region
          _
        $region32: #{tpu_custom_call.1} parent=11 // pred_fallthru
          _
        // Predicated region
        $region33: #{tpu_custom_call.1} parent=11 // pred_check
          %p393 = pneg %p180
        $region34: #{tpu_custom_call.1} parent=11 // pred_check_branch
          %395 = sbr.rel (%p393) target = $region36
        $region35: #{tpu_custom_call.1} parent=11 // pred_region
          _
        $region36: #{tpu_custom_call.1} parent=11 // pred_fallthru
          _
        // Predicated region
        $region37: #{tpu_custom_call.1} parent=11 // pred_check
          %p396 = pneg %p201
        $region38: #{tpu_custom_call.1} parent=11 // pred_check_branch
          %398 = sbr.rel (%p396) target = $region40
        $region39: #{tpu_custom_call.1} parent=11 // pred_region
          %400 = vsyncadd [#allocation9], 0
          %s401 = sshll.u32 %s7, 4
          %s402 = int_to_ptr.hbm [resolvable:$true] %s401
          %s403 = sshll.u32 [#allocation10], 4
          %s404 = int_to_ptr.vmem [resolvable:$true] %s403
          %409 = dma.hbm_to_vmem [thread:$0]  %s402, 2048, %s404, [#allocation9], 128, 128, 8
        $region40: #{tpu_custom_call.1} parent=11 // pred_fallthru
          _
        // Predicated region
        $region41: #{tpu_custom_call.1} parent=11 // pred_check
          %p410 = pneg %p222
        $region42: #{tpu_custom_call.1} parent=11 // pred_check_branch
          %412 = sbr.rel (%p410) target = $region44
        $region43: #{tpu_custom_call.1} parent=11 // pred_region
          _
        $region44: #{tpu_custom_call.1} parent=11 // pred_fallthru
          _
        // Predicated region
        $region45: #{tpu_custom_call.1} parent=11 // pred_check
          %p413 = pneg %p243
        $region46: #{tpu_custom_call.1} parent=11 // pred_check_branch
          %415 = sbr.rel (%p413) target = $region48
        $region47: #{tpu_custom_call.1} parent=11 // pred_region
          %417 = vsyncadd [#allocation12], 0
          %s418 = sshll.u32 %s9, 4
          %s419 = int_to_ptr.hbm [resolvable:$true] %s418
          %s420 = sshll.u32 [#allocation11], 4
          %s421 = int_to_ptr.vmem [resolvable:$true] %s420
          %426 = dma.hbm_to_vmem [thread:$0]  %s419, 2048, %s421, [#allocation12], 64, 64, 4
        $region48: #{tpu_custom_call.1} parent=11 // pred_fallthru
          _
        // Predicated region
        $region49: #{tpu_custom_call.1} parent=11 // pred_check
          %p427 = pneg %p264
        $region50: #{tpu_custom_call.1} parent=11 // pred_check_branch
          %429 = sbr.rel (%p427) target = $region52
        $region51: #{tpu_custom_call.1} parent=11 // pred_region
          _
        $region52: #{tpu_custom_call.1} parent=11 // pred_fallthru
          _
        // Predicated region
        $region53: #{tpu_custom_call.1} parent=11 // pred_check
          %p430 = pneg %p285
        $region54: #{tpu_custom_call.1} parent=11 // pred_check_branch
          %432 = sbr.rel (%p430) target = $region56
        $region55: #{tpu_custom_call.1} parent=11 // pred_region
          _
        $region56: #{tpu_custom_call.1} parent=11 // pred_fallthru
          _
        // Predicated region
        $region57: #{tpu_custom_call.1} parent=11 // pred_check
          %p433 = pneg %p306
        $region58: #{tpu_custom_call.1} parent=11 // pred_check_branch
          %435 = sbr.rel (%p433) target = $region60
        $region59: #{tpu_custom_call.1} parent=11 // pred_region
          _
        $region60: #{tpu_custom_call.1} parent=11 // pred_fallthru
          _
      $region12: #{tpu_custom_call.1} parent=5 // pred_fallthru
        _
      %p436 = scmp.lt.s32.totalorder %s28, 2
      // Predicated region
      $region61: #{tpu_custom_call.1} parent=5 // pred_check
        %p437 = pneg %p436
      $region62: #{tpu_custom_call.1} parent=5 // pred_check_branch
        %439 = sbr.rel (%p437) target = $region64
      $region63: #{tpu_custom_call.1} parent=5 // pred_region
        // Predicated region
        $region65: #{tpu_custom_call.1} parent=63 // pred_check
          %p440 = pneg %p48
        $region66: #{tpu_custom_call.1} parent=63 // pred_check_branch
          %442 = sbr.rel (%p440) target = $region68
        $region67: #{tpu_custom_call.1} parent=63 // pred_region
          %s443 = sand.u32 %s38, 1
          %s444 = scalar_lea.sflag [#allocation3], %s443
          %s445 = sand.u32 %s38, 1
          %s446 = smul.addr %s445, 32
          %s447 = scalar_lea.vmem [#allocation2], %s446
          %s448 = smul.u32 2, %s28
          %450 = vsyncadd %s444, 0
          %s451 = smul.addr %s448, 2
          %s452 = smul.addr %s451, 8
          %s453 = scalar_lea.hbm %s0, %s452
          %s454 = sshll.u32 %s453, 4
          %s455 = int_to_ptr.hbm [resolvable:$true] %s454
          %s456 = sshll.u32 %s447, 4
          %s457 = int_to_ptr.vmem [resolvable:$true] %s456
          %462 = dma.hbm_to_vmem [thread:$0]  %s455, 512, %s457, %s444, 128, 128, 8
        $region68: #{tpu_custom_call.1} parent=63 // pred_fallthru
          _
      $region64: #{tpu_custom_call.1} parent=5 // pred_fallthru
        _
      %p463 = scmp.le.s32.totalorder 1, %s28
      %p464 = scmp.lt.s32.totalorder %s28, 3
      %p465 = pnand %p463, %p464
      %p466 = pneg %p465
      // Predicated region
      $region69: #{tpu_custom_call.1} parent=5 // pred_check
        _
      $region70: #{tpu_custom_call.1} parent=5 // pred_check_branch
        %468 = sbr.rel (%p465) target = $region72
      $region71: #{tpu_custom_call.1} parent=5 // pred_region
        %s469 = ssub.s32 %s28, 1
        %s470 = sand.u32 %s41, 1
        %s471 = scalar_lea.sflag [#allocation3], %s470
        %s472 = sand.u32 %s41, 1
        %s473 = smul.addr %s472, 32
        %s474 = scalar_lea.vmem [#allocation2], %s473
        // Predicated region
        $region73: #{tpu_custom_call.1} parent=71 // pred_check
          %p475 = pneg %p54
        $region74: #{tpu_custom_call.1} parent=71 // pred_check_branch
          %477 = sbr.rel (%p475) target = $region76
        $region75: #{tpu_custom_call.1} parent=71 // pred_region
          %479 = dma.done %s471, 512
        $region76: #{tpu_custom_call.1} parent=71 // pred_fallthru
          _
        // Predicated region
        $region77: #{tpu_custom_call.1} parent=71 // pred_check
          %p480 = pneg %p75
        $region78: #{tpu_custom_call.1} parent=71 // pred_check_branch
          %482 = sbr.rel (%p480) target = $region80
        $region79: #{tpu_custom_call.1} parent=71 // pred_region
          %484 = dma.done [#allocation6], 3072
        $region80: #{tpu_custom_call.1} parent=71 // pred_fallthru
          _
        // Predicated region
        $region81: #{tpu_custom_call.1} parent=71 // pred_check
          %p485 = pneg %p96
        $region82: #{tpu_custom_call.1} parent=71 // pred_check_branch
          %487 = sbr.rel (%p485) target = $region84
        $region83: #{tpu_custom_call.1} parent=71 // pred_region
          %489 = dma.done [#allocation6], 48
        $region84: #{tpu_custom_call.1} parent=71 // pred_fallthru
          _
        // Predicated region
        $region85: #{tpu_custom_call.1} parent=71 // pred_check
          %p490 = pneg %p117
        $region86: #{tpu_custom_call.1} parent=71 // pred_check_branch
          %492 = sbr.rel (%p490) target = $region88
        $region87: #{tpu_custom_call.1} parent=71 // pred_region
          %494 = dma.done [#allocation9], 1024
        $region88: #{tpu_custom_call.1} parent=71 // pred_fallthru
          _
        // Predicated region
        $region89: #{tpu_custom_call.1} parent=71 // pred_check
          %p495 = pneg %p201
        $region90: #{tpu_custom_call.1} parent=71 // pred_check_branch
          %497 = sbr.rel (%p495) target = $region92
        $region91: #{tpu_custom_call.1} parent=71 // pred_region
          %499 = dma.done [#allocation9], 2048
        $region92: #{tpu_custom_call.1} parent=71 // pred_fallthru
          _
        // Predicated region
        $region93: #{tpu_custom_call.1} parent=71 // pred_check
          %p500 = pneg %p243
        $region94: #{tpu_custom_call.1} parent=71 // pred_check_branch
          %502 = sbr.rel (%p500) target = $region96
        $region95: #{tpu_custom_call.1} parent=71 // pred_region
          %504 = dma.done [#allocation12], 2048
        $region96: #{tpu_custom_call.1} parent=71 // pred_fallthru
          _
        %s505 = sand.u32 %s41, 1
        %s506 = scalar_lea.sflag [#allocation3], %s505
        %s507 = sand.u32 %s41, 1
        %s508 = smul.addr %s507, 32
        %s509 = scalar_lea.vmem [#allocation2], %s508
        %p510 = pneg %p54
        %p511 = pneg %p51
        %p512 = pneg %p75
        %p513 = pneg %p72
        %p514 = pneg %p96
        %p515 = pneg %p93
        %p516 = pneg %p117
        %p517 = pneg %p114
        %p518 = pneg %p138
        %p519 = pneg %p135
        %p520 = pneg %p159
        %p521 = pneg %p156
        %p522 = pneg %p180
        %p523 = pneg %p177
        %p524 = pneg %p201
        %p525 = pneg %p198
        %p526 = pneg %p222
        %p527 = pneg %p219
        %p528 = pneg %p243
        %p529 = pneg %p240
        %p530 = pneg %p264
        %p531 = pneg %p261
        %p532 = pneg %p285
        %p533 = pneg %p282
        %p534 = pneg %p306
        %p535 = pneg %p303
        %p536 = pneg %p332
        %p537 = pneg %p329
        %s538 = sand.u32 %s319, 1
        %s539 = scalar_lea.sflag [#allocation4], %s538
        %s540 = sand.u32 %s319, 1
        %s541 = smul.addr %s540, 32
        %s542 = scalar_lea.vmem [#allocation13], %s541
        %s543 = smul.u32 2, %s33
        %s544 = smul.u32 2, %s33
        %v546 = vld [vmem:[%s474] sm:$0xff]
        %v547 = vld [vmem:[%s474 + $0x8] sm:$0xff]
        %v548 = vld [vmem:[%s474 + $0x10] sm:$0xff]
        %v549 = vld [vmem:[%s474 + $0x18] sm:$0xff]
        %v550 = vpack.c.bf16 %v547, %v546
        %v551 = vpack.c.bf16 %v549, %v548
        %v552 = vld [vmem:[#allocation5] sm:$0xff]
        %v553 = vld [vmem:[#allocation5 + $0x8] sm:$0xf]
        %v554 = vld [vmem:[#allocation5 + $0xc] sm:$0xff]
        %v555 = vld [vmem:[#allocation5 + $0x14] sm:$0xf]
        %v556 = vld [vmem:[#allocation5 + $0x18] sm:$0xff]
        %v557 = vld [vmem:[#allocation5 + $0x20] sm:$0xf]
        %v558 = vld [vmem:[#allocation5 + $0x24] sm:$0xff]
        %v559 = vld [vmem:[#allocation5 + $0x2c] sm:$0xf]
        %v560 = vld [vmem:[#allocation5 + $0x30] sm:$0xff]
        %v561 = vld [vmem:[#allocation5 + $0x38] sm:$0xf]
        %v562 = vld [vmem:[#allocation5 + $0x3c] sm:$0xff]
        %v563 = vld [vmem:[#allocation5 + $0x44] sm:$0xf]
        %v564 = vld [vmem:[#allocation5 + $0x48] sm:$0xff]
        %v565 = vld [vmem:[#allocation5 + $0x50] sm:$0xf]
        %v566 = vld [vmem:[#allocation5 + $0x54] sm:$0xff]
        %v567 = vld [vmem:[#allocation5 + $0x5c] sm:$0xf]
        %v568 = vld [vmem:[#allocation5 + $0x60] sm:$0xff]
        %v569 = vld [vmem:[#allocation5 + $0x68] sm:$0xf]
        %v570 = vld [vmem:[#allocation5 + $0x6c] sm:$0xff]
        %v571 = vld [vmem:[#allocation5 + $0x74] sm:$0xf]
        %v572 = vld [vmem:[#allocation5 + $0x78] sm:$0xff]
        %v573 = vld [vmem:[#allocation5 + $0x80] sm:$0xf]
        %v574 = vld [vmem:[#allocation5 + $0x84] sm:$0xff]
        %v575 = vld [vmem:[#allocation5 + $0x8c] sm:$0xf]
        %v576 = vld [vmem:[#allocation5 + $0x90] sm:$0xff]
        %v577 = vld [vmem:[#allocation5 + $0x98] sm:$0xf]
        %v578 = vld [vmem:[#allocation5 + $0x9c] sm:$0xff]
        %v579 = vld [vmem:[#allocation5 + $0xa4] sm:$0xf]
        %v580 = vld [vmem:[#allocation5 + $0xa8] sm:$0xff]
        %v581 = vld [vmem:[#allocation5 + $0xb0] sm:$0xf]
        %v582 = vld [vmem:[#allocation5 + $0xb4] sm:$0xff]
        %v583 = vld [vmem:[#allocation5 + $0xbc] sm:$0xf]
        %v584 = vld [vmem:[#allocation7] sm:$0x7]
        %v586 = vperm.slane %v584, 0
        %v587 = vperm.slane %v584, 1
        %v588 = vperm.slane %v584, 2
        %v624 = vunpack.c.l.b16 %v552
        %v625 = vunpack.c.h.b16 %v552
        %v626 = vunpack.c.l.b16 %v553
        %v627 = vunpack.c.l.b16 %v554
        %v628 = vunpack.c.h.b16 %v554
        %v629 = vunpack.c.l.b16 %v555
        %v630 = vunpack.c.l.b16 %v556
        %v631 = vunpack.c.h.b16 %v556
        %v632 = vunpack.c.l.b16 %v557
        %v633 = vunpack.c.l.b16 %v558
        %v634 = vunpack.c.h.b16 %v558
        %v635 = vunpack.c.l.b16 %v559
        %v636 = vunpack.c.l.b16 %v560
        %v637 = vunpack.c.h.b16 %v560
        %v638 = vunpack.c.l.b16 %v561
        %v639 = vunpack.c.l.b16 %v562
        %v640 = vunpack.c.h.b16 %v562
        %v641 = vunpack.c.l.b16 %v563
        %v642 = vunpack.c.l.b16 %v564
        %v643 = vunpack.c.h.b16 %v564
        %v644 = vunpack.c.l.b16 %v565
        %v645 = vunpack.c.l.b16 %v566
        %v646 = vunpack.c.h.b16 %v566
        %v647 = vunpack.c.l.b16 %v567
        %v648 = vunpack.c.l.b16 %v568
        %v649 = vunpack.c.h.b16 %v568
        %v650 = vunpack.c.l.b16 %v569
        %v651 = vunpack.c.l.b16 %v570
        %v652 = vunpack.c.h.b16 %v570
        %v653 = vunpack.c.l.b16 %v571
        %v654 = vunpack.c.l.b16 %v572
        %v655 = vunpack.c.h.b16 %v572
        %v656 = vunpack.c.l.b16 %v573
        %v657 = vunpack.c.l.b16 %v574
        %v658 = vunpack.c.h.b16 %v574
        %v659 = vunpack.c.l.b16 %v575
        %v660 = vunpack.c.l.b16 %v576
        %v661 = vunpack.c.h.b16 %v576
        %v662 = vunpack.c.l.b16 %v577
        %v663 = vunpack.c.l.b16 %v578
        %v664 = vunpack.c.h.b16 %v578
        %v665 = vunpack.c.l.b16 %v579
        %v666 = vunpack.c.l.b16 %v580
        %v667 = vunpack.c.h.b16 %v580
        %v668 = vunpack.c.l.b16 %v581
        %v669 = vunpack.c.l.b16 %v582
        %v670 = vunpack.c.h.b16 %v582
        %v671 = vunpack.c.l.b16 %v583
        %v672 = vpack.c.b16 %v627, %v624
        %v673 = vpack.c.b16 %v628, %v625
        %v674 = vpack.c.b16 %v629, %v626
        %v675 = vpack.c.b16 %v633, %v630
        %v676 = vpack.c.b16 %v634, %v631
        %v677 = vpack.c.b16 %v635, %v632
        %v678 = vpack.c.b16 %v639, %v636
        %v679 = vpack.c.b16 %v640, %v637
        %v680 = vpack.c.b16 %v641, %v638
        %v681 = vpack.c.b16 %v645, %v642
        %v682 = vpack.c.b16 %v646, %v643
        %v683 = vpack.c.b16 %v647, %v644
        %v684 = vpack.c.b16 %v651, %v648
        %v685 = vpack.c.b16 %v652, %v649
        %v686 = vpack.c.b16 %v653, %v650
        %v687 = vpack.c.b16 %v657, %v654
        %v688 = vpack.c.b16 %v658, %v655
        %v689 = vpack.c.b16 %v659, %v656
        %v690 = vpack.c.b16 %v663, %v660
        %v691 = vpack.c.b16 %v664, %v661
        %v692 = vpack.c.b16 %v665, %v662
        %v693 = vpack.c.b16 %v669, %v666
        %v694 = vpack.c.b16 %v670, %v667
        %v695 = vpack.c.b16 %v671, %v668
        %720 = vmatpush.bf16.msra.mxu0 %v693
        %721 = vmatpush.bf16.msra.mxu0 %v690
        %722 = vmatpush.bf16.msra.mxu0 %v687
        %723 = vmatpush.bf16.msra.mxu0 %v684
        %724 = vmatpush.bf16.msra.mxu0 %v681
        %725 = vmatpush.bf16.msra.mxu0 %v678
        %726 = vmatpush.bf16.msra.mxu0 %v675
        %727 = vmatpush.bf16.msra.mxu0 %v672
        %728 = vmatmul.bf16.gmra.mxu0 %v550
        %v729 = vpop.f32.mrf.mxu0
        %v730 = vadd.f32 %v586, %v729
        %v731 = vpop.f32.mrf.mxu0
        %v732 = vadd.f32 %v586, %v731
        %733 = vmatmul.bf16.gmra.mxu0 %v551
        %v734 = vpop.f32.mrf.mxu0
        %v735 = vadd.f32 %v586, %v734
        %v736 = vpop.f32.mrf.mxu0
        %v737 = vadd.f32 %v586, %v736
        %738 = vdwg.mxu0
        %739 = vmatpush.bf16.msra.mxu0 %v694
        %740 = vmatpush.bf16.msra.mxu0 %v691
        %741 = vmatpush.bf16.msra.mxu0 %v688
        %742 = vmatpush.bf16.msra.mxu0 %v685
        %743 = vmatpush.bf16.msra.mxu0 %v682
        %744 = vmatpush.bf16.msra.mxu0 %v679
        %745 = vmatpush.bf16.msra.mxu0 %v676
        %746 = vmatpush.bf16.msra.mxu0 %v673
        %747 = vmatmul.bf16.gmra.mxu0 %v550
        %v748 = vpop.f32.mrf.mxu0
        %v749 = vadd.f32 %v587, %v748
        %v750 = vpop.f32.mrf.mxu0
        %v751 = vadd.f32 %v587, %v750
        %752 = vmatmul.bf16.gmra.mxu0 %v551
        %v753 = vpop.f32.mrf.mxu0
        %v754 = vadd.f32 %v587, %v753
        %v755 = vpop.f32.mrf.mxu0
        %v756 = vadd.f32 %v587, %v755
        %757 = vdwg.mxu0
        %758 = vmatpush.bf16.msra.mxu0 %v695
        %759 = vmatpush.bf16.msra.mxu0 %v692
        %760 = vmatpush.bf16.msra.mxu0 %v689
        %761 = vmatpush.bf16.msra.mxu0 %v686
        %762 = vmatpush.bf16.msra.mxu0 %v683
        %763 = vmatpush.bf16.msra.mxu0 %v680
        %764 = vmatpush.bf16.msra.mxu0 %v677
        %765 = vmatpush.bf16.msra.mxu0 %v674
        %766 = vmatmul.bf16.gmra.mxu0 %v550
        %v767 = vpop.f32.mrf.mxu0
        %v768 = vadd.f32 %v588, %v767
        %v769 = vpop.f32.mrf.mxu0
        %v770 = vadd.f32 %v588, %v769
        %771 = vmatmul.bf16.gmra.mxu0 %v551
        %v772 = vpop.f32.mrf.mxu0
        %v773 = vadd.f32 %v588, %v772
        %v774 = vpop.f32.mrf.mxu0
        %v775 = vadd.f32 %v588, %v774
        %776 = vdwg.mxu0
        %v777 = vmul.f32 %v730, 0.17677669
        %v778 = vmul.f32 %v732, 0.17677669
        %v779 = vmul.f32 %v735, 0.17677669
        %v780 = vmul.f32 %v737, 0.17677669
        %785 = vrot.lane.b32.xlu0 %v777, 96
        %v786 = vpop.permute.xlu0 %785
        %787 = vrot.lane.b32.xlu0 %v778, 96
        %v788 = vpop.permute.xlu0 %787
        %789 = vrot.lane.b32.xlu0 %v779, 96
        %v790 = vpop.permute.xlu0 %789
        %791 = vrot.lane.b32.xlu0 %v780, 96
        %v792 = vpop.permute.xlu0 %791
        %797 = vrot.lane.b32.xlu0 %v777, 64
        %v798 = vpop.permute.xlu0 %797
        %799 = vrot.lane.b32.xlu0 %v778, 64
        %v800 = vpop.permute.xlu0 %799
        %801 = vrot.lane.b32.xlu0 %v779, 64
        %v802 = vpop.permute.xlu0 %801
        %803 = vrot.lane.b32.xlu0 %v780, 64
        %v804 = vpop.permute.xlu0 %803
        %809 = vrot.lane.b32.xlu0 %v777, 32
        %v810 = vpop.permute.xlu0 %809
        %811 = vrot.lane.b32.xlu0 %v778, 32
        %v812 = vpop.permute.xlu0 %811
        %813 = vrot.lane.b32.xlu0 %v779, 32
        %v814 = vpop.permute.xlu0 %813
        %815 = vrot.lane.b32.xlu0 %v780, 32
        %v816 = vpop.permute.xlu0 %815
        %v821 = vrot.slane %v798, 4
        %vm822 = vcmask 1047556
        %v823 = vsel %vm822, %v821, %v777
        %v824 = vrot.slane %v777, 4
        %v825 = vsel %vm822, %v798, %v824
        %v827 = vunpack.c.l.s4 1983009808
        %v828 = vunpack.c.0.s8 %v827
        %v829 = vperm.slane %v823, %v828
        %v831 = vunpack.c.l.s4 1983009808
        %v832 = vunpack.c.0.s8 %v831
        %v833 = vperm.slane %v825, %v832
        %v834 = vrot.slane %v810, 4
        %v835 = vsel %vm822, %v834, %v786
        %v836 = vrot.slane %v786, 4
        %v837 = vsel %vm822, %v810, %v836
        %v839 = vunpack.c.l.s4 1983009808
        %v840 = vunpack.c.0.s8 %v839
        %v841 = vperm.slane %v835, %v840
        %v843 = vunpack.c.l.s4 1983009808
        %v844 = vunpack.c.0.s8 %v843
        %v845 = vperm.slane %v837, %v844
        %v846 = vrot.slane %v841, 4
        %v847 = vsel %vm822, %v846, %v829
        %v848 = vrot.slane %v829, 4
        %v849 = vsel %vm822, %v841, %v848
        %v851 = vunpack.c.l.s4 1934713408
        %v852 = vunpack.c.0.s8 %v851
        %v853 = vperm.slane %v847, %v852
        %v855 = vunpack.c.l.s4 1934713408
        %v856 = vunpack.c.0.s8 %v855
        %v857 = vperm.slane %v849, %v856
        %v858 = vrot.slane %v845, 4
        %v859 = vsel %vm822, %v858, %v833
        %v860 = vrot.slane %v833, 4
        %v861 = vsel %vm822, %v845, %v860
        %v863 = vunpack.c.l.s4 1934713408
        %v864 = vunpack.c.0.s8 %v863
        %v865 = vperm.slane %v859, %v864
        %v867 = vunpack.c.l.s4 1934713408
        %v868 = vunpack.c.0.s8 %v867
        %v869 = vperm.slane %v861, %v868
        %v870 = vrot.slane %v853, 4
        %v871 = vsel %vm822, 0.0, %v870
        %v872 = vrot.slane %v857, 4
        %v873 = vsel %vm822, 0.0, %v872
        %v874 = vrot.slane %v865, 4
        %v875 = vsel %vm822, 0.0, %v874
        %v876 = vrot.slane %v869, 4
        %v877 = vsel %vm822, 0.0, %v876
        %v878 = vrot.slane %v800, 4
        %v879 = vsel %vm822, %v878, %v778
        %v880 = vrot.slane %v778, 4
        %v881 = vsel %vm822, %v800, %v880
        %v883 = vunpack.c.l.s4 1983009808
        %v884 = vunpack.c.0.s8 %v883
        %v885 = vperm.slane %v879, %v884
        %v887 = vunpack.c.l.s4 1983009808
        %v888 = vunpack.c.0.s8 %v887
        %v889 = vperm.slane %v881, %v888
        %v890 = vrot.slane %v812, 4
        %v891 = vsel %vm822, %v890, %v788
        %v892 = vrot.slane %v788, 4
        %v893 = vsel %vm822, %v812, %v892
        %v895 = vunpack.c.l.s4 1983009808
        %v896 = vunpack.c.0.s8 %v895
        %v897 = vperm.slane %v891, %v896
        %v899 = vunpack.c.l.s4 1983009808
        %v900 = vunpack.c.0.s8 %v899
        %v901 = vperm.slane %v893, %v900
        %v902 = vrot.slane %v897, 4
        %v903 = vsel %vm822, %v902, %v885
        %v904 = vrot.slane %v885, 4
        %v905 = vsel %vm822, %v897, %v904
        %v907 = vunpack.c.l.s4 1934713408
        %v908 = vunpack.c.0.s8 %v907
        %v909 = vperm.slane %v903, %v908
        %v911 = vunpack.c.l.s4 1934713408
        %v912 = vunpack.c.0.s8 %v911
        %v913 = vperm.slane %v905, %v912
        %v914 = vrot.slane %v901, 4
        %v915 = vsel %vm822, %v914, %v889
        %v916 = vrot.slane %v889, 4
        %v917 = vsel %vm822, %v901, %v916
        %v919 = vunpack.c.l.s4 1934713408
        %v920 = vunpack.c.0.s8 %v919
        %v921 = vperm.slane %v915, %v920
        %v923 = vunpack.c.l.s4 1934713408
        %v924 = vunpack.c.0.s8 %v923
        %v925 = vperm.slane %v917, %v924
        %v926 = vrot.slane %v909, 4
        %v927 = vsel %vm822, 0.0, %v926
        %v928 = vrot.slane %v913, 4
        %v929 = vsel %vm822, 0.0, %v928
        %v930 = vrot.slane %v921, 4
        %v931 = vsel %vm822, 0.0, %v930
        %v932 = vrot.slane %v925, 4
        %v933 = vsel %vm822, 0.0, %v932
        %v934 = vrot.slane %v802, 4
        %v935 = vsel %vm822, %v934, %v779
        %v936 = vrot.slane %v779, 4
        %v937 = vsel %vm822, %v802, %v936
        %v939 = vunpack.c.l.s4 1983009808
        %v940 = vunpack.c.0.s8 %v939
        %v941 = vperm.slane %v935, %v940
        %v943 = vunpack.c.l.s4 1983009808
        %v944 = vunpack.c.0.s8 %v943
        %v945 = vperm.slane %v937, %v944
        %v946 = vrot.slane %v814, 4
        %v947 = vsel %vm822, %v946, %v790
        %v948 = vrot.slane %v790, 4
        %v949 = vsel %vm822, %v814, %v948
        %v951 = vunpack.c.l.s4 1983009808
        %v952 = vunpack.c.0.s8 %v951
        %v953 = vperm.slane %v947, %v952
        %v955 = vunpack.c.l.s4 1983009808
        %v956 = vunpack.c.0.s8 %v955
        %v957 = vperm.slane %v949, %v956
        %v958 = vrot.slane %v953, 4
        %v959 = vsel %vm822, %v958, %v941
        %v960 = vrot.slane %v941, 4
        %v961 = vsel %vm822, %v953, %v960
        %v963 = vunpack.c.l.s4 1934713408
        %v964 = vunpack.c.0.s8 %v963
        %v965 = vperm.slane %v959, %v964
        %v967 = vunpack.c.l.s4 1934713408
        %v968 = vunpack.c.0.s8 %v967
        %v969 = vperm.slane %v961, %v968
        %v970 = vrot.slane %v957, 4
        %v971 = vsel %vm822, %v970, %v945
        %v972 = vrot.slane %v945, 4
        %v973 = vsel %vm822, %v957, %v972
        %v975 = vunpack.c.l.s4 1934713408
        %v976 = vunpack.c.0.s8 %v975
        %v977 = vperm.slane %v971, %v976
        %v979 = vunpack.c.l.s4 1934713408
        %v980 = vunpack.c.0.s8 %v979
        %v981 = vperm.slane %v973, %v980
        %v982 = vrot.slane %v965, 4
        %v983 = vsel %vm822, 0.0, %v982
        %v984 = vrot.slane %v969, 4
        %v985 = vsel %vm822, 0.0, %v984
        %v986 = vrot.slane %v977, 4
        %v987 = vsel %vm822, 0.0, %v986
        %v988 = vrot.slane %v981, 4
        %v989 = vsel %vm822, 0.0, %v988
        %v990 = vrot.slane %v804, 4
        %v991 = vsel %vm822, %v990, %v780
        %v992 = vrot.slane %v780, 4
        %v993 = vsel %vm822, %v804, %v992
        %v995 = vunpack.c.l.s4 1983009808
        %v996 = vunpack.c.0.s8 %v995
        %v997 = vperm.slane %v991, %v996
        %v999 = vunpack.c.l.s4 1983009808
        %v1000 = vunpack.c.0.s8 %v999
        %v1001 = vperm.slane %v993, %v1000
        %v1002 = vrot.slane %v816, 4
        %v1003 = vsel %vm822, %v1002, %v792
        %v1004 = vrot.slane %v792, 4
        %v1005 = vsel %vm822, %v816, %v1004
        %v1007 = vunpack.c.l.s4 1983009808
        %v1008 = vunpack.c.0.s8 %v1007
        %v1009 = vperm.slane %v1003, %v1008
        %v1011 = vunpack.c.l.s4 1983009808
        %v1012 = vunpack.c.0.s8 %v1011
        %v1013 = vperm.slane %v1005, %v1012
        %v1014 = vrot.slane %v1009, 4
        %v1015 = vsel %vm822, %v1014, %v997
        %v1016 = vrot.slane %v997, 4
        %v1017 = vsel %vm822, %v1009, %v1016
        %v1019 = vunpack.c.l.s4 1934713408
        %v1020 = vunpack.c.0.s8 %v1019
        %v1021 = vperm.slane %v1015, %v1020
        %v1023 = vunpack.c.l.s4 1934713408
        %v1024 = vunpack.c.0.s8 %v1023
        %v1025 = vperm.slane %v1017, %v1024
        %v1026 = vrot.slane %v1013, 4
        %v1027 = vsel %vm822, %v1026, %v1001
        %v1028 = vrot.slane %v1001, 4
        %v1029 = vsel %vm822, %v1013, %v1028
        %v1031 = vunpack.c.l.s4 1934713408
        %v1032 = vunpack.c.0.s8 %v1031
        %v1033 = vperm.slane %v1027, %v1032
        %v1035 = vunpack.c.l.s4 1934713408
        %v1036 = vunpack.c.0.s8 %v1035
        %v1037 = vperm.slane %v1029, %v1036
        %v1038 = vrot.slane %v1021, 4
        %v1039 = vsel %vm822, 0.0, %v1038
        %v1040 = vrot.slane %v1025, 4
        %v1041 = vsel %vm822, 0.0, %v1040
        %v1042 = vrot.slane %v1033, 4
        %v1043 = vsel %vm822, 0.0, %v1042
        %v1044 = vrot.slane %v1037, 4
        %v1045 = vsel %vm822, 0.0, %v1044
        %v1046 = vsel %vm822, %v872, %v853
        %v1048 = vunpack.c.l.s4 1983009808
        %v1049 = vunpack.c.0.s8 %v1048
        %v1050 = vperm.slane %v1046, %v1049
        %v1051 = vrot.slane %v873, 4
        %v1052 = vsel %vm822, %v1051, %v871
        %v1054 = vunpack.c.l.s4 1983009808
        %v1055 = vunpack.c.0.s8 %v1054
        %v1056 = vperm.slane %v1052, %v1055
        %v1057 = vsel %vm822, %v876, %v865
        %v1059 = vunpack.c.l.s4 1983009808
        %v1060 = vunpack.c.0.s8 %v1059
        %v1061 = vperm.slane %v1057, %v1060
        %v1062 = vrot.slane %v877, 4
        %v1063 = vsel %vm822, %v1062, %v875
        %v1065 = vunpack.c.l.s4 1983009808
        %v1066 = vunpack.c.0.s8 %v1065
        %v1067 = vperm.slane %v1063, %v1066
        %v1068 = vrot.slane %v1056, 4
        %v1069 = vsel %vm822, %v1068, %v1050
        %v1070 = vrot.slane %v1050, 4
        %v1071 = vsel %vm822, %v1056, %v1070
        %v1073 = vunpack.c.l.s4 1934713408
        %v1074 = vunpack.c.0.s8 %v1073
        %v1075 = vperm.slane %v1069, %v1074
        %v1077 = vunpack.c.l.s4 1934713408
        %v1078 = vunpack.c.0.s8 %v1077
        %v1079 = vperm.slane %v1071, %v1078
        %v1080 = vrot.slane %v1067, 4
        %v1081 = vsel %vm822, %v1080, %v1061
        %v1082 = vrot.slane %v1061, 4
        %v1083 = vsel %vm822, %v1067, %v1082
        %v1085 = vunpack.c.l.s4 1934713408
        %v1086 = vunpack.c.0.s8 %v1085
        %v1087 = vperm.slane %v1081, %v1086
        %v1089 = vunpack.c.l.s4 1934713408
        %v1090 = vunpack.c.0.s8 %v1089
        %v1091 = vperm.slane %v1083, %v1090
        %v1092 = vrot.slane %v1087, 4
        %v1093 = vsel %vm822, %v1092, %v1075
        %v1094 = vrot.slane %v1075, 4
        %v1095 = vsel %vm822, %v1087, %v1094
        %v1096 = vrot.slane %v1091, 4
        %v1097 = vsel %vm822, %v1096, %v1079
        %v1098 = vrot.slane %v1079, 4
        %v1099 = vsel %vm822, %v1091, %v1098
        %v1100 = vsel %vm822, %v928, %v909
        %v1102 = vunpack.c.l.s4 1983009808
        %v1103 = vunpack.c.0.s8 %v1102
        %v1104 = vperm.slane %v1100, %v1103
        %v1105 = vrot.slane %v929, 4
        %v1106 = vsel %vm822, %v1105, %v927
        %v1108 = vunpack.c.l.s4 1983009808
        %v1109 = vunpack.c.0.s8 %v1108
        %v1110 = vperm.slane %v1106, %v1109
        %v1111 = vsel %vm822, %v932, %v921
        %v1113 = vunpack.c.l.s4 1983009808
        %v1114 = vunpack.c.0.s8 %v1113
        %v1115 = vperm.slane %v1111, %v1114
        %v1116 = vrot.slane %v933, 4
        %v1117 = vsel %vm822, %v1116, %v931
        %v1119 = vunpack.c.l.s4 1983009808
        %v1120 = vunpack.c.0.s8 %v1119
        %v1121 = vperm.slane %v1117, %v1120
        %v1122 = vrot.slane %v1110, 4
        %v1123 = vsel %vm822, %v1122, %v1104
        %v1124 = vrot.slane %v1104, 4
        %v1125 = vsel %vm822, %v1110, %v1124
        %v1127 = vunpack.c.l.s4 1934713408
        %v1128 = vunpack.c.0.s8 %v1127
        %v1129 = vperm.slane %v1123, %v1128
        %v1131 = vunpack.c.l.s4 1934713408
        %v1132 = vunpack.c.0.s8 %v1131
        %v1133 = vperm.slane %v1125, %v1132
        %v1134 = vrot.slane %v1121, 4
        %v1135 = vsel %vm822, %v1134, %v1115
        %v1136 = vrot.slane %v1115, 4
        %v1137 = vsel %vm822, %v1121, %v1136
        %v1139 = vunpack.c.l.s4 1934713408
        %v1140 = vunpack.c.0.s8 %v1139
        %v1141 = vperm.slane %v1135, %v1140
        %v1143 = vunpack.c.l.s4 1934713408
        %v1144 = vunpack.c.0.s8 %v1143
        %v1145 = vperm.slane %v1137, %v1144
        %v1146 = vrot.slane %v1141, 4
        %v1147 = vsel %vm822, %v1146, %v1129
        %v1148 = vrot.slane %v1129, 4
        %v1149 = vsel %vm822, %v1141, %v1148
        %v1150 = vrot.slane %v1145, 4
        %v1151 = vsel %vm822, %v1150, %v1133
        %v1152 = vrot.slane %v1133, 4
        %v1153 = vsel %vm822, %v1145, %v1152
        %v1154 = vsel %vm822, %v984, %v965
        %v1156 = vunpack.c.l.s4 1983009808
        %v1157 = vunpack.c.0.s8 %v1156
        %v1158 = vperm.slane %v1154, %v1157
        %v1159 = vrot.slane %v985, 4
        %v1160 = vsel %vm822, %v1159, %v983
        %v1162 = vunpack.c.l.s4 1983009808
        %v1163 = vunpack.c.0.s8 %v1162
        %v1164 = vperm.slane %v1160, %v1163
        %v1165 = vsel %vm822, %v988, %v977
        %v1167 = vunpack.c.l.s4 1983009808
        %v1168 = vunpack.c.0.s8 %v1167
        %v1169 = vperm.slane %v1165, %v1168
        %v1170 = vrot.slane %v989, 4
        %v1171 = vsel %vm822, %v1170, %v987
        %v1173 = vunpack.c.l.s4 1983009808
        %v1174 = vunpack.c.0.s8 %v1173
        %v1175 = vperm.slane %v1171, %v1174
        %v1176 = vrot.slane %v1164, 4
        %v1177 = vsel %vm822, %v1176, %v1158
        %v1178 = vrot.slane %v1158, 4
        %v1179 = vsel %vm822, %v1164, %v1178
        %v1181 = vunpack.c.l.s4 1934713408
        %v1182 = vunpack.c.0.s8 %v1181
        %v1183 = vperm.slane %v1177, %v1182
        %v1185 = vunpack.c.l.s4 1934713408
        %v1186 = vunpack.c.0.s8 %v1185
        %v1187 = vperm.slane %v1179, %v1186
        %v1188 = vrot.slane %v1175, 4
        %v1189 = vsel %vm822, %v1188, %v1169
        %v1190 = vrot.slane %v1169, 4
        %v1191 = vsel %vm822, %v1175, %v1190
        %v1193 = vunpack.c.l.s4 1934713408
        %v1194 = vunpack.c.0.s8 %v1193
        %v1195 = vperm.slane %v1189, %v1194
        %v1197 = vunpack.c.l.s4 1934713408
        %v1198 = vunpack.c.0.s8 %v1197
        %v1199 = vperm.slane %v1191, %v1198
        %v1200 = vrot.slane %v1195, 4
        %v1201 = vsel %vm822, %v1200, %v1183
        %v1202 = vrot.slane %v1183, 4
        %v1203 = vsel %vm822, %v1195, %v1202
        %v1204 = vrot.slane %v1199, 4
        %v1205 = vsel %vm822, %v1204, %v1187
        %v1206 = vrot.slane %v1187, 4
        %v1207 = vsel %vm822, %v1199, %v1206
        %v1208 = vsel %vm822, %v1040, %v1021
        %v1210 = vunpack.c.l.s4 1983009808
        %v1211 = vunpack.c.0.s8 %v1210
        %v1212 = vperm.slane %v1208, %v1211
        %v1213 = vrot.slane %v1041, 4
        %v1214 = vsel %vm822, %v1213, %v1039
        %v1216 = vunpack.c.l.s4 1983009808
        %v1217 = vunpack.c.0.s8 %v1216
        %v1218 = vperm.slane %v1214, %v1217
        %v1219 = vsel %vm822, %v1044, %v1033
        %v1221 = vunpack.c.l.s4 1983009808
        %v1222 = vunpack.c.0.s8 %v1221
        %v1223 = vperm.slane %v1219, %v1222
        %v1224 = vrot.slane %v1045, 4
        %v1225 = vsel %vm822, %v1224, %v1043
        %v1227 = vunpack.c.l.s4 1983009808
        %v1228 = vunpack.c.0.s8 %v1227
        %v1229 = vperm.slane %v1225, %v1228
        %v1230 = vrot.slane %v1218, 4
        %v1231 = vsel %vm822, %v1230, %v1212
        %v1232 = vrot.slane %v1212, 4
        %v1233 = vsel %vm822, %v1218, %v1232
        %v1235 = vunpack.c.l.s4 1934713408
        %v1236 = vunpack.c.0.s8 %v1235
        %v1237 = vperm.slane %v1231, %v1236
        %v1239 = vunpack.c.l.s4 1934713408
        %v1240 = vunpack.c.0.s8 %v1239
        %v1241 = vperm.slane %v1233, %v1240
        %v1242 = vrot.slane %v1229, 4
        %v1243 = vsel %vm822, %v1242, %v1223
        %v1244 = vrot.slane %v1223, 4
        %v1245 = vsel %vm822, %v1229, %v1244
        %v1247 = vunpack.c.l.s4 1934713408
        %v1248 = vunpack.c.0.s8 %v1247
        %v1249 = vperm.slane %v1243, %v1248
        %v1251 = vunpack.c.l.s4 1934713408
        %v1252 = vunpack.c.0.s8 %v1251
        %v1253 = vperm.slane %v1245, %v1252
        %v1254 = vrot.slane %v1249, 4
        %v1255 = vsel %vm822, %v1254, %v1237
        %v1256 = vrot.slane %v1237, 4
        %v1257 = vsel %vm822, %v1249, %v1256
        %v1258 = vrot.slane %v1253, 4
        %v1259 = vsel %vm822, %v1258, %v1241
        %v1260 = vrot.slane %v1241, 4
        %v1261 = vsel %vm822, %v1253, %v1260
        %v1262 = vpack.c.bf16 %v1093, %v1093
        %v1263 = vpack.c.bf16 %v1147, %v1147
        %v1264 = vpack.c.bf16 %v1095, %v1095
        %v1265 = vpack.c.bf16 %v1149, %v1149
        %v1266 = vpack.c.bf16 %v1097, %v1097
        %v1267 = vpack.c.bf16 %v1151, %v1151
        %v1268 = vpack.c.bf16 %v1099, %v1099
        %v1269 = vpack.c.bf16 %v1153, %v1153
        %v1270 = vpack.c.bf16 %v1201, %v1201
        %v1271 = vpack.c.bf16 %v1255, %v1255
        %v1272 = vpack.c.bf16 %v1203, %v1203
        %v1273 = vpack.c.bf16 %v1257, %v1257
        %v1274 = vpack.c.bf16 %v1205, %v1205
        %v1275 = vpack.c.bf16 %v1259, %v1259
        %v1276 = vpack.c.bf16 %v1207, %v1207
        %v1277 = vpack.c.bf16 %v1261, %v1261
        %1282 = vrot.lane.b32.xlu0 %v749, 96
        %v1283 = vpop.permute.xlu0 %1282
        %1284 = vrot.lane.b32.xlu0 %v751, 96
        %v1285 = vpop.permute.xlu0 %1284
        %1286 = vrot.lane.b32.xlu0 %v754, 96
        %v1287 = vpop.permute.xlu0 %1286
        %1288 = vrot.lane.b32.xlu0 %v756, 96
        %v1289 = vpop.permute.xlu0 %1288
        %1294 = vrot.lane.b32.xlu0 %v749, 64
        %v1295 = vpop.permute.xlu0 %1294
        %1296 = vrot.lane.b32.xlu0 %v751, 64
        %v1297 = vpop.permute.xlu0 %1296
        %1298 = vrot.lane.b32.xlu0 %v754, 64
        %v1299 = vpop.permute.xlu0 %1298
        %1300 = vrot.lane.b32.xlu0 %v756, 64
        %v1301 = vpop.permute.xlu0 %1300
        %1306 = vrot.lane.b32.xlu0 %v749, 32
        %v1307 = vpop.permute.xlu0 %1306
        %1308 = vrot.lane.b32.xlu0 %v751, 32
        %v1309 = vpop.permute.xlu0 %1308
        %1310 = vrot.lane.b32.xlu0 %v754, 32
        %v1311 = vpop.permute.xlu0 %1310
        %1312 = vrot.lane.b32.xlu0 %v756, 32
        %v1313 = vpop.permute.xlu0 %1312
        %v1318 = vrot.slane %v1295, 4
        %v1319 = vsel %vm822, %v1318, %v749
        %v1320 = vrot.slane %v749, 4
        %v1321 = vsel %vm822, %v1295, %v1320
        %v1323 = vunpack.c.l.s4 1983009808
        %v1324 = vunpack.c.0.s8 %v1323
        %v1325 = vperm.slane %v1319, %v1324
        %v1327 = vunpack.c.l.s4 1983009808
        %v1328 = vunpack.c.0.s8 %v1327
        %v1329 = vperm.slane %v1321, %v1328
        %v1330 = vrot.slane %v1307, 4
        %v1331 = vsel %vm822, %v1330, %v1283
        %v1332 = vrot.slane %v1283, 4
        %v1333 = vsel %vm822, %v1307, %v1332
        %v1335 = vunpack.c.l.s4 1983009808
        %v1336 = vunpack.c.0.s8 %v1335
        %v1337 = vperm.slane %v1331, %v1336
        %v1339 = vunpack.c.l.s4 1983009808
        %v1340 = vunpack.c.0.s8 %v1339
        %v1341 = vperm.slane %v1333, %v1340
        %v1342 = vrot.slane %v1337, 4
        %v1343 = vsel %vm822, %v1342, %v1325
        %v1344 = vrot.slane %v1325, 4
        %v1345 = vsel %vm822, %v1337, %v1344
        %v1347 = vunpack.c.l.s4 1934713408
        %v1348 = vunpack.c.0.s8 %v1347
        %v1349 = vperm.slane %v1343, %v1348
        %v1351 = vunpack.c.l.s4 1934713408
        %v1352 = vunpack.c.0.s8 %v1351
        %v1353 = vperm.slane %v1345, %v1352
        %v1354 = vrot.slane %v1341, 4
        %v1355 = vsel %vm822, %v1354, %v1329
        %v1356 = vrot.slane %v1329, 4
        %v1357 = vsel %vm822, %v1341, %v1356
        %v1359 = vunpack.c.l.s4 1934713408
        %v1360 = vunpack.c.0.s8 %v1359
        %v1361 = vperm.slane %v1355, %v1360
        %v1363 = vunpack.c.l.s4 1934713408
        %v1364 = vunpack.c.0.s8 %v1363
        %v1365 = vperm.slane %v1357, %v1364
        %v1366 = vrot.slane %v1349, 4
        %v1367 = vsel %vm822, 0.0, %v1366
        %v1368 = vrot.slane %v1353, 4
        %v1369 = vsel %vm822, 0.0, %v1368
        %v1370 = vrot.slane %v1361, 4
        %v1371 = vsel %vm822, 0.0, %v1370
        %v1372 = vrot.slane %v1365, 4
        %v1373 = vsel %vm822, 0.0, %v1372
        %v1374 = vrot.slane %v1297, 4
        %v1375 = vsel %vm822, %v1374, %v751
        %v1376 = vrot.slane %v751, 4
        %v1377 = vsel %vm822, %v1297, %v1376
        %v1379 = vunpack.c.l.s4 1983009808
        %v1380 = vunpack.c.0.s8 %v1379
        %v1381 = vperm.slane %v1375, %v1380
        %v1383 = vunpack.c.l.s4 1983009808
        %v1384 = vunpack.c.0.s8 %v1383
        %v1385 = vperm.slane %v1377, %v1384
        %v1386 = vrot.slane %v1309, 4
        %v1387 = vsel %vm822, %v1386, %v1285
        %v1388 = vrot.slane %v1285, 4
        %v1389 = vsel %vm822, %v1309, %v1388
        %v1391 = vunpack.c.l.s4 1983009808
        %v1392 = vunpack.c.0.s8 %v1391
        %v1393 = vperm.slane %v1387, %v1392
        %v1395 = vunpack.c.l.s4 1983009808
        %v1396 = vunpack.c.0.s8 %v1395
        %v1397 = vperm.slane %v1389, %v1396
        %v1398 = vrot.slane %v1393, 4
        %v1399 = vsel %vm822, %v1398, %v1381
        %v1400 = vrot.slane %v1381, 4
        %v1401 = vsel %vm822, %v1393, %v1400
        %v1403 = vunpack.c.l.s4 1934713408
        %v1404 = vunpack.c.0.s8 %v1403
        %v1405 = vperm.slane %v1399, %v1404
        %v1407 = vunpack.c.l.s4 1934713408
        %v1408 = vunpack.c.0.s8 %v1407
        %v1409 = vperm.slane %v1401, %v1408
        %v1410 = vrot.slane %v1397, 4
        %v1411 = vsel %vm822, %v1410, %v1385
        %v1412 = vrot.slane %v1385, 4
        %v1413 = vsel %vm822, %v1397, %v1412
        %v1415 = vunpack.c.l.s4 1934713408
        %v1416 = vunpack.c.0.s8 %v1415
        %v1417 = vperm.slane %v1411, %v1416
        %v1419 = vunpack.c.l.s4 1934713408
        %v1420 = vunpack.c.0.s8 %v1419
        %v1421 = vperm.slane %v1413, %v1420
        %v1422 = vrot.slane %v1405, 4
        %v1423 = vsel %vm822, 0.0, %v1422
        %v1424 = vrot.slane %v1409, 4
        %v1425 = vsel %vm822, 0.0, %v1424
        %v1426 = vrot.slane %v1417, 4
        %v1427 = vsel %vm822, 0.0, %v1426
        %v1428 = vrot.slane %v1421, 4
        %v1429 = vsel %vm822, 0.0, %v1428
        %v1430 = vrot.slane %v1299, 4
        %v1431 = vsel %vm822, %v1430, %v754
        %v1432 = vrot.slane %v754, 4
        %v1433 = vsel %vm822, %v1299, %v1432
        %v1435 = vunpack.c.l.s4 1983009808
        %v1436 = vunpack.c.0.s8 %v1435
        %v1437 = vperm.slane %v1431, %v1436
        %v1439 = vunpack.c.l.s4 1983009808
        %v1440 = vunpack.c.0.s8 %v1439
        %v1441 = vperm.slane %v1433, %v1440
        %v1442 = vrot.slane %v1311, 4
        %v1443 = vsel %vm822, %v1442, %v1287
        %v1444 = vrot.slane %v1287, 4
        %v1445 = vsel %vm822, %v1311, %v1444
        %v1447 = vunpack.c.l.s4 1983009808
        %v1448 = vunpack.c.0.s8 %v1447
        %v1449 = vperm.slane %v1443, %v1448
        %v1451 = vunpack.c.l.s4 1983009808
        %v1452 = vunpack.c.0.s8 %v1451
        %v1453 = vperm.slane %v1445, %v1452
        %v1454 = vrot.slane %v1449, 4
        %v1455 = vsel %vm822, %v1454, %v1437
        %v1456 = vrot.slane %v1437, 4
        %v1457 = vsel %vm822, %v1449, %v1456
        %v1459 = vunpack.c.l.s4 1934713408
        %v1460 = vunpack.c.0.s8 %v1459
        %v1461 = vperm.slane %v1455, %v1460
        %v1463 = vunpack.c.l.s4 1934713408
        %v1464 = vunpack.c.0.s8 %v1463
        %v1465 = vperm.slane %v1457, %v1464
        %v1466 = vrot.slane %v1453, 4
        %v1467 = vsel %vm822, %v1466, %v1441
        %v1468 = vrot.slane %v1441, 4
        %v1469 = vsel %vm822, %v1453, %v1468
        %v1471 = vunpack.c.l.s4 1934713408
        %v1472 = vunpack.c.0.s8 %v1471
        %v1473 = vperm.slane %v1467, %v1472
        %v1475 = vunpack.c.l.s4 1934713408
        %v1476 = vunpack.c.0.s8 %v1475
        %v1477 = vperm.slane %v1469, %v1476
        %v1478 = vrot.slane %v1461, 4
        %v1479 = vsel %vm822, 0.0, %v1478
        %v1480 = vrot.slane %v1465, 4
        %v1481 = vsel %vm822, 0.0, %v1480
        %v1482 = vrot.slane %v1473, 4
        %v1483 = vsel %vm822, 0.0, %v1482
        %v1484 = vrot.slane %v1477, 4
        %v1485 = vsel %vm822, 0.0, %v1484
        %v1486 = vrot.slane %v1301, 4
        %v1487 = vsel %vm822, %v1486, %v756
        %v1488 = vrot.slane %v756, 4
        %v1489 = vsel %vm822, %v1301, %v1488
        %v1491 = vunpack.c.l.s4 1983009808
        %v1492 = vunpack.c.0.s8 %v1491
        %v1493 = vperm.slane %v1487, %v1492
        %v1495 = vunpack.c.l.s4 1983009808
        %v1496 = vunpack.c.0.s8 %v1495
        %v1497 = vperm.slane %v1489, %v1496
        %v1498 = vrot.slane %v1313, 4
        %v1499 = vsel %vm822, %v1498, %v1289
        %v1500 = vrot.slane %v1289, 4
        %v1501 = vsel %vm822, %v1313, %v1500
        %v1503 = vunpack.c.l.s4 1983009808
        %v1504 = vunpack.c.0.s8 %v1503
        %v1505 = vperm.slane %v1499, %v1504
        %v1507 = vunpack.c.l.s4 1983009808
        %v1508 = vunpack.c.0.s8 %v1507
        %v1509 = vperm.slane %v1501, %v1508
        %v1510 = vrot.slane %v1505, 4
        %v1511 = vsel %vm822, %v1510, %v1493
        %v1512 = vrot.slane %v1493, 4
        %v1513 = vsel %vm822, %v1505, %v1512
        %v1515 = vunpack.c.l.s4 1934713408
        %v1516 = vunpack.c.0.s8 %v1515
        %v1517 = vperm.slane %v1511, %v1516
        %v1519 = vunpack.c.l.s4 1934713408
        %v1520 = vunpack.c.0.s8 %v1519
        %v1521 = vperm.slane %v1513, %v1520
        %v1522 = vrot.slane %v1509, 4
        %v1523 = vsel %vm822, %v1522, %v1497
        %v1524 = vrot.slane %v1497, 4
        %v1525 = vsel %vm822, %v1509, %v1524
        %v1527 = vunpack.c.l.s4 1934713408
        %v1528 = vunpack.c.0.s8 %v1527
        %v1529 = vperm.slane %v1523, %v1528
        %v1531 = vunpack.c.l.s4 1934713408
        %v1532 = vunpack.c.0.s8 %v1531
        %v1533 = vperm.slane %v1525, %v1532
        %v1534 = vrot.slane %v1517, 4
        %v1535 = vsel %vm822, 0.0, %v1534
        %v1536 = vrot.slane %v1521, 4
        %v1537 = vsel %vm822, 0.0, %v1536
        %v1538 = vrot.slane %v1529, 4
        %v1539 = vsel %vm822, 0.0, %v1538
        %v1540 = vrot.slane %v1533, 4
        %v1541 = vsel %vm822, 0.0, %v1540
        %v1542 = vsel %vm822, %v1368, %v1349
        %v1544 = vunpack.c.l.s4 1983009808
        %v1545 = vunpack.c.0.s8 %v1544
        %v1546 = vperm.slane %v1542, %v1545
        %v1547 = vrot.slane %v1369, 4
        %v1548 = vsel %vm822, %v1547, %v1367
        %v1550 = vunpack.c.l.s4 1983009808
        %v1551 = vunpack.c.0.s8 %v1550
        %v1552 = vperm.slane %v1548, %v1551
        %v1553 = vsel %vm822, %v1372, %v1361
        %v1555 = vunpack.c.l.s4 1983009808
        %v1556 = vunpack.c.0.s8 %v1555
        %v1557 = vperm.slane %v1553, %v1556
        %v1558 = vrot.slane %v1373, 4
        %v1559 = vsel %vm822, %v1558, %v1371
        %v1561 = vunpack.c.l.s4 1983009808
        %v1562 = vunpack.c.0.s8 %v1561
        %v1563 = vperm.slane %v1559, %v1562
        %v1564 = vrot.slane %v1552, 4
        %v1565 = vsel %vm822, %v1564, %v1546
        %v1566 = vrot.slane %v1546, 4
        %v1567 = vsel %vm822, %v1552, %v1566
        %v1569 = vunpack.c.l.s4 1934713408
        %v1570 = vunpack.c.0.s8 %v1569
        %v1571 = vperm.slane %v1565, %v1570
        %v1573 = vunpack.c.l.s4 1934713408
        %v1574 = vunpack.c.0.s8 %v1573
        %v1575 = vperm.slane %v1567, %v1574
        %v1576 = vrot.slane %v1563, 4
        %v1577 = vsel %vm822, %v1576, %v1557
        %v1578 = vrot.slane %v1557, 4
        %v1579 = vsel %vm822, %v1563, %v1578
        %v1581 = vunpack.c.l.s4 1934713408
        %v1582 = vunpack.c.0.s8 %v1581
        %v1583 = vperm.slane %v1577, %v1582
        %v1585 = vunpack.c.l.s4 1934713408
        %v1586 = vunpack.c.0.s8 %v1585
        %v1587 = vperm.slane %v1579, %v1586
        %v1588 = vrot.slane %v1583, 4
        %v1589 = vsel %vm822, %v1588, %v1571
        %v1590 = vrot.slane %v1571, 4
        %v1591 = vsel %vm822, %v1583, %v1590
        %v1592 = vrot.slane %v1587, 4
        %v1593 = vsel %vm822, %v1592, %v1575
        %v1594 = vrot.slane %v1575, 4
        %v1595 = vsel %vm822, %v1587, %v1594
        %v1596 = vsel %vm822, %v1424, %v1405
        %v1598 = vunpack.c.l.s4 1983009808
        %v1599 = vunpack.c.0.s8 %v1598
        %v1600 = vperm.slane %v1596, %v1599
        %v1601 = vrot.slane %v1425, 4
        %v1602 = vsel %vm822, %v1601, %v1423
        %v1604 = vunpack.c.l.s4 1983009808
        %v1605 = vunpack.c.0.s8 %v1604
        %v1606 = vperm.slane %v1602, %v1605
        %v1607 = vsel %vm822, %v1428, %v1417
        %v1609 = vunpack.c.l.s4 1983009808
        %v1610 = vunpack.c.0.s8 %v1609
        %v1611 = vperm.slane %v1607, %v1610
        %v1612 = vrot.slane %v1429, 4
        %v1613 = vsel %vm822, %v1612, %v1427
        %v1615 = vunpack.c.l.s4 1983009808
        %v1616 = vunpack.c.0.s8 %v1615
        %v1617 = vperm.slane %v1613, %v1616
        %v1618 = vrot.slane %v1606, 4
        %v1619 = vsel %vm822, %v1618, %v1600
        %v1620 = vrot.slane %v1600, 4
        %v1621 = vsel %vm822, %v1606, %v1620
        %v1623 = vunpack.c.l.s4 1934713408
        %v1624 = vunpack.c.0.s8 %v1623
        %v1625 = vperm.slane %v1619, %v1624
        %v1627 = vunpack.c.l.s4 1934713408
        %v1628 = vunpack.c.0.s8 %v1627
        %v1629 = vperm.slane %v1621, %v1628
        %v1630 = vrot.slane %v1617, 4
        %v1631 = vsel %vm822, %v1630, %v1611
        %v1632 = vrot.slane %v1611, 4
        %v1633 = vsel %vm822, %v1617, %v1632
        %v1635 = vunpack.c.l.s4 1934713408
        %v1636 = vunpack.c.0.s8 %v1635
        %v1637 = vperm.slane %v1631, %v1636
        %v1639 = vunpack.c.l.s4 1934713408
        %v1640 = vunpack.c.0.s8 %v1639
        %v1641 = vperm.slane %v1633, %v1640
        %v1642 = vrot.slane %v1637, 4
        %v1643 = vsel %vm822, %v1642, %v1625
        %v1644 = vrot.slane %v1625, 4
        %v1645 = vsel %vm822, %v1637, %v1644
        %v1646 = vrot.slane %v1641, 4
        %v1647 = vsel %vm822, %v1646, %v1629
        %v1648 = vrot.slane %v1629, 4
        %v1649 = vsel %vm822, %v1641, %v1648
        %v1650 = vsel %vm822, %v1480, %v1461
        %v1652 = vunpack.c.l.s4 1983009808
        %v1653 = vunpack.c.0.s8 %v1652
        %v1654 = vperm.slane %v1650, %v1653
        %v1655 = vrot.slane %v1481, 4
        %v1656 = vsel %vm822, %v1655, %v1479
        %v1658 = vunpack.c.l.s4 1983009808
        %v1659 = vunpack.c.0.s8 %v1658
        %v1660 = vperm.slane %v1656, %v1659
        %v1661 = vsel %vm822, %v1484, %v1473
        %v1663 = vunpack.c.l.s4 1983009808
        %v1664 = vunpack.c.0.s8 %v1663
        %v1665 = vperm.slane %v1661, %v1664
        %v1666 = vrot.slane %v1485, 4
        %v1667 = vsel %vm822, %v1666, %v1483
        %v1669 = vunpack.c.l.s4 1983009808
        %v1670 = vunpack.c.0.s8 %v1669
        %v1671 = vperm.slane %v1667, %v1670
        %v1672 = vrot.slane %v1660, 4
        %v1673 = vsel %vm822, %v1672, %v1654
        %v1674 = vrot.slane %v1654, 4
        %v1675 = vsel %vm822, %v1660, %v1674
        %v1677 = vunpack.c.l.s4 1934713408
        %v1678 = vunpack.c.0.s8 %v1677
        %v1679 = vperm.slane %v1673, %v1678
        %v1681 = vunpack.c.l.s4 1934713408
        %v1682 = vunpack.c.0.s8 %v1681
        %v1683 = vperm.slane %v1675, %v1682
        %v1684 = vrot.slane %v1671, 4
        %v1685 = vsel %vm822, %v1684, %v1665
        %v1686 = vrot.slane %v1665, 4
        %v1687 = vsel %vm822, %v1671, %v1686
        %v1689 = vunpack.c.l.s4 1934713408
        %v1690 = vunpack.c.0.s8 %v1689
        %v1691 = vperm.slane %v1685, %v1690
        %v1693 = vunpack.c.l.s4 1934713408
        %v1694 = vunpack.c.0.s8 %v1693
        %v1695 = vperm.slane %v1687, %v1694
        %v1696 = vrot.slane %v1691, 4
        %v1697 = vsel %vm822, %v1696, %v1679
        %v1698 = vrot.slane %v1679, 4
        %v1699 = vsel %vm822, %v1691, %v1698
        %v1700 = vrot.slane %v1695, 4
        %v1701 = vsel %vm822, %v1700, %v1683
        %v1702 = vrot.slane %v1683, 4
        %v1703 = vsel %vm822, %v1695, %v1702
        %v1704 = vsel %vm822, %v1536, %v1517
        %v1706 = vunpack.c.l.s4 1983009808
        %v1707 = vunpack.c.0.s8 %v1706
        %v1708 = vperm.slane %v1704, %v1707
        %v1709 = vrot.slane %v1537, 4
        %v1710 = vsel %vm822, %v1709, %v1535
        %v1712 = vunpack.c.l.s4 1983009808
        %v1713 = vunpack.c.0.s8 %v1712
        %v1714 = vperm.slane %v1710, %v1713
        %v1715 = vsel %vm822, %v1540, %v1529
        %v1717 = vunpack.c.l.s4 1983009808
        %v1718 = vunpack.c.0.s8 %v1717
        %v1719 = vperm.slane %v1715, %v1718
        %v1720 = vrot.slane %v1541, 4
        %v1721 = vsel %vm822, %v1720, %v1539
        %v1723 = vunpack.c.l.s4 1983009808
        %v1724 = vunpack.c.0.s8 %v1723
        %v1725 = vperm.slane %v1721, %v1724
        %v1726 = vrot.slane %v1714, 4
        %v1727 = vsel %vm822, %v1726, %v1708
        %v1728 = vrot.slane %v1708, 4
        %v1729 = vsel %vm822, %v1714, %v1728
        %v1731 = vunpack.c.l.s4 1934713408
        %v1732 = vunpack.c.0.s8 %v1731
        %v1733 = vperm.slane %v1727, %v1732
        %v1735 = vunpack.c.l.s4 1934713408
        %v1736 = vunpack.c.0.s8 %v1735
        %v1737 = vperm.slane %v1729, %v1736
        %v1738 = vrot.slane %v1725, 4
        %v1739 = vsel %vm822, %v1738, %v1719
        %v1740 = vrot.slane %v1719, 4
        %v1741 = vsel %vm822, %v1725, %v1740
        %v1743 = vunpack.c.l.s4 1934713408
        %v1744 = vunpack.c.0.s8 %v1743
        %v1745 = vperm.slane %v1739, %v1744
        %v1747 = vunpack.c.l.s4 1934713408
        %v1748 = vunpack.c.0.s8 %v1747
        %v1749 = vperm.slane %v1741, %v1748
        %v1750 = vrot.slane %v1745, 4
        %v1751 = vsel %vm822, %v1750, %v1733
        %v1752 = vrot.slane %v1733, 4
        %v1753 = vsel %vm822, %v1745, %v1752
        %v1754 = vrot.slane %v1749, 4
        %v1755 = vsel %vm822, %v1754, %v1737
        %v1756 = vrot.slane %v1737, 4
        %v1757 = vsel %vm822, %v1749, %v1756
        %v1758 = vpack.c.bf16 %v1589, %v1589
        %v1759 = vpack.c.bf16 %v1643, %v1643
        %v1760 = vpack.c.bf16 %v1591, %v1591
        %v1761 = vpack.c.bf16 %v1645, %v1645
        %v1762 = vpack.c.bf16 %v1593, %v1593
        %v1763 = vpack.c.bf16 %v1647, %v1647
        %v1764 = vpack.c.bf16 %v1595, %v1595
        %v1765 = vpack.c.bf16 %v1649, %v1649
        %v1766 = vpack.c.bf16 %v1697, %v1697
        %v1767 = vpack.c.bf16 %v1751, %v1751
        %v1768 = vpack.c.bf16 %v1699, %v1699
        %v1769 = vpack.c.bf16 %v1753, %v1753
        %v1770 = vpack.c.bf16 %v1701, %v1701
        %v1771 = vpack.c.bf16 %v1755, %v1755
        %v1772 = vpack.c.bf16 %v1703, %v1703
        %v1773 = vpack.c.bf16 %v1757, %v1757
        %1778 = vrot.lane.b32.xlu0 %v768, 96
        %v1779 = vpop.permute.xlu0 %1778
        %1780 = vrot.lane.b32.xlu0 %v770, 96
        %v1781 = vpop.permute.xlu0 %1780
        %1782 = vrot.lane.b32.xlu0 %v773, 96
        %v1783 = vpop.permute.xlu0 %1782
        %1784 = vrot.lane.b32.xlu0 %v775, 96
        %v1785 = vpop.permute.xlu0 %1784
        %1790 = vrot.lane.b32.xlu0 %v768, 64
        %v1791 = vpop.permute.xlu0 %1790
        %1792 = vrot.lane.b32.xlu0 %v770, 64
        %v1793 = vpop.permute.xlu0 %1792
        %1794 = vrot.lane.b32.xlu0 %v773, 64
        %v1795 = vpop.permute.xlu0 %1794
        %1796 = vrot.lane.b32.xlu0 %v775, 64
        %v1797 = vpop.permute.xlu0 %1796
        %1802 = vrot.lane.b32.xlu0 %v768, 32
        %v1803 = vpop.permute.xlu0 %1802
        %1804 = vrot.lane.b32.xlu0 %v770, 32
        %v1805 = vpop.permute.xlu0 %1804
        %1806 = vrot.lane.b32.xlu0 %v773, 32
        %v1807 = vpop.permute.xlu0 %1806
        %1808 = vrot.lane.b32.xlu0 %v775, 32
        %v1809 = vpop.permute.xlu0 %1808
        %v1814 = vrot.slane %v1791, 4
        %v1815 = vsel %vm822, %v1814, %v768
        %v1816 = vrot.slane %v768, 4
        %v1817 = vsel %vm822, %v1791, %v1816
        %v1819 = vunpack.c.l.s4 1983009808
        %v1820 = vunpack.c.0.s8 %v1819
        %v1821 = vperm.slane %v1815, %v1820
        %v1823 = vunpack.c.l.s4 1983009808
        %v1824 = vunpack.c.0.s8 %v1823
        %v1825 = vperm.slane %v1817, %v1824
        %v1826 = vrot.slane %v1803, 4
        %v1827 = vsel %vm822, %v1826, %v1779
        %v1828 = vrot.slane %v1779, 4
        %v1829 = vsel %vm822, %v1803, %v1828
        %v1831 = vunpack.c.l.s4 1983009808
        %v1832 = vunpack.c.0.s8 %v1831
        %v1833 = vperm.slane %v1827, %v1832
        %v1835 = vunpack.c.l.s4 1983009808
        %v1836 = vunpack.c.0.s8 %v1835
        %v1837 = vperm.slane %v1829, %v1836
        %v1838 = vrot.slane %v1833, 4
        %v1839 = vsel %vm822, %v1838, %v1821
        %v1840 = vrot.slane %v1821, 4
        %v1841 = vsel %vm822, %v1833, %v1840
        %v1843 = vunpack.c.l.s4 1934713408
        %v1844 = vunpack.c.0.s8 %v1843
        %v1845 = vperm.slane %v1839, %v1844
        %v1847 = vunpack.c.l.s4 1934713408
        %v1848 = vunpack.c.0.s8 %v1847
        %v1849 = vperm.slane %v1841, %v1848
        %v1850 = vrot.slane %v1837, 4
        %v1851 = vsel %vm822, %v1850, %v1825
        %v1852 = vrot.slane %v1825, 4
        %v1853 = vsel %vm822, %v1837, %v1852
        %v1855 = vunpack.c.l.s4 1934713408
        %v1856 = vunpack.c.0.s8 %v1855
        %v1857 = vperm.slane %v1851, %v1856
        %v1859 = vunpack.c.l.s4 1934713408
        %v1860 = vunpack.c.0.s8 %v1859
        %v1861 = vperm.slane %v1853, %v1860
        %v1862 = vrot.slane %v1845, 4
        %v1863 = vsel %vm822, 0.0, %v1862
        %v1864 = vrot.slane %v1849, 4
        %v1865 = vsel %vm822, 0.0, %v1864
        %v1866 = vrot.slane %v1857, 4
        %v1867 = vsel %vm822, 0.0, %v1866
        %v1868 = vrot.slane %v1861, 4
        %v1869 = vsel %vm822, 0.0, %v1868
        %v1870 = vrot.slane %v1793, 4
        %v1871 = vsel %vm822, %v1870, %v770
        %v1872 = vrot.slane %v770, 4
        %v1873 = vsel %vm822, %v1793, %v1872
        %v1875 = vunpack.c.l.s4 1983009808
        %v1876 = vunpack.c.0.s8 %v1875
        %v1877 = vperm.slane %v1871, %v1876
        %v1879 = vunpack.c.l.s4 1983009808
        %v1880 = vunpack.c.0.s8 %v1879
        %v1881 = vperm.slane %v1873, %v1880
        %v1882 = vrot.slane %v1805, 4
        %v1883 = vsel %vm822, %v1882, %v1781
        %v1884 = vrot.slane %v1781, 4
        %v1885 = vsel %vm822, %v1805, %v1884
        %v1887 = vunpack.c.l.s4 1983009808
        %v1888 = vunpack.c.0.s8 %v1887
        %v1889 = vperm.slane %v1883, %v1888
        %v1891 = vunpack.c.l.s4 1983009808
        %v1892 = vunpack.c.0.s8 %v1891
        %v1893 = vperm.slane %v1885, %v1892
        %v1894 = vrot.slane %v1889, 4
        %v1895 = vsel %vm822, %v1894, %v1877
        %v1896 = vrot.slane %v1877, 4
        %v1897 = vsel %vm822, %v1889, %v1896
        %v1899 = vunpack.c.l.s4 1934713408
        %v1900 = vunpack.c.0.s8 %v1899
        %v1901 = vperm.slane %v1895, %v1900
        %v1903 = vunpack.c.l.s4 1934713408
        %v1904 = vunpack.c.0.s8 %v1903
        %v1905 = vperm.slane %v1897, %v1904
        %v1906 = vrot.slane %v1893, 4
        %v1907 = vsel %vm822, %v1906, %v1881
        %v1908 = vrot.slane %v1881, 4
        %v1909 = vsel %vm822, %v1893, %v1908
        %v1911 = vunpack.c.l.s4 1934713408
        %v1912 = vunpack.c.0.s8 %v1911
        %v1913 = vperm.slane %v1907, %v1912
        %v1915 = vunpack.c.l.s4 1934713408
        %v1916 = vunpack.c.0.s8 %v1915
        %v1917 = vperm.slane %v1909, %v1916
        %v1918 = vrot.slane %v1901, 4
        %v1919 = vsel %vm822, 0.0, %v1918
        %v1920 = vrot.slane %v1905, 4
        %v1921 = vsel %vm822, 0.0, %v1920
        %v1922 = vrot.slane %v1913, 4
        %v1923 = vsel %vm822, 0.0, %v1922
        %v1924 = vrot.slane %v1917, 4
        %v1925 = vsel %vm822, 0.0, %v1924
        %v1926 = vrot.slane %v1795, 4
        %v1927 = vsel %vm822, %v1926, %v773
        %v1928 = vrot.slane %v773, 4
        %v1929 = vsel %vm822, %v1795, %v1928
        %v1931 = vunpack.c.l.s4 1983009808
        %v1932 = vunpack.c.0.s8 %v1931
        %v1933 = vperm.slane %v1927, %v1932
        %v1935 = vunpack.c.l.s4 1983009808
        %v1936 = vunpack.c.0.s8 %v1935
        %v1937 = vperm.slane %v1929, %v1936
        %v1938 = vrot.slane %v1807, 4
        %v1939 = vsel %vm822, %v1938, %v1783
        %v1940 = vrot.slane %v1783, 4
        %v1941 = vsel %vm822, %v1807, %v1940
        %v1943 = vunpack.c.l.s4 1983009808
        %v1944 = vunpack.c.0.s8 %v1943
        %v1945 = vperm.slane %v1939, %v1944
        %v1947 = vunpack.c.l.s4 1983009808
        %v1948 = vunpack.c.0.s8 %v1947
        %v1949 = vperm.slane %v1941, %v1948
        %v1950 = vrot.slane %v1945, 4
        %v1951 = vsel %vm822, %v1950, %v1933
        %v1952 = vrot.slane %v1933, 4
        %v1953 = vsel %vm822, %v1945, %v1952
        %v1955 = vunpack.c.l.s4 1934713408
        %v1956 = vunpack.c.0.s8 %v1955
        %v1957 = vperm.slane %v1951, %v1956
        %v1959 = vunpack.c.l.s4 1934713408
        %v1960 = vunpack.c.0.s8 %v1959
        %v1961 = vperm.slane %v1953, %v1960
        %v1962 = vrot.slane %v1949, 4
        %v1963 = vsel %vm822, %v1962, %v1937
        %v1964 = vrot.slane %v1937, 4
        %v1965 = vsel %vm822, %v1949, %v1964
        %v1967 = vunpack.c.l.s4 1934713408
        %v1968 = vunpack.c.0.s8 %v1967
        %v1969 = vperm.slane %v1963, %v1968
        %v1971 = vunpack.c.l.s4 1934713408
        %v1972 = vunpack.c.0.s8 %v1971
        %v1973 = vperm.slane %v1965, %v1972
        %v1974 = vrot.slane %v1957, 4
        %v1975 = vsel %vm822, 0.0, %v1974
        %v1976 = vrot.slane %v1961, 4
        %v1977 = vsel %vm822, 0.0, %v1976
        %v1978 = vrot.slane %v1969, 4
        %v1979 = vsel %vm822, 0.0, %v1978
        %v1980 = vrot.slane %v1973, 4
        %v1981 = vsel %vm822, 0.0, %v1980
        %v1982 = vrot.slane %v1797, 4
        %v1983 = vsel %vm822, %v1982, %v775
        %v1984 = vrot.slane %v775, 4
        %v1985 = vsel %vm822, %v1797, %v1984
        %v1987 = vunpack.c.l.s4 1983009808
        %v1988 = vunpack.c.0.s8 %v1987
        %v1989 = vperm.slane %v1983, %v1988
        %v1991 = vunpack.c.l.s4 1983009808
        %v1992 = vunpack.c.0.s8 %v1991
        %v1993 = vperm.slane %v1985, %v1992
        %v1994 = vrot.slane %v1809, 4
        %v1995 = vsel %vm822, %v1994, %v1785
        %v1996 = vrot.slane %v1785, 4
        %v1997 = vsel %vm822, %v1809, %v1996
        %v1999 = vunpack.c.l.s4 1983009808
        %v2000 = vunpack.c.0.s8 %v1999
        %v2001 = vperm.slane %v1995, %v2000
        %v2003 = vunpack.c.l.s4 1983009808
        %v2004 = vunpack.c.0.s8 %v2003
        %v2005 = vperm.slane %v1997, %v2004
        %v2006 = vrot.slane %v2001, 4
        %v2007 = vsel %vm822, %v2006, %v1989
        %v2008 = vrot.slane %v1989, 4
        %v2009 = vsel %vm822, %v2001, %v2008
        %v2011 = vunpack.c.l.s4 1934713408
        %v2012 = vunpack.c.0.s8 %v2011
        %v2013 = vperm.slane %v2007, %v2012
        %v2015 = vunpack.c.l.s4 1934713408
        %v2016 = vunpack.c.0.s8 %v2015
        %v2017 = vperm.slane %v2009, %v2016
        %v2018 = vrot.slane %v2005, 4
        %v2019 = vsel %vm822, %v2018, %v1993
        %v2020 = vrot.slane %v1993, 4
        %v2021 = vsel %vm822, %v2005, %v2020
        %v2023 = vunpack.c.l.s4 1934713408
        %v2024 = vunpack.c.0.s8 %v2023
        %v2025 = vperm.slane %v2019, %v2024
        %v2027 = vunpack.c.l.s4 1934713408
        %v2028 = vunpack.c.0.s8 %v2027
        %v2029 = vperm.slane %v2021, %v2028
        %v2030 = vrot.slane %v2013, 4
        %v2031 = vsel %vm822, 0.0, %v2030
        %v2032 = vrot.slane %v2017, 4
        %v2033 = vsel %vm822, 0.0, %v2032
        %v2034 = vrot.slane %v2025, 4
        %v2035 = vsel %vm822, 0.0, %v2034
        %v2036 = vrot.slane %v2029, 4
        %v2037 = vsel %vm822, 0.0, %v2036
        %v2038 = vsel %vm822, %v1864, %v1845
        %v2040 = vunpack.c.l.s4 1983009808
        %v2041 = vunpack.c.0.s8 %v2040
        %v2042 = vperm.slane %v2038, %v2041
        %v2043 = vrot.slane %v1865, 4
        %v2044 = vsel %vm822, %v2043, %v1863
        %v2046 = vunpack.c.l.s4 1983009808
        %v2047 = vunpack.c.0.s8 %v2046
        %v2048 = vperm.slane %v2044, %v2047
        %v2049 = vsel %vm822, %v1868, %v1857
        %v2051 = vunpack.c.l.s4 1983009808
        %v2052 = vunpack.c.0.s8 %v2051
        %v2053 = vperm.slane %v2049, %v2052
        %v2054 = vrot.slane %v1869, 4
        %v2055 = vsel %vm822, %v2054, %v1867
        %v2057 = vunpack.c.l.s4 1983009808
        %v2058 = vunpack.c.0.s8 %v2057
        %v2059 = vperm.slane %v2055, %v2058
        %v2060 = vrot.slane %v2048, 4
        %v2061 = vsel %vm822, %v2060, %v2042
        %v2062 = vrot.slane %v2042, 4
        %v2063 = vsel %vm822, %v2048, %v2062
        %v2065 = vunpack.c.l.s4 1934713408
        %v2066 = vunpack.c.0.s8 %v2065
        %v2067 = vperm.slane %v2061, %v2066
        %v2069 = vunpack.c.l.s4 1934713408
        %v2070 = vunpack.c.0.s8 %v2069
        %v2071 = vperm.slane %v2063, %v2070
        %v2072 = vrot.slane %v2059, 4
        %v2073 = vsel %vm822, %v2072, %v2053
        %v2074 = vrot.slane %v2053, 4
        %v2075 = vsel %vm822, %v2059, %v2074
        %v2077 = vunpack.c.l.s4 1934713408
        %v2078 = vunpack.c.0.s8 %v2077
        %v2079 = vperm.slane %v2073, %v2078
        %v2081 = vunpack.c.l.s4 1934713408
        %v2082 = vunpack.c.0.s8 %v2081
        %v2083 = vperm.slane %v2075, %v2082
        %v2084 = vrot.slane %v2079, 4
        %v2085 = vsel %vm822, %v2084, %v2067
        %v2086 = vrot.slane %v2067, 4
        %v2087 = vsel %vm822, %v2079, %v2086
        %v2088 = vrot.slane %v2083, 4
        %v2089 = vsel %vm822, %v2088, %v2071
        %v2090 = vrot.slane %v2071, 4
        %v2091 = vsel %vm822, %v2083, %v2090
        %v2092 = vsel %vm822, %v1920, %v1901
        %v2094 = vunpack.c.l.s4 1983009808
        %v2095 = vunpack.c.0.s8 %v2094
        %v2096 = vperm.slane %v2092, %v2095
        %v2097 = vrot.slane %v1921, 4
        %v2098 = vsel %vm822, %v2097, %v1919
        %v2100 = vunpack.c.l.s4 1983009808
        %v2101 = vunpack.c.0.s8 %v2100
        %v2102 = vperm.slane %v2098, %v2101
        %v2103 = vsel %vm822, %v1924, %v1913
        %v2105 = vunpack.c.l.s4 1983009808
        %v2106 = vunpack.c.0.s8 %v2105
        %v2107 = vperm.slane %v2103, %v2106
        %v2108 = vrot.slane %v1925, 4
        %v2109 = vsel %vm822, %v2108, %v1923
        %v2111 = vunpack.c.l.s4 1983009808
        %v2112 = vunpack.c.0.s8 %v2111
        %v2113 = vperm.slane %v2109, %v2112
        %v2114 = vrot.slane %v2102, 4
        %v2115 = vsel %vm822, %v2114, %v2096
        %v2116 = vrot.slane %v2096, 4
        %v2117 = vsel %vm822, %v2102, %v2116
        %v2119 = vunpack.c.l.s4 1934713408
        %v2120 = vunpack.c.0.s8 %v2119
        %v2121 = vperm.slane %v2115, %v2120
        %v2123 = vunpack.c.l.s4 1934713408
        %v2124 = vunpack.c.0.s8 %v2123
        %v2125 = vperm.slane %v2117, %v2124
        %v2126 = vrot.slane %v2113, 4
        %v2127 = vsel %vm822, %v2126, %v2107
        %v2128 = vrot.slane %v2107, 4
        %v2129 = vsel %vm822, %v2113, %v2128
        %v2131 = vunpack.c.l.s4 1934713408
        %v2132 = vunpack.c.0.s8 %v2131
        %v2133 = vperm.slane %v2127, %v2132
        %v2135 = vunpack.c.l.s4 1934713408
        %v2136 = vunpack.c.0.s8 %v2135
        %v2137 = vperm.slane %v2129, %v2136
        %v2138 = vrot.slane %v2133, 4
        %v2139 = vsel %vm822, %v2138, %v2121
        %v2140 = vrot.slane %v2121, 4
        %v2141 = vsel %vm822, %v2133, %v2140
        %v2142 = vrot.slane %v2137, 4
        %v2143 = vsel %vm822, %v2142, %v2125
        %v2144 = vrot.slane %v2125, 4
        %v2145 = vsel %vm822, %v2137, %v2144
        %v2146 = vsel %vm822, %v1976, %v1957
        %v2148 = vunpack.c.l.s4 1983009808
        %v2149 = vunpack.c.0.s8 %v2148
        %v2150 = vperm.slane %v2146, %v2149
        %v2151 = vrot.slane %v1977, 4
        %v2152 = vsel %vm822, %v2151, %v1975
        %v2154 = vunpack.c.l.s4 1983009808
        %v2155 = vunpack.c.0.s8 %v2154
        %v2156 = vperm.slane %v2152, %v2155
        %v2157 = vsel %vm822, %v1980, %v1969
        %v2159 = vunpack.c.l.s4 1983009808
        %v2160 = vunpack.c.0.s8 %v2159
        %v2161 = vperm.slane %v2157, %v2160
        %v2162 = vrot.slane %v1981, 4
        %v2163 = vsel %vm822, %v2162, %v1979
        %v2165 = vunpack.c.l.s4 1983009808
        %v2166 = vunpack.c.0.s8 %v2165
        %v2167 = vperm.slane %v2163, %v2166
        %v2168 = vrot.slane %v2156, 4
        %v2169 = vsel %vm822, %v2168, %v2150
        %v2170 = vrot.slane %v2150, 4
        %v2171 = vsel %vm822, %v2156, %v2170
        %v2173 = vunpack.c.l.s4 1934713408
        %v2174 = vunpack.c.0.s8 %v2173
        %v2175 = vperm.slane %v2169, %v2174
        %v2177 = vunpack.c.l.s4 1934713408
        %v2178 = vunpack.c.0.s8 %v2177
        %v2179 = vperm.slane %v2171, %v2178
        %v2180 = vrot.slane %v2167, 4
        %v2181 = vsel %vm822, %v2180, %v2161
        %v2182 = vrot.slane %v2161, 4
        %v2183 = vsel %vm822, %v2167, %v2182
        %v2185 = vunpack.c.l.s4 1934713408
        %v2186 = vunpack.c.0.s8 %v2185
        %v2187 = vperm.slane %v2181, %v2186
        %v2189 = vunpack.c.l.s4 1934713408
        %v2190 = vunpack.c.0.s8 %v2189
        %v2191 = vperm.slane %v2183, %v2190
        %v2192 = vrot.slane %v2187, 4
        %v2193 = vsel %vm822, %v2192, %v2175
        %v2194 = vrot.slane %v2175, 4
        %v2195 = vsel %vm822, %v2187, %v2194
        %v2196 = vrot.slane %v2191, 4
        %v2197 = vsel %vm822, %v2196, %v2179
        %v2198 = vrot.slane %v2179, 4
        %v2199 = vsel %vm822, %v2191, %v2198
        %v2200 = vsel %vm822, %v2032, %v2013
        %v2202 = vunpack.c.l.s4 1983009808
        %v2203 = vunpack.c.0.s8 %v2202
        %v2204 = vperm.slane %v2200, %v2203
        %v2205 = vrot.slane %v2033, 4
        %v2206 = vsel %vm822, %v2205, %v2031
        %v2208 = vunpack.c.l.s4 1983009808
        %v2209 = vunpack.c.0.s8 %v2208
        %v2210 = vperm.slane %v2206, %v2209
        %v2211 = vsel %vm822, %v2036, %v2025
        %v2213 = vunpack.c.l.s4 1983009808
        %v2214 = vunpack.c.0.s8 %v2213
        %v2215 = vperm.slane %v2211, %v2214
        %v2216 = vrot.slane %v2037, 4
        %v2217 = vsel %vm822, %v2216, %v2035
        %v2219 = vunpack.c.l.s4 1983009808
        %v2220 = vunpack.c.0.s8 %v2219
        %v2221 = vperm.slane %v2217, %v2220
        %v2222 = vrot.slane %v2210, 4
        %v2223 = vsel %vm822, %v2222, %v2204
        %v2224 = vrot.slane %v2204, 4
        %v2225 = vsel %vm822, %v2210, %v2224
        %v2227 = vunpack.c.l.s4 1934713408
        %v2228 = vunpack.c.0.s8 %v2227
        %v2229 = vperm.slane %v2223, %v2228
        %v2231 = vunpack.c.l.s4 1934713408
        %v2232 = vunpack.c.0.s8 %v2231
        %v2233 = vperm.slane %v2225, %v2232
        %v2234 = vrot.slane %v2221, 4
        %v2235 = vsel %vm822, %v2234, %v2215
        %v2236 = vrot.slane %v2215, 4
        %v2237 = vsel %vm822, %v2221, %v2236
        %v2239 = vunpack.c.l.s4 1934713408
        %v2240 = vunpack.c.0.s8 %v2239
        %v2241 = vperm.slane %v2235, %v2240
        %v2243 = vunpack.c.l.s4 1934713408
        %v2244 = vunpack.c.0.s8 %v2243
        %v2245 = vperm.slane %v2237, %v2244
        %v2246 = vrot.slane %v2241, 4
        %v2247 = vsel %vm822, %v2246, %v2229
        %v2248 = vrot.slane %v2229, 4
        %v2249 = vsel %vm822, %v2241, %v2248
        %v2250 = vrot.slane %v2245, 4
        %v2251 = vsel %vm822, %v2250, %v2233
        %v2252 = vrot.slane %v2233, 4
        %v2253 = vsel %vm822, %v2245, %v2252
        %v2254 = vpack.c.bf16 %v2085, %v2085
        %v2255 = vpack.c.bf16 %v2139, %v2139
        %v2256 = vpack.c.bf16 %v2087, %v2087
        %v2257 = vpack.c.bf16 %v2141, %v2141
        %v2258 = vpack.c.bf16 %v2089, %v2089
        %v2259 = vpack.c.bf16 %v2143, %v2143
        %v2260 = vpack.c.bf16 %v2091, %v2091
        %v2261 = vpack.c.bf16 %v2145, %v2145
        %v2262 = vpack.c.bf16 %v2193, %v2193
        %v2263 = vpack.c.bf16 %v2247, %v2247
        %v2264 = vpack.c.bf16 %v2195, %v2195
        %v2265 = vpack.c.bf16 %v2249, %v2249
        %v2266 = vpack.c.bf16 %v2197, %v2197
        %v2267 = vpack.c.bf16 %v2251, %v2251
        %v2268 = vpack.c.bf16 %v2199, %v2199
        %v2269 = vpack.c.bf16 %v2253, %v2253
        %v2272 = vunpack.c.l.b16 %v1262
        %v2273 = vunpack.c.l.b16 %v1263
        %v2274 = vpack.c.b16 %v2273, %v2272
        %v2277 = vunpack.c.l.b16 %v1758
        %v2278 = vunpack.c.l.b16 %v1759
        %v2279 = vpack.c.b16 %v2278, %v2277
        %vm2280 = vcmask 261120
        %v2282 = vsel %vm2280, %v2274, 0
        %v2285 = vsel %vm2280, %v2279, 0
        %2287 = vmatpush.bf16.xpose.msra.mxu0 0
        %2288 = vmatpush.bf16.xpose.msra.mxu0 0
        %2289 = vmatpush.bf16.xpose.msra.mxu0 0
        %2290 = vmatpush.bf16.xpose.msra.mxu0 0
        %2291 = vmatpush.bf16.xpose.msra.mxu0 0
        %2292 = vmatpush.bf16.xpose.msra.mxu0 0
        %2293 = vmatpush.bf16.xpose.msra.mxu0 0
        %2294 = vmatpush.bf16.xpose.msra.mxu0 %v2285
        %2295 = vmatmul.bf16.gmra.mxu0 %v2282
        %v2296 = vpop.f32.mrf.mxu0
        %v2297 = vadd.f32 0.0, %v2296
        %v2298 = vpop.f32.mrf.mxu0
        %v2299 = vadd.f32 0.0, %v2298
        %2300 = vdwg.mxu0
        %v2303 = vunpack.c.l.b16 %v1264
        %v2304 = vunpack.c.l.b16 %v1265
        %v2305 = vpack.c.b16 %v2304, %v2303
        %v2308 = vunpack.c.l.b16 %v1760
        %v2309 = vunpack.c.l.b16 %v1761
        %v2310 = vpack.c.b16 %v2309, %v2308
        %v2312 = vsel %vm2280, %v2305, 0
        %v2315 = vsel %vm2280, %v2310, 0
        %2317 = vmatpush.bf16.xpose.msra.mxu0 0
        %2318 = vmatpush.bf16.xpose.msra.mxu0 0
        %2319 = vmatpush.bf16.xpose.msra.mxu0 0
        %2320 = vmatpush.bf16.xpose.msra.mxu0 0
        %2321 = vmatpush.bf16.xpose.msra.mxu0 0
        %2322 = vmatpush.bf16.xpose.msra.mxu0 0
        %2323 = vmatpush.bf16.xpose.msra.mxu0 0
        %2324 = vmatpush.bf16.xpose.msra.mxu0 %v2315
        %2325 = vmatmul.bf16.gmra.mxu0 %v2312
        %v2326 = vpop.f32.mrf.mxu0
        %v2327 = vadd.f32 0.0, %v2326
        %v2328 = vpop.f32.mrf.mxu0
        %v2329 = vadd.f32 0.0, %v2328
        %2330 = vdwg.mxu0
        %v2333 = vunpack.c.l.b16 %v1266
        %v2334 = vunpack.c.l.b16 %v1267
        %v2335 = vpack.c.b16 %v2334, %v2333
        %v2338 = vunpack.c.l.b16 %v1762
        %v2339 = vunpack.c.l.b16 %v1763
        %v2340 = vpack.c.b16 %v2339, %v2338
        %v2342 = vsel %vm2280, %v2335, 0
        %v2345 = vsel %vm2280, %v2340, 0
        %2347 = vmatpush.bf16.xpose.msra.mxu0 0
        %2348 = vmatpush.bf16.xpose.msra.mxu0 0
        %2349 = vmatpush.bf16.xpose.msra.mxu0 0
        %2350 = vmatpush.bf16.xpose.msra.mxu0 0
        %2351 = vmatpush.bf16.xpose.msra.mxu0 0
        %2352 = vmatpush.bf16.xpose.msra.mxu0 0
        %2353 = vmatpush.bf16.xpose.msra.mxu0 0
        %2354 = vmatpush.bf16.xpose.msra.mxu0 %v2345
        %2355 = vmatmul.bf16.gmra.mxu0 %v2342
        %v2356 = vpop.f32.mrf.mxu0
        %v2357 = vadd.f32 0.0, %v2356
        %v2358 = vpop.f32.mrf.mxu0
        %v2359 = vadd.f32 0.0, %v2358
        %2360 = vdwg.mxu0
        %v2363 = vunpack.c.l.b16 %v1268
        %v2364 = vunpack.c.l.b16 %v1269
        %v2365 = vpack.c.b16 %v2364, %v2363
        %v2368 = vunpack.c.l.b16 %v1764
        %v2369 = vunpack.c.l.b16 %v1765
        %v2370 = vpack.c.b16 %v2369, %v2368
        %v2372 = vsel %vm2280, %v2365, 0
        %v2375 = vsel %vm2280, %v2370, 0
        %2377 = vmatpush.bf16.xpose.msra.mxu0 0
        %2378 = vmatpush.bf16.xpose.msra.mxu0 0
        %2379 = vmatpush.bf16.xpose.msra.mxu0 0
        %2380 = vmatpush.bf16.xpose.msra.mxu0 0
        %2381 = vmatpush.bf16.xpose.msra.mxu0 0
        %2382 = vmatpush.bf16.xpose.msra.mxu0 0
        %2383 = vmatpush.bf16.xpose.msra.mxu0 0
        %2384 = vmatpush.bf16.xpose.msra.mxu0 %v2375
        %2385 = vmatmul.bf16.gmra.mxu0 %v2372
        %v2386 = vpop.f32.mrf.mxu0
        %v2387 = vadd.f32 0.0, %v2386
        %v2388 = vpop.f32.mrf.mxu0
        %v2389 = vadd.f32 0.0, %v2388
        %2390 = vdwg.mxu0
        %v2393 = vunpack.c.l.b16 %v1270
        %v2394 = vunpack.c.l.b16 %v1271
        %v2395 = vpack.c.b16 %v2394, %v2393
        %v2398 = vunpack.c.l.b16 %v1766
        %v2399 = vunpack.c.l.b16 %v1767
        %v2400 = vpack.c.b16 %v2399, %v2398
        %v2402 = vsel %vm2280, %v2395, 0
        %v2405 = vsel %vm2280, %v2400, 0
        %2407 = vmatpush.bf16.xpose.msra.mxu0 0
        %2408 = vmatpush.bf16.xpose.msra.mxu0 0
        %2409 = vmatpush.bf16.xpose.msra.mxu0 0
        %2410 = vmatpush.bf16.xpose.msra.mxu0 0
        %2411 = vmatpush.bf16.xpose.msra.mxu0 0
        %2412 = vmatpush.bf16.xpose.msra.mxu0 0
        %2413 = vmatpush.bf16.xpose.msra.mxu0 0
        %2414 = vmatpush.bf16.xpose.msra.mxu0 %v2405
        %2415 = vmatmul.bf16.gmra.mxu0 %v2402
        %v2416 = vpop.f32.mrf.mxu0
        %v2417 = vadd.f32 0.0, %v2416
        %v2418 = vpop.f32.mrf.mxu0
        %v2419 = vadd.f32 0.0, %v2418
        %2420 = vdwg.mxu0
        %v2423 = vunpack.c.l.b16 %v1272
        %v2424 = vunpack.c.l.b16 %v1273
        %v2425 = vpack.c.b16 %v2424, %v2423
        %v2428 = vunpack.c.l.b16 %v1768
        %v2429 = vunpack.c.l.b16 %v1769
        %v2430 = vpack.c.b16 %v2429, %v2428
        %v2432 = vsel %vm2280, %v2425, 0
        %v2435 = vsel %vm2280, %v2430, 0
        %2437 = vmatpush.bf16.xpose.msra.mxu0 0
        %2438 = vmatpush.bf16.xpose.msra.mxu0 0
        %2439 = vmatpush.bf16.xpose.msra.mxu0 0
        %2440 = vmatpush.bf16.xpose.msra.mxu0 0
        %2441 = vmatpush.bf16.xpose.msra.mxu0 0
        %2442 = vmatpush.bf16.xpose.msra.mxu0 0
        %2443 = vmatpush.bf16.xpose.msra.mxu0 0
        %2444 = vmatpush.bf16.xpose.msra.mxu0 %v2435
        %2445 = vmatmul.bf16.gmra.mxu0 %v2432
        %v2446 = vpop.f32.mrf.mxu0
        %v2447 = vadd.f32 0.0, %v2446
        %v2448 = vpop.f32.mrf.mxu0
        %v2449 = vadd.f32 0.0, %v2448
        %2450 = vdwg.mxu0
        %v2453 = vunpack.c.l.b16 %v1274
        %v2454 = vunpack.c.l.b16 %v1275
        %v2455 = vpack.c.b16 %v2454, %v2453
        %v2458 = vunpack.c.l.b16 %v1770
        %v2459 = vunpack.c.l.b16 %v1771
        %v2460 = vpack.c.b16 %v2459, %v2458
        %v2462 = vsel %vm2280, %v2455, 0
        %v2465 = vsel %vm2280, %v2460, 0
        %2467 = vmatpush.bf16.xpose.msra.mxu0 0
        %2468 = vmatpush.bf16.xpose.msra.mxu0 0
        %2469 = vmatpush.bf16.xpose.msra.mxu0 0
        %2470 = vmatpush.bf16.xpose.msra.mxu0 0
        %2471 = vmatpush.bf16.xpose.msra.mxu0 0
        %2472 = vmatpush.bf16.xpose.msra.mxu0 0
        %2473 = vmatpush.bf16.xpose.msra.mxu0 0
        %2474 = vmatpush.bf16.xpose.msra.mxu0 %v2465
        %2475 = vmatmul.bf16.gmra.mxu0 %v2462
        %v2476 = vpop.f32.mrf.mxu0
        %v2477 = vadd.f32 0.0, %v2476
        %v2478 = vpop.f32.mrf.mxu0
        %v2479 = vadd.f32 0.0, %v2478
        %2480 = vdwg.mxu0
        %v2483 = vunpack.c.l.b16 %v1276
        %v2484 = vunpack.c.l.b16 %v1277
        %v2485 = vpack.c.b16 %v2484, %v2483
        %v2488 = vunpack.c.l.b16 %v1772
        %v2489 = vunpack.c.l.b16 %v1773
        %v2490 = vpack.c.b16 %v2489, %v2488
        %v2492 = vsel %vm2280, %v2485, 0
        %v2495 = vsel %vm2280, %v2490, 0
        %2497 = vmatpush.bf16.xpose.msra.mxu0 0
        %2498 = vmatpush.bf16.xpose.msra.mxu0 0
        %2499 = vmatpush.bf16.xpose.msra.mxu0 0
        %2500 = vmatpush.bf16.xpose.msra.mxu0 0
        %2501 = vmatpush.bf16.xpose.msra.mxu0 0
        %2502 = vmatpush.bf16.xpose.msra.mxu0 0
        %2503 = vmatpush.bf16.xpose.msra.mxu0 0
        %2504 = vmatpush.bf16.xpose.msra.mxu0 %v2495
        %2505 = vmatmul.bf16.gmra.mxu0 %v2492
        %v2506 = vpop.f32.mrf.mxu0
        %v2507 = vadd.f32 0.0, %v2506
        %v2508 = vpop.f32.mrf.mxu0
        %v2509 = vadd.f32 0.0, %v2508
        %2510 = vdwg.mxu0
        %vm2511 = vcmask 130048
        %v2512 = vsel %vm2511, %v2297, -inf
        %2513 = vmax.xlane.f32.xlu0 %v2512
        %v2514 = vpop.xlane.xlu0 %2513
        %v2515 = vsel %vm2511, %v2299, -inf
        %2516 = vmax.xlane.f32.xlu0 %v2515
        %v2517 = vpop.xlane.xlu0 %2516
        %v2518 = vsel %vm2511, %v2327, -inf
        %2519 = vmax.xlane.f32.xlu0 %v2518
        %v2520 = vpop.xlane.xlu0 %2519
        %v2521 = vsel %vm2511, %v2329, -inf
        %2522 = vmax.xlane.f32.xlu0 %v2521
        %v2523 = vpop.xlane.xlu0 %2522
        %v2524 = vsel %vm2511, %v2357, -inf
        %2525 = vmax.xlane.f32.xlu0 %v2524
        %v2526 = vpop.xlane.xlu0 %2525
        %v2527 = vsel %vm2511, %v2359, -inf
        %2528 = vmax.xlane.f32.xlu0 %v2527
        %v2529 = vpop.xlane.xlu0 %2528
        %v2530 = vsel %vm2511, %v2387, -inf
        %2531 = vmax.xlane.f32.xlu0 %v2530
        %v2532 = vpop.xlane.xlu0 %2531
        %v2533 = vsel %vm2511, %v2389, -inf
        %2534 = vmax.xlane.f32.xlu0 %v2533
        %v2535 = vpop.xlane.xlu0 %2534
        %v2536 = vsel %vm2511, %v2417, -inf
        %2537 = vmax.xlane.f32.xlu0 %v2536
        %v2538 = vpop.xlane.xlu0 %2537
        %v2539 = vsel %vm2511, %v2419, -inf
        %2540 = vmax.xlane.f32.xlu0 %v2539
        %v2541 = vpop.xlane.xlu0 %2540
        %v2542 = vsel %vm2511, %v2447, -inf
        %2543 = vmax.xlane.f32.xlu0 %v2542
        %v2544 = vpop.xlane.xlu0 %2543
        %v2545 = vsel %vm2511, %v2449, -inf
        %2546 = vmax.xlane.f32.xlu0 %v2545
        %v2547 = vpop.xlane.xlu0 %2546
        %v2548 = vsel %vm2511, %v2477, -inf
        %2549 = vmax.xlane.f32.xlu0 %v2548
        %v2550 = vpop.xlane.xlu0 %2549
        %v2551 = vsel %vm2511, %v2479, -inf
        %2552 = vmax.xlane.f32.xlu0 %v2551
        %v2553 = vpop.xlane.xlu0 %2552
        %v2554 = vsel %vm2511, %v2507, -inf
        %2555 = vmax.xlane.f32.xlu0 %v2554
        %v2556 = vpop.xlane.xlu0 %2555
        %v2557 = vsel %vm2511, %v2509, -inf
        %2558 = vmax.xlane.f32.xlu0 %v2557
        %v2559 = vpop.xlane.xlu0 %2558
        %v2560 = vsub.f32 %v2297, %v2514
        %v2561 = vsub.f32 %v2299, %v2517
        %v2562 = vsub.f32 %v2327, %v2520
        %v2563 = vsub.f32 %v2329, %v2523
        %v2564 = vsub.f32 %v2357, %v2526
        %v2565 = vsub.f32 %v2359, %v2529
        %v2566 = vsub.f32 %v2387, %v2532
        %v2567 = vsub.f32 %v2389, %v2535
        %v2568 = vsub.f32 %v2417, %v2538
        %v2569 = vsub.f32 %v2419, %v2541
        %v2570 = vsub.f32 %v2447, %v2544
        %v2571 = vsub.f32 %v2449, %v2547
        %v2572 = vsub.f32 %v2477, %v2550
        %v2573 = vsub.f32 %v2479, %v2553
        %v2574 = vsub.f32 %v2507, %v2556
        %v2575 = vsub.f32 %v2509, %v2559
        %v2576 = vmul.f32 %v2560, 1.442695
        %v2577 = vpow.pop %v2576
        %v2578 = vmul.f32 %v2561, 1.442695
        %v2579 = vpow.pop %v2578
        %v2580 = vmul.f32 %v2562, 1.442695
        %v2581 = vpow.pop %v2580
        %v2582 = vmul.f32 %v2563, 1.442695
        %v2583 = vpow.pop %v2582
        %v2584 = vmul.f32 %v2564, 1.442695
        %v2585 = vpow.pop %v2584
        %v2586 = vmul.f32 %v2565, 1.442695
        %v2587 = vpow.pop %v2586
        %v2588 = vmul.f32 %v2566, 1.442695
        %v2589 = vpow.pop %v2588
        %v2590 = vmul.f32 %v2567, 1.442695
        %v2591 = vpow.pop %v2590
        %v2592 = vmul.f32 %v2568, 1.442695
        %v2593 = vpow.pop %v2592
        %v2594 = vmul.f32 %v2569, 1.442695
        %v2595 = vpow.pop %v2594
        %v2596 = vmul.f32 %v2570, 1.442695
        %v2597 = vpow.pop %v2596
        %v2598 = vmul.f32 %v2571, 1.442695
        %v2599 = vpow.pop %v2598
        %v2600 = vmul.f32 %v2572, 1.442695
        %v2601 = vpow.pop %v2600
        %v2602 = vmul.f32 %v2573, 1.442695
        %v2603 = vpow.pop %v2602
        %v2604 = vmul.f32 %v2574, 1.442695
        %v2605 = vpow.pop %v2604
        %v2606 = vmul.f32 %v2575, 1.442695
        %v2607 = vpow.pop %v2606
        %v2608 = vsel %vm2511, %v2577, 0.0
        %2609 = vadd.xlane.f32.xlu0 %v2608
        %v2610 = vpop.xlane.xlu0 %2609
        %v2611 = vsel %vm2511, %v2579, 0.0
        %2612 = vadd.xlane.f32.xlu0 %v2611
        %v2613 = vpop.xlane.xlu0 %2612
        %v2614 = vsel %vm2511, %v2581, 0.0
        %2615 = vadd.xlane.f32.xlu0 %v2614
        %v2616 = vpop.xlane.xlu0 %2615
        %v2617 = vsel %vm2511, %v2583, 0.0
        %2618 = vadd.xlane.f32.xlu0 %v2617
        %v2619 = vpop.xlane.xlu0 %2618
        %v2620 = vsel %vm2511, %v2585, 0.0
        %2621 = vadd.xlane.f32.xlu0 %v2620
        %v2622 = vpop.xlane.xlu0 %2621
        %v2623 = vsel %vm2511, %v2587, 0.0
        %2624 = vadd.xlane.f32.xlu0 %v2623
        %v2625 = vpop.xlane.xlu0 %2624
        %v2626 = vsel %vm2511, %v2589, 0.0
        %2627 = vadd.xlane.f32.xlu0 %v2626
        %v2628 = vpop.xlane.xlu0 %2627
        %v2629 = vsel %vm2511, %v2591, 0.0
        %2630 = vadd.xlane.f32.xlu0 %v2629
        %v2631 = vpop.xlane.xlu0 %2630
        %v2632 = vsel %vm2511, %v2593, 0.0
        %2633 = vadd.xlane.f32.xlu0 %v2632
        %v2634 = vpop.xlane.xlu0 %2633
        %v2635 = vsel %vm2511, %v2595, 0.0
        %2636 = vadd.xlane.f32.xlu0 %v2635
        %v2637 = vpop.xlane.xlu0 %2636
        %v2638 = vsel %vm2511, %v2597, 0.0
        %2639 = vadd.xlane.f32.xlu0 %v2638
        %v2640 = vpop.xlane.xlu0 %2639
        %v2641 = vsel %vm2511, %v2599, 0.0
        %2642 = vadd.xlane.f32.xlu0 %v2641
        %v2643 = vpop.xlane.xlu0 %2642
        %v2644 = vsel %vm2511, %v2601, 0.0
        %2645 = vadd.xlane.f32.xlu0 %v2644
        %v2646 = vpop.xlane.xlu0 %2645
        %v2647 = vsel %vm2511, %v2603, 0.0
        %2648 = vadd.xlane.f32.xlu0 %v2647
        %v2649 = vpop.xlane.xlu0 %2648
        %v2650 = vsel %vm2511, %v2605, 0.0
        %2651 = vadd.xlane.f32.xlu0 %v2650
        %v2652 = vpop.xlane.xlu0 %2651
        %v2653 = vsel %vm2511, %v2607, 0.0
        %2654 = vadd.xlane.f32.xlu0 %v2653
        %v2655 = vpop.xlane.xlu0 %2654
        %v2656 = vrcp.pop %v2610
        %v2657 = vrcp.pop %v2613
        %v2658 = vrcp.pop %v2616
        %v2659 = vrcp.pop %v2619
        %v2660 = vrcp.pop %v2622
        %v2661 = vrcp.pop %v2625
        %v2662 = vrcp.pop %v2628
        %v2663 = vrcp.pop %v2631
        %v2664 = vrcp.pop %v2634
        %v2665 = vrcp.pop %v2637
        %v2666 = vrcp.pop %v2640
        %v2667 = vrcp.pop %v2643
        %v2668 = vrcp.pop %v2646
        %v2669 = vrcp.pop %v2649
        %v2670 = vrcp.pop %v2652
        %v2671 = vrcp.pop %v2655
        %v2672 = vmul.f32 %v2577, %v2656
        %v2673 = vmul.f32 %v2579, %v2657
        %v2674 = vmul.f32 %v2581, %v2658
        %v2675 = vmul.f32 %v2583, %v2659
        %v2676 = vmul.f32 %v2585, %v2660
        %v2677 = vmul.f32 %v2587, %v2661
        %v2678 = vmul.f32 %v2589, %v2662
        %v2679 = vmul.f32 %v2591, %v2663
        %v2680 = vmul.f32 %v2593, %v2664
        %v2681 = vmul.f32 %v2595, %v2665
        %v2682 = vmul.f32 %v2597, %v2666
        %v2683 = vmul.f32 %v2599, %v2667
        %v2684 = vmul.f32 %v2601, %v2668
        %v2685 = vmul.f32 %v2603, %v2669
        %v2686 = vmul.f32 %v2605, %v2670
        %v2687 = vmul.f32 %v2607, %v2671
        %v2688 = vpack.c.bf16 %v2672, %v2672
        %v2689 = vpack.c.bf16 %v2673, %v2673
        %v2690 = vpack.c.bf16 %v2674, %v2674
        %v2691 = vpack.c.bf16 %v2675, %v2675
        %v2692 = vpack.c.bf16 %v2676, %v2676
        %v2693 = vpack.c.bf16 %v2677, %v2677
        %v2694 = vpack.c.bf16 %v2678, %v2678
        %v2695 = vpack.c.bf16 %v2679, %v2679
        %v2696 = vpack.c.bf16 %v2680, %v2680
        %v2697 = vpack.c.bf16 %v2681, %v2681
        %v2698 = vpack.c.bf16 %v2682, %v2682
        %v2699 = vpack.c.bf16 %v2683, %v2683
        %v2700 = vpack.c.bf16 %v2684, %v2684
        %v2701 = vpack.c.bf16 %v2685, %v2685
        %v2702 = vpack.c.bf16 %v2686, %v2686
        %v2703 = vpack.c.bf16 %v2687, %v2687
        %v2706 = vunpack.c.l.b16 %v2688
        %v2707 = vunpack.c.l.b16 %v2689
        %v2708 = vpack.c.b16 %v2707, %v2706
        %v2711 = vunpack.c.l.b16 %v2254
        %v2712 = vunpack.c.l.b16 %v2255
        %v2713 = vpack.c.b16 %v2712, %v2711
        %v2716 = vsel %vm2511, %v2708, 0
        %2718 = vmatpush.bf16.msra.mxu0 0
        %2719 = vmatpush.bf16.msra.mxu0 0
        %2720 = vmatpush.bf16.msra.mxu0 0
        %2721 = vmatpush.bf16.msra.mxu0 0
        %2722 = vmatpush.bf16.msra.mxu0 0
        %2723 = vmatpush.bf16.msra.mxu0 0
        %2724 = vmatpush.bf16.msra.mxu0 0
        %2725 = vmatpush.bf16.msra.mxu0 %v2713
        %2726 = vmatmul.bf16.gmra.mxu0 %v2716
        %v2727 = vpop.f32.mrf.mxu0
        %v2728 = vadd.f32 0.0, %v2727
        %v2729 = vpop.f32.mrf.mxu0
        %v2730 = vadd.f32 0.0, %v2729
        %2731 = vdwg.mxu0
        %v2734 = vunpack.c.l.b16 %v2690
        %v2735 = vunpack.c.l.b16 %v2691
        %v2736 = vpack.c.b16 %v2735, %v2734
        %v2739 = vunpack.c.l.b16 %v2256
        %v2740 = vunpack.c.l.b16 %v2257
        %v2741 = vpack.c.b16 %v2740, %v2739
        %v2744 = vsel %vm2511, %v2736, 0
        %2746 = vmatpush.bf16.msra.mxu0 0
        %2747 = vmatpush.bf16.msra.mxu0 0
        %2748 = vmatpush.bf16.msra.mxu0 0
        %2749 = vmatpush.bf16.msra.mxu0 0
        %2750 = vmatpush.bf16.msra.mxu0 0
        %2751 = vmatpush.bf16.msra.mxu0 0
        %2752 = vmatpush.bf16.msra.mxu0 0
        %2753 = vmatpush.bf16.msra.mxu0 %v2741
        %2754 = vmatmul.bf16.gmra.mxu0 %v2744
        %v2755 = vpop.f32.mrf.mxu0
        %v2756 = vadd.f32 0.0, %v2755
        %v2757 = vpop.f32.mrf.mxu0
        %v2758 = vadd.f32 0.0, %v2757
        %2759 = vdwg.mxu0
        %v2762 = vunpack.c.l.b16 %v2692
        %v2763 = vunpack.c.l.b16 %v2693
        %v2764 = vpack.c.b16 %v2763, %v2762
        %v2767 = vunpack.c.l.b16 %v2258
        %v2768 = vunpack.c.l.b16 %v2259
        %v2769 = vpack.c.b16 %v2768, %v2767
        %v2772 = vsel %vm2511, %v2764, 0
        %2774 = vmatpush.bf16.msra.mxu0 0
        %2775 = vmatpush.bf16.msra.mxu0 0
        %2776 = vmatpush.bf16.msra.mxu0 0
        %2777 = vmatpush.bf16.msra.mxu0 0
        %2778 = vmatpush.bf16.msra.mxu0 0
        %2779 = vmatpush.bf16.msra.mxu0 0
        %2780 = vmatpush.bf16.msra.mxu0 0
        %2781 = vmatpush.bf16.msra.mxu0 %v2769
        %2782 = vmatmul.bf16.gmra.mxu0 %v2772
        %v2783 = vpop.f32.mrf.mxu0
        %v2784 = vadd.f32 0.0, %v2783
        %v2785 = vpop.f32.mrf.mxu0
        %v2786 = vadd.f32 0.0, %v2785
        %2787 = vdwg.mxu0
        %v2790 = vunpack.c.l.b16 %v2694
        %v2791 = vunpack.c.l.b16 %v2695
        %v2792 = vpack.c.b16 %v2791, %v2790
        %v2795 = vunpack.c.l.b16 %v2260
        %v2796 = vunpack.c.l.b16 %v2261
        %v2797 = vpack.c.b16 %v2796, %v2795
        %v2800 = vsel %vm2511, %v2792, 0
        %2802 = vmatpush.bf16.msra.mxu0 0
        %2803 = vmatpush.bf16.msra.mxu0 0
        %2804 = vmatpush.bf16.msra.mxu0 0
        %2805 = vmatpush.bf16.msra.mxu0 0
        %2806 = vmatpush.bf16.msra.mxu0 0
        %2807 = vmatpush.bf16.msra.mxu0 0
        %2808 = vmatpush.bf16.msra.mxu0 0
        %2809 = vmatpush.bf16.msra.mxu0 %v2797
        %2810 = vmatmul.bf16.gmra.mxu0 %v2800
        %v2811 = vpop.f32.mrf.mxu0
        %v2812 = vadd.f32 0.0, %v2811
        %v2813 = vpop.f32.mrf.mxu0
        %v2814 = vadd.f32 0.0, %v2813
        %2815 = vdwg.mxu0
        %v2818 = vunpack.c.l.b16 %v2696
        %v2819 = vunpack.c.l.b16 %v2697
        %v2820 = vpack.c.b16 %v2819, %v2818
        %v2823 = vunpack.c.l.b16 %v2262
        %v2824 = vunpack.c.l.b16 %v2263
        %v2825 = vpack.c.b16 %v2824, %v2823
        %v2828 = vsel %vm2511, %v2820, 0
        %2830 = vmatpush.bf16.msra.mxu0 0
        %2831 = vmatpush.bf16.msra.mxu0 0
        %2832 = vmatpush.bf16.msra.mxu0 0
        %2833 = vmatpush.bf16.msra.mxu0 0
        %2834 = vmatpush.bf16.msra.mxu0 0
        %2835 = vmatpush.bf16.msra.mxu0 0
        %2836 = vmatpush.bf16.msra.mxu0 0
        %2837 = vmatpush.bf16.msra.mxu0 %v2825
        %2838 = vmatmul.bf16.gmra.mxu0 %v2828
        %v2839 = vpop.f32.mrf.mxu0
        %v2840 = vadd.f32 0.0, %v2839
        %v2841 = vpop.f32.mrf.mxu0
        %v2842 = vadd.f32 0.0, %v2841
        %2843 = vdwg.mxu0
        %v2846 = vunpack.c.l.b16 %v2698
        %v2847 = vunpack.c.l.b16 %v2699
        %v2848 = vpack.c.b16 %v2847, %v2846
        %v2851 = vunpack.c.l.b16 %v2264
        %v2852 = vunpack.c.l.b16 %v2265
        %v2853 = vpack.c.b16 %v2852, %v2851
        %v2856 = vsel %vm2511, %v2848, 0
        %2858 = vmatpush.bf16.msra.mxu0 0
        %2859 = vmatpush.bf16.msra.mxu0 0
        %2860 = vmatpush.bf16.msra.mxu0 0
        %2861 = vmatpush.bf16.msra.mxu0 0
        %2862 = vmatpush.bf16.msra.mxu0 0
        %2863 = vmatpush.bf16.msra.mxu0 0
        %2864 = vmatpush.bf16.msra.mxu0 0
        %2865 = vmatpush.bf16.msra.mxu0 %v2853
        %2866 = vmatmul.bf16.gmra.mxu0 %v2856
        %v2867 = vpop.f32.mrf.mxu0
        %v2868 = vadd.f32 0.0, %v2867
        %v2869 = vpop.f32.mrf.mxu0
        %v2870 = vadd.f32 0.0, %v2869
        %2871 = vdwg.mxu0
        %v2874 = vunpack.c.l.b16 %v2700
        %v2875 = vunpack.c.l.b16 %v2701
        %v2876 = vpack.c.b16 %v2875, %v2874
        %v2879 = vunpack.c.l.b16 %v2266
        %v2880 = vunpack.c.l.b16 %v2267
        %v2881 = vpack.c.b16 %v2880, %v2879
        %v2884 = vsel %vm2511, %v2876, 0
        %2886 = vmatpush.bf16.msra.mxu0 0
        %2887 = vmatpush.bf16.msra.mxu0 0
        %2888 = vmatpush.bf16.msra.mxu0 0
        %2889 = vmatpush.bf16.msra.mxu0 0
        %2890 = vmatpush.bf16.msra.mxu0 0
        %2891 = vmatpush.bf16.msra.mxu0 0
        %2892 = vmatpush.bf16.msra.mxu0 0
        %2893 = vmatpush.bf16.msra.mxu0 %v2881
        %2894 = vmatmul.bf16.gmra.mxu0 %v2884
        %v2895 = vpop.f32.mrf.mxu0
        %v2896 = vadd.f32 0.0, %v2895
        %v2897 = vpop.f32.mrf.mxu0
        %v2898 = vadd.f32 0.0, %v2897
        %2899 = vdwg.mxu0
        %v2902 = vunpack.c.l.b16 %v2702
        %v2903 = vunpack.c.l.b16 %v2703
        %v2904 = vpack.c.b16 %v2903, %v2902
        %v2907 = vunpack.c.l.b16 %v2268
        %v2908 = vunpack.c.l.b16 %v2269
        %v2909 = vpack.c.b16 %v2908, %v2907
        %v2912 = vsel %vm2511, %v2904, 0
        %2914 = vmatpush.bf16.msra.mxu0 0
        %2915 = vmatpush.bf16.msra.mxu0 0
        %2916 = vmatpush.bf16.msra.mxu0 0
        %2917 = vmatpush.bf16.msra.mxu0 0
        %2918 = vmatpush.bf16.msra.mxu0 0
        %2919 = vmatpush.bf16.msra.mxu0 0
        %2920 = vmatpush.bf16.msra.mxu0 0
        %2921 = vmatpush.bf16.msra.mxu0 %v2909
        %2922 = vmatmul.bf16.gmra.mxu0 %v2912
        %v2923 = vpop.f32.mrf.mxu0
        %v2924 = vadd.f32 0.0, %v2923
        %v2925 = vpop.f32.mrf.mxu0
        %v2926 = vadd.f32 0.0, %v2925
        %2927 = vdwg.mxu0
        %v2928 = vrot.slane %v2784, 4
        %v2929 = vsel %vm822, %v2928, %v2728
        %v2930 = vrot.slane %v2728, 4
        %v2931 = vsel %vm822, %v2784, %v2930
        %v2933 = vunpack.c.l.s4 1983009808
        %v2934 = vunpack.c.0.s8 %v2933
        %v2935 = vperm.slane %v2929, %v2934
        %v2937 = vunpack.c.l.s4 1983009808
        %v2938 = vunpack.c.0.s8 %v2937
        %v2939 = vperm.slane %v2931, %v2938
        %v2940 = vrot.slane %v2812, 4
        %v2941 = vsel %vm822, %v2940, %v2756
        %v2942 = vrot.slane %v2756, 4
        %v2943 = vsel %vm822, %v2812, %v2942
        %v2945 = vunpack.c.l.s4 1983009808
        %v2946 = vunpack.c.0.s8 %v2945
        %v2947 = vperm.slane %v2941, %v2946
        %v2949 = vunpack.c.l.s4 1983009808
        %v2950 = vunpack.c.0.s8 %v2949
        %v2951 = vperm.slane %v2943, %v2950
        %v2952 = vrot.slane %v2947, 4
        %v2953 = vsel %vm822, %v2952, %v2935
        %v2954 = vrot.slane %v2935, 4
        %v2955 = vsel %vm822, %v2947, %v2954
        %v2957 = vunpack.c.l.s4 1934713408
        %v2958 = vunpack.c.0.s8 %v2957
        %v2959 = vperm.slane %v2953, %v2958
        %v2961 = vunpack.c.l.s4 1934713408
        %v2962 = vunpack.c.0.s8 %v2961
        %v2963 = vperm.slane %v2955, %v2962
        %v2964 = vrot.slane %v2951, 4
        %v2965 = vsel %vm822, %v2964, %v2939
        %v2966 = vrot.slane %v2939, 4
        %v2967 = vsel %vm822, %v2951, %v2966
        %v2969 = vunpack.c.l.s4 1934713408
        %v2970 = vunpack.c.0.s8 %v2969
        %v2971 = vperm.slane %v2965, %v2970
        %v2973 = vunpack.c.l.s4 1934713408
        %v2974 = vunpack.c.0.s8 %v2973
        %v2975 = vperm.slane %v2967, %v2974
        %v2976 = vrot.slane %v2959, 4
        %v2977 = vsel %vm822, 0.0, %v2976
        %v2978 = vrot.slane %v2963, 4
        %v2979 = vsel %vm822, 0.0, %v2978
        %v2980 = vrot.slane %v2971, 4
        %v2981 = vsel %vm822, 0.0, %v2980
        %v2982 = vrot.slane %v2975, 4
        %v2983 = vsel %vm822, 0.0, %v2982
        %v2984 = vrot.slane %v2786, 4
        %v2985 = vsel %vm822, %v2984, %v2730
        %v2986 = vrot.slane %v2730, 4
        %v2987 = vsel %vm822, %v2786, %v2986
        %v2989 = vunpack.c.l.s4 1983009808
        %v2990 = vunpack.c.0.s8 %v2989
        %v2991 = vperm.slane %v2985, %v2990
        %v2993 = vunpack.c.l.s4 1983009808
        %v2994 = vunpack.c.0.s8 %v2993
        %v2995 = vperm.slane %v2987, %v2994
        %v2996 = vrot.slane %v2814, 4
        %v2997 = vsel %vm822, %v2996, %v2758
        %v2998 = vrot.slane %v2758, 4
        %v2999 = vsel %vm822, %v2814, %v2998
        %v3001 = vunpack.c.l.s4 1983009808
        %v3002 = vunpack.c.0.s8 %v3001
        %v3003 = vperm.slane %v2997, %v3002
        %v3005 = vunpack.c.l.s4 1983009808
        %v3006 = vunpack.c.0.s8 %v3005
        %v3007 = vperm.slane %v2999, %v3006
        %v3008 = vrot.slane %v3003, 4
        %v3009 = vsel %vm822, %v3008, %v2991
        %v3010 = vrot.slane %v2991, 4
        %v3011 = vsel %vm822, %v3003, %v3010
        %v3013 = vunpack.c.l.s4 1934713408
        %v3014 = vunpack.c.0.s8 %v3013
        %v3015 = vperm.slane %v3009, %v3014
        %v3017 = vunpack.c.l.s4 1934713408
        %v3018 = vunpack.c.0.s8 %v3017
        %v3019 = vperm.slane %v3011, %v3018
        %v3020 = vrot.slane %v3007, 4
        %v3021 = vsel %vm822, %v3020, %v2995
        %v3022 = vrot.slane %v2995, 4
        %v3023 = vsel %vm822, %v3007, %v3022
        %v3025 = vunpack.c.l.s4 1934713408
        %v3026 = vunpack.c.0.s8 %v3025
        %v3027 = vperm.slane %v3021, %v3026
        %v3029 = vunpack.c.l.s4 1934713408
        %v3030 = vunpack.c.0.s8 %v3029
        %v3031 = vperm.slane %v3023, %v3030
        %v3032 = vrot.slane %v3015, 4
        %v3033 = vsel %vm822, 0.0, %v3032
        %v3034 = vrot.slane %v3019, 4
        %v3035 = vsel %vm822, 0.0, %v3034
        %v3036 = vrot.slane %v3027, 4
        %v3037 = vsel %vm822, 0.0, %v3036
        %v3038 = vrot.slane %v3031, 4
        %v3039 = vsel %vm822, 0.0, %v3038
        %v3040 = vrot.slane %v2896, 4
        %v3041 = vsel %vm822, %v3040, %v2840
        %v3042 = vrot.slane %v2840, 4
        %v3043 = vsel %vm822, %v2896, %v3042
        %v3045 = vunpack.c.l.s4 1983009808
        %v3046 = vunpack.c.0.s8 %v3045
        %v3047 = vperm.slane %v3041, %v3046
        %v3049 = vunpack.c.l.s4 1983009808
        %v3050 = vunpack.c.0.s8 %v3049
        %v3051 = vperm.slane %v3043, %v3050
        %v3052 = vrot.slane %v2924, 4
        %v3053 = vsel %vm822, %v3052, %v2868
        %v3054 = vrot.slane %v2868, 4
        %v3055 = vsel %vm822, %v2924, %v3054
        %v3057 = vunpack.c.l.s4 1983009808
        %v3058 = vunpack.c.0.s8 %v3057
        %v3059 = vperm.slane %v3053, %v3058
        %v3061 = vunpack.c.l.s4 1983009808
        %v3062 = vunpack.c.0.s8 %v3061
        %v3063 = vperm.slane %v3055, %v3062
        %v3064 = vrot.slane %v3059, 4
        %v3065 = vsel %vm822, %v3064, %v3047
        %v3066 = vrot.slane %v3047, 4
        %v3067 = vsel %vm822, %v3059, %v3066
        %v3069 = vunpack.c.l.s4 1934713408
        %v3070 = vunpack.c.0.s8 %v3069
        %v3071 = vperm.slane %v3065, %v3070
        %v3073 = vunpack.c.l.s4 1934713408
        %v3074 = vunpack.c.0.s8 %v3073
        %v3075 = vperm.slane %v3067, %v3074
        %v3076 = vrot.slane %v3063, 4
        %v3077 = vsel %vm822, %v3076, %v3051
        %v3078 = vrot.slane %v3051, 4
        %v3079 = vsel %vm822, %v3063, %v3078
        %v3081 = vunpack.c.l.s4 1934713408
        %v3082 = vunpack.c.0.s8 %v3081
        %v3083 = vperm.slane %v3077, %v3082
        %v3085 = vunpack.c.l.s4 1934713408
        %v3086 = vunpack.c.0.s8 %v3085
        %v3087 = vperm.slane %v3079, %v3086
        %v3088 = vrot.slane %v3071, 4
        %v3089 = vsel %vm822, 0.0, %v3088
        %v3090 = vrot.slane %v3075, 4
        %v3091 = vsel %vm822, 0.0, %v3090
        %v3092 = vrot.slane %v3083, 4
        %v3093 = vsel %vm822, 0.0, %v3092
        %v3094 = vrot.slane %v3087, 4
        %v3095 = vsel %vm822, 0.0, %v3094
        %v3096 = vrot.slane %v2898, 4
        %v3097 = vsel %vm822, %v3096, %v2842
        %v3098 = vrot.slane %v2842, 4
        %v3099 = vsel %vm822, %v2898, %v3098
        %v3101 = vunpack.c.l.s4 1983009808
        %v3102 = vunpack.c.0.s8 %v3101
        %v3103 = vperm.slane %v3097, %v3102
        %v3105 = vunpack.c.l.s4 1983009808
        %v3106 = vunpack.c.0.s8 %v3105
        %v3107 = vperm.slane %v3099, %v3106
        %v3108 = vrot.slane %v2926, 4
        %v3109 = vsel %vm822, %v3108, %v2870
        %v3110 = vrot.slane %v2870, 4
        %v3111 = vsel %vm822, %v2926, %v3110
        %v3113 = vunpack.c.l.s4 1983009808
        %v3114 = vunpack.c.0.s8 %v3113
        %v3115 = vperm.slane %v3109, %v3114
        %v3117 = vunpack.c.l.s4 1983009808
        %v3118 = vunpack.c.0.s8 %v3117
        %v3119 = vperm.slane %v3111, %v3118
        %v3120 = vrot.slane %v3115, 4
        %v3121 = vsel %vm822, %v3120, %v3103
        %v3122 = vrot.slane %v3103, 4
        %v3123 = vsel %vm822, %v3115, %v3122
        %v3125 = vunpack.c.l.s4 1934713408
        %v3126 = vunpack.c.0.s8 %v3125
        %v3127 = vperm.slane %v3121, %v3126
        %v3129 = vunpack.c.l.s4 1934713408
        %v3130 = vunpack.c.0.s8 %v3129
        %v3131 = vperm.slane %v3123, %v3130
        %v3132 = vrot.slane %v3119, 4
        %v3133 = vsel %vm822, %v3132, %v3107
        %v3134 = vrot.slane %v3107, 4
        %v3135 = vsel %vm822, %v3119, %v3134
        %v3137 = vunpack.c.l.s4 1934713408
        %v3138 = vunpack.c.0.s8 %v3137
        %v3139 = vperm.slane %v3133, %v3138
        %v3141 = vunpack.c.l.s4 1934713408
        %v3142 = vunpack.c.0.s8 %v3141
        %v3143 = vperm.slane %v3135, %v3142
        %v3144 = vrot.slane %v3127, 4
        %v3145 = vsel %vm822, 0.0, %v3144
        %v3146 = vrot.slane %v3131, 4
        %v3147 = vsel %vm822, 0.0, %v3146
        %v3148 = vrot.slane %v3139, 4
        %v3149 = vsel %vm822, 0.0, %v3148
        %v3150 = vrot.slane %v3143, 4
        %v3151 = vsel %vm822, 0.0, %v3150
        %v3152 = vsel %vm822, %v2978, %v2959
        %v3154 = vunpack.c.l.s4 1983009808
        %v3155 = vunpack.c.0.s8 %v3154
        %v3156 = vperm.slane %v3152, %v3155
        %v3157 = vrot.slane %v2979, 4
        %v3158 = vsel %vm822, %v3157, %v2977
        %v3160 = vunpack.c.l.s4 1983009808
        %v3161 = vunpack.c.0.s8 %v3160
        %v3162 = vperm.slane %v3158, %v3161
        %v3163 = vsel %vm822, %v2982, %v2971
        %v3165 = vunpack.c.l.s4 1983009808
        %v3166 = vunpack.c.0.s8 %v3165
        %v3167 = vperm.slane %v3163, %v3166
        %v3168 = vrot.slane %v2983, 4
        %v3169 = vsel %vm822, %v3168, %v2981
        %v3171 = vunpack.c.l.s4 1983009808
        %v3172 = vunpack.c.0.s8 %v3171
        %v3173 = vperm.slane %v3169, %v3172
        %v3174 = vrot.slane %v3162, 4
        %v3175 = vsel %vm822, %v3174, %v3156
        %v3176 = vrot.slane %v3156, 4
        %v3177 = vsel %vm822, %v3162, %v3176
        %v3179 = vunpack.c.l.s4 1934713408
        %v3180 = vunpack.c.0.s8 %v3179
        %v3181 = vperm.slane %v3175, %v3180
        %v3183 = vunpack.c.l.s4 1934713408
        %v3184 = vunpack.c.0.s8 %v3183
        %v3185 = vperm.slane %v3177, %v3184
        %v3186 = vrot.slane %v3173, 4
        %v3187 = vsel %vm822, %v3186, %v3167
        %v3188 = vrot.slane %v3167, 4
        %v3189 = vsel %vm822, %v3173, %v3188
        %v3191 = vunpack.c.l.s4 1934713408
        %v3192 = vunpack.c.0.s8 %v3191
        %v3193 = vperm.slane %v3187, %v3192
        %v3195 = vunpack.c.l.s4 1934713408
        %v3196 = vunpack.c.0.s8 %v3195
        %v3197 = vperm.slane %v3189, %v3196
        %v3198 = vrot.slane %v3193, 4
        %v3199 = vsel %vm822, %v3198, %v3181
        %v3200 = vrot.slane %v3181, 4
        %v3201 = vsel %vm822, %v3193, %v3200
        %v3202 = vrot.slane %v3197, 4
        %v3203 = vsel %vm822, %v3202, %v3185
        %v3204 = vrot.slane %v3185, 4
        %v3205 = vsel %vm822, %v3197, %v3204
        %v3206 = vsel %vm822, %v3034, %v3015
        %v3208 = vunpack.c.l.s4 1983009808
        %v3209 = vunpack.c.0.s8 %v3208
        %v3210 = vperm.slane %v3206, %v3209
        %v3211 = vrot.slane %v3035, 4
        %v3212 = vsel %vm822, %v3211, %v3033
        %v3214 = vunpack.c.l.s4 1983009808
        %v3215 = vunpack.c.0.s8 %v3214
        %v3216 = vperm.slane %v3212, %v3215
        %v3217 = vsel %vm822, %v3038, %v3027
        %v3219 = vunpack.c.l.s4 1983009808
        %v3220 = vunpack.c.0.s8 %v3219
        %v3221 = vperm.slane %v3217, %v3220
        %v3222 = vrot.slane %v3039, 4
        %v3223 = vsel %vm822, %v3222, %v3037
        %v3225 = vunpack.c.l.s4 1983009808
        %v3226 = vunpack.c.0.s8 %v3225
        %v3227 = vperm.slane %v3223, %v3226
        %v3228 = vrot.slane %v3216, 4
        %v3229 = vsel %vm822, %v3228, %v3210
        %v3230 = vrot.slane %v3210, 4
        %v3231 = vsel %vm822, %v3216, %v3230
        %v3233 = vunpack.c.l.s4 1934713408
        %v3234 = vunpack.c.0.s8 %v3233
        %v3235 = vperm.slane %v3229, %v3234
        %v3237 = vunpack.c.l.s4 1934713408
        %v3238 = vunpack.c.0.s8 %v3237
        %v3239 = vperm.slane %v3231, %v3238
        %v3240 = vrot.slane %v3227, 4
        %v3241 = vsel %vm822, %v3240, %v3221
        %v3242 = vrot.slane %v3221, 4
        %v3243 = vsel %vm822, %v3227, %v3242
        %v3245 = vunpack.c.l.s4 1934713408
        %v3246 = vunpack.c.0.s8 %v3245
        %v3247 = vperm.slane %v3241, %v3246
        %v3249 = vunpack.c.l.s4 1934713408
        %v3250 = vunpack.c.0.s8 %v3249
        %v3251 = vperm.slane %v3243, %v3250
        %v3252 = vrot.slane %v3247, 4
        %v3253 = vsel %vm822, %v3252, %v3235
        %v3254 = vrot.slane %v3235, 4
        %v3255 = vsel %vm822, %v3247, %v3254
        %v3256 = vrot.slane %v3251, 4
        %v3257 = vsel %vm822, %v3256, %v3239
        %v3258 = vrot.slane %v3239, 4
        %v3259 = vsel %vm822, %v3251, %v3258
        %v3260 = vsel %vm822, %v3090, %v3071
        %v3262 = vunpack.c.l.s4 1983009808
        %v3263 = vunpack.c.0.s8 %v3262
        %v3264 = vperm.slane %v3260, %v3263
        %v3265 = vrot.slane %v3091, 4
        %v3266 = vsel %vm822, %v3265, %v3089
        %v3268 = vunpack.c.l.s4 1983009808
        %v3269 = vunpack.c.0.s8 %v3268
        %v3270 = vperm.slane %v3266, %v3269
        %v3271 = vsel %vm822, %v3094, %v3083
        %v3273 = vunpack.c.l.s4 1983009808
        %v3274 = vunpack.c.0.s8 %v3273
        %v3275 = vperm.slane %v3271, %v3274
        %v3276 = vrot.slane %v3095, 4
        %v3277 = vsel %vm822, %v3276, %v3093
        %v3279 = vunpack.c.l.s4 1983009808
        %v3280 = vunpack.c.0.s8 %v3279
        %v3281 = vperm.slane %v3277, %v3280
        %v3282 = vrot.slane %v3270, 4
        %v3283 = vsel %vm822, %v3282, %v3264
        %v3284 = vrot.slane %v3264, 4
        %v3285 = vsel %vm822, %v3270, %v3284
        %v3287 = vunpack.c.l.s4 1934713408
        %v3288 = vunpack.c.0.s8 %v3287
        %v3289 = vperm.slane %v3283, %v3288
        %v3291 = vunpack.c.l.s4 1934713408
        %v3292 = vunpack.c.0.s8 %v3291
        %v3293 = vperm.slane %v3285, %v3292
        %v3294 = vrot.slane %v3281, 4
        %v3295 = vsel %vm822, %v3294, %v3275
        %v3296 = vrot.slane %v3275, 4
        %v3297 = vsel %vm822, %v3281, %v3296
        %v3299 = vunpack.c.l.s4 1934713408
        %v3300 = vunpack.c.0.s8 %v3299
        %v3301 = vperm.slane %v3295, %v3300
        %v3303 = vunpack.c.l.s4 1934713408
        %v3304 = vunpack.c.0.s8 %v3303
        %v3305 = vperm.slane %v3297, %v3304
        %v3306 = vrot.slane %v3301, 4
        %v3307 = vsel %vm822, %v3306, %v3289
        %v3308 = vrot.slane %v3289, 4
        %v3309 = vsel %vm822, %v3301, %v3308
        %v3310 = vrot.slane %v3305, 4
        %v3311 = vsel %vm822, %v3310, %v3293
        %v3312 = vrot.slane %v3293, 4
        %v3313 = vsel %vm822, %v3305, %v3312
        %v3314 = vsel %vm822, %v3146, %v3127
        %v3316 = vunpack.c.l.s4 1983009808
        %v3317 = vunpack.c.0.s8 %v3316
        %v3318 = vperm.slane %v3314, %v3317
        %v3319 = vrot.slane %v3147, 4
        %v3320 = vsel %vm822, %v3319, %v3145
        %v3322 = vunpack.c.l.s4 1983009808
        %v3323 = vunpack.c.0.s8 %v3322
        %v3324 = vperm.slane %v3320, %v3323
        %v3325 = vsel %vm822, %v3150, %v3139
        %v3327 = vunpack.c.l.s4 1983009808
        %v3328 = vunpack.c.0.s8 %v3327
        %v3329 = vperm.slane %v3325, %v3328
        %v3330 = vrot.slane %v3151, 4
        %v3331 = vsel %vm822, %v3330, %v3149
        %v3333 = vunpack.c.l.s4 1983009808
        %v3334 = vunpack.c.0.s8 %v3333
        %v3335 = vperm.slane %v3331, %v3334
        %v3336 = vrot.slane %v3324, 4
        %v3337 = vsel %vm822, %v3336, %v3318
        %v3338 = vrot.slane %v3318, 4
        %v3339 = vsel %vm822, %v3324, %v3338
        %v3341 = vunpack.c.l.s4 1934713408
        %v3342 = vunpack.c.0.s8 %v3341
        %v3343 = vperm.slane %v3337, %v3342
        %v3345 = vunpack.c.l.s4 1934713408
        %v3346 = vunpack.c.0.s8 %v3345
        %v3347 = vperm.slane %v3339, %v3346
        %v3348 = vrot.slane %v3335, 4
        %v3349 = vsel %vm822, %v3348, %v3329
        %v3350 = vrot.slane %v3329, 4
        %v3351 = vsel %vm822, %v3335, %v3350
        %v3353 = vunpack.c.l.s4 1934713408
        %v3354 = vunpack.c.0.s8 %v3353
        %v3355 = vperm.slane %v3349, %v3354
        %v3357 = vunpack.c.l.s4 1934713408
        %v3358 = vunpack.c.0.s8 %v3357
        %v3359 = vperm.slane %v3351, %v3358
        %v3360 = vrot.slane %v3355, 4
        %v3361 = vsel %vm822, %v3360, %v3343
        %v3362 = vrot.slane %v3343, 4
        %v3363 = vsel %vm822, %v3355, %v3362
        %v3364 = vrot.slane %v3359, 4
        %v3365 = vsel %vm822, %v3364, %v3347
        %v3366 = vrot.slane %v3347, 4
        %v3367 = vsel %vm822, %v3359, %v3366
        %3372 = vrot.lane.b32.xlu0 %v3201, 32
        %v3373 = vpop.permute.xlu0 %3372
        %3374 = vrot.lane.b32.xlu0 %v3255, 32
        %v3375 = vpop.permute.xlu0 %3374
        %3376 = vrot.lane.b32.xlu0 %v3309, 32
        %v3377 = vpop.permute.xlu0 %3376
        %3378 = vrot.lane.b32.xlu0 %v3363, 32
        %v3379 = vpop.permute.xlu0 %3378
        %3388 = vrot.lane.b32.xlu0 %v3203, 64
        %v3389 = vpop.permute.xlu0 %3388
        %3390 = vrot.lane.b32.xlu0 %v3257, 64
        %v3391 = vpop.permute.xlu0 %3390
        %3392 = vrot.lane.b32.xlu0 %v3311, 64
        %v3393 = vpop.permute.xlu0 %3392
        %3394 = vrot.lane.b32.xlu0 %v3365, 64
        %v3395 = vpop.permute.xlu0 %3394
        %3404 = vrot.lane.b32.xlu0 %v3205, 96
        %v3405 = vpop.permute.xlu0 %3404
        %3406 = vrot.lane.b32.xlu0 %v3259, 96
        %v3407 = vpop.permute.xlu0 %3406
        %3408 = vrot.lane.b32.xlu0 %v3313, 96
        %v3409 = vpop.permute.xlu0 %3408
        %3410 = vrot.lane.b32.xlu0 %v3367, 96
        %v3411 = vpop.permute.xlu0 %3410
        %v3416 = vsel %vm2280, %v3199, %v3373
        %v3417 = vsel %vm2280, %v3253, %v3375
        %v3418 = vsel %vm2280, %v3307, %v3377
        %v3419 = vsel %vm2280, %v3361, %v3379
        %vm3420 = vcmask 523264
        %v3421 = vsel %vm3420, %v3416, %v3389
        %v3422 = vsel %vm3420, %v3417, %v3391
        %v3423 = vsel %vm3420, %v3418, %v3393
        %v3424 = vsel %vm3420, %v3419, %v3395
        %vm3425 = vcmask 785408
        %v3426 = vsel %vm3425, %v3421, %v3405
        %v3427 = vsel %vm3425, %v3422, %v3407
        %v3428 = vsel %vm3425, %v3423, %v3409
        %v3429 = vsel %vm3425, %v3424, %v3411
        %v3430 = vpack.c.bf16 %v3427, %v3426
        %v3431 = vpack.c.bf16 %v3429, %v3428
        %v3432 = vld [vmem:[#allocation8] sm:$0xf]
        %v3433 = vld [vmem:[#allocation8 + $0x4] sm:$0xf]
        %v3434 = vld [vmem:[#allocation8 + $0x8] sm:$0xf]
        %v3435 = vld [vmem:[#allocation8 + $0xc] sm:$0xf]
        %v3436 = vld [vmem:[#allocation8 + $0x10] sm:$0xf]
        %v3437 = vld [vmem:[#allocation8 + $0x14] sm:$0xf]
        %v3438 = vld [vmem:[#allocation8 + $0x18] sm:$0xf]
        %v3439 = vld [vmem:[#allocation8 + $0x1c] sm:$0xf]
        %v3440 = vld [vmem:[#allocation8 + $0x20] sm:$0xf]
        %v3441 = vld [vmem:[#allocation8 + $0x24] sm:$0xf]
        %v3442 = vld [vmem:[#allocation8 + $0x28] sm:$0xf]
        %v3443 = vld [vmem:[#allocation8 + $0x2c] sm:$0xf]
        %v3444 = vld [vmem:[#allocation8 + $0x30] sm:$0xf]
        %v3445 = vld [vmem:[#allocation8 + $0x34] sm:$0xf]
        %v3446 = vld [vmem:[#allocation8 + $0x38] sm:$0xf]
        %v3447 = vld [vmem:[#allocation8 + $0x3c] sm:$0xf]
        %v3448 = vld [vmem:[%s4] sm:$0x1]
        %v3450 = vperm.slane %v3448, 0
        %v3468 = vunpack.c.l.b16 %v3432
        %v3469 = vunpack.c.l.b16 %v3433
        %v3470 = vunpack.c.l.b16 %v3434
        %v3471 = vunpack.c.l.b16 %v3435
        %v3472 = vunpack.c.l.b16 %v3436
        %v3473 = vunpack.c.l.b16 %v3437
        %v3474 = vunpack.c.l.b16 %v3438
        %v3475 = vunpack.c.l.b16 %v3439
        %v3476 = vunpack.c.l.b16 %v3440
        %v3477 = vunpack.c.l.b16 %v3441
        %v3478 = vunpack.c.l.b16 %v3442
        %v3479 = vunpack.c.l.b16 %v3443
        %v3480 = vunpack.c.l.b16 %v3444
        %v3481 = vunpack.c.l.b16 %v3445
        %v3482 = vunpack.c.l.b16 %v3446
        %v3483 = vunpack.c.l.b16 %v3447
        %v3484 = vpack.c.b16 %v3469, %v3468
        %v3485 = vpack.c.b16 %v3471, %v3470
        %v3486 = vpack.c.b16 %v3473, %v3472
        %v3487 = vpack.c.b16 %v3475, %v3474
        %v3488 = vpack.c.b16 %v3477, %v3476
        %v3489 = vpack.c.b16 %v3479, %v3478
        %v3490 = vpack.c.b16 %v3481, %v3480
        %v3491 = vpack.c.b16 %v3483, %v3482
        %3500 = vmatpush.bf16.msra.mxu0 %v3491
        %3501 = vmatpush.bf16.msra.mxu0 %v3490
        %3502 = vmatpush.bf16.msra.mxu0 %v3489
        %3503 = vmatpush.bf16.msra.mxu0 %v3488
        %3504 = vmatpush.bf16.msra.mxu0 %v3487
        %3505 = vmatpush.bf16.msra.mxu0 %v3486
        %3506 = vmatpush.bf16.msra.mxu0 %v3485
        %3507 = vmatpush.bf16.msra.mxu0 %v3484
        %3508 = vmatmul.bf16.gmra.mxu0 %v3430
        %v3509 = vpop.f32.mrf.mxu0
        %v3510 = vadd.f32 %v3450, %v3509
        %v3511 = vpop.f32.mrf.mxu0
        %v3512 = vadd.f32 %v3450, %v3511
        %3513 = vmatmul.bf16.gmra.mxu0 %v3431
        %v3514 = vpop.f32.mrf.mxu0
        %v3515 = vadd.f32 %v3450, %v3514
        %v3516 = vpop.f32.mrf.mxu0
        %v3517 = vadd.f32 %v3450, %v3516
        %3518 = vdwg.mxu0
        %v3519 = vadd.f32 %v546, %v3510
        %v3520 = vadd.f32 %v547, %v3512
        %v3521 = vadd.f32 %v548, %v3515
        %v3522 = vadd.f32 %v549, %v3517
        %v3523 = vld [vmem:[%s5] sm:$0x1]
        %v3524 = vld [vmem:[%s6] sm:$0x1]
        %3525 = vadd.xlane.f32.xlu0 %v3519
        %v3526 = vpop.xlane.xlu0 %3525
        %3527 = vadd.xlane.f32.xlu0 %v3520
        %v3528 = vpop.xlane.xlu0 %3527
        %3529 = vadd.xlane.f32.xlu0 %v3521
        %v3530 = vpop.xlane.xlu0 %3529
        %3531 = vadd.xlane.f32.xlu0 %v3522
        %v3532 = vpop.xlane.xlu0 %3531
        %v3533 = vrcp.pop 128.0
        %v3534 = vmul.f32 128.0, %v3533
        %v3535 = vsub.f32 1.0, %v3534
        %v3536 = vmul.f32 %v3533, %v3535
        %v3537 = vadd.f32 %v3533, %v3536
        %vm3538 = vweird.f32 %v3533
        %v3539 = vsel %vm3538, %v3533, %v3537
        %v3540 = vmul.f32 %v3526, %v3539
        %v3541 = vmul.f32 %v3528, %v3539
        %v3542 = vmul.f32 %v3530, %v3539
        %v3543 = vmul.f32 %v3532, %v3539
        %v3544 = vsub.f32 %v3519, %v3540
        %v3545 = vsub.f32 %v3520, %v3541
        %v3546 = vsub.f32 %v3521, %v3542
        %v3547 = vsub.f32 %v3522, %v3543
        %v3548 = vmul.f32 %v3544, %v3544
        %v3549 = vmul.f32 %v3545, %v3545
        %v3550 = vmul.f32 %v3546, %v3546
        %v3551 = vmul.f32 %v3547, %v3547
        %3552 = vadd.xlane.f32.xlu0 %v3548
        %v3553 = vpop.xlane.xlu0 %3552
        %3554 = vadd.xlane.f32.xlu0 %v3549
        %v3555 = vpop.xlane.xlu0 %3554
        %3556 = vadd.xlane.f32.xlu0 %v3550
        %v3557 = vpop.xlane.xlu0 %3556
        %3558 = vadd.xlane.f32.xlu0 %v3551
        %v3559 = vpop.xlane.xlu0 %3558
        %v3560 = vmul.f32 %v3553, %v3539
        %v3561 = vmul.f32 %v3555, %v3539
        %v3562 = vmul.f32 %v3557, %v3539
        %v3563 = vmul.f32 %v3559, %v3539
        %v3564 = vadd.f32 %v3560, 1e-05
        %v3565 = vadd.f32 %v3561, 1e-05
        %v3566 = vadd.f32 %v3562, 1e-05
        %v3567 = vadd.f32 %v3563, 1e-05
        %v3568 = vrsqrt.pop %v3564
        %v3569 = vmul.f32 %v3568, %v3564
        %v3570 = vmul.f32 %v3569, %v3568
        %v3571 = vmul.f32 0.5, %v3570
        %v3572 = vsub.f32 1.5, %v3571
        %v3573 = vmul.f32 %v3568, %v3572
        %vm3574 = vweird.f32 %v3564
        %vm3575 = vweird.f32 %v3568
        %vm3576 = vmor %vm3574, %vm3575
        %v3577 = vsel %vm3576, %v3568, %v3573
        %v3578 = vrsqrt.pop %v3565
        %v3579 = vmul.f32 %v3578, %v3565
        %v3580 = vmul.f32 %v3579, %v3578
        %v3581 = vmul.f32 0.5, %v3580
        %v3582 = vsub.f32 1.5, %v3581
        %v3583 = vmul.f32 %v3578, %v3582
        %vm3584 = vweird.f32 %v3565
        %vm3585 = vweird.f32 %v3578
        %vm3586 = vmor %vm3584, %vm3585
        %v3587 = vsel %vm3586, %v3578, %v3583
        %v3588 = vrsqrt.pop %v3566
        %v3589 = vmul.f32 %v3588, %v3566
        %v3590 = vmul.f32 %v3589, %v3588
        %v3591 = vmul.f32 0.5, %v3590
        %v3592 = vsub.f32 1.5, %v3591
        %v3593 = vmul.f32 %v3588, %v3592
        %vm3594 = vweird.f32 %v3566
        %vm3595 = vweird.f32 %v3588
        %vm3596 = vmor %vm3594, %vm3595
        %v3597 = vsel %vm3596, %v3588, %v3593
        %v3598 = vrsqrt.pop %v3567
        %v3599 = vmul.f32 %v3598, %v3567
        %v3600 = vmul.f32 %v3599, %v3598
        %v3601 = vmul.f32 0.5, %v3600
        %v3602 = vsub.f32 1.5, %v3601
        %v3603 = vmul.f32 %v3598, %v3602
        %vm3604 = vweird.f32 %v3567
        %vm3605 = vweird.f32 %v3598
        %vm3606 = vmor %vm3604, %vm3605
        %v3607 = vsel %vm3606, %v3598, %v3603
        %v3608 = vmul.f32 %v3544, %v3577
        %v3609 = vmul.f32 %v3545, %v3587
        %v3610 = vmul.f32 %v3546, %v3597
        %v3611 = vmul.f32 %v3547, %v3607
        %v3613 = vperm.slane %v3523, 0
        %v3615 = vmul.f32 %v3608, %v3613
        %v3616 = vmul.f32 %v3609, %v3613
        %v3617 = vmul.f32 %v3610, %v3613
        %v3618 = vmul.f32 %v3611, %v3613
        %v3620 = vperm.slane %v3524, 0
        %v3622 = vadd.f32 %v3615, %v3620
        %v3623 = vadd.f32 %v3616, %v3620
        %v3624 = vadd.f32 %v3617, %v3620
        %v3625 = vadd.f32 %v3618, %v3620
        %v3626 = vpack.c.bf16 %v3623, %v3622
        %v3627 = vpack.c.bf16 %v3625, %v3624
        %v3628 = vld [vmem:[#allocation10] sm:$0xff]
        %v3629 = vld [vmem:[#allocation10 + $0x8] sm:$0xff]
        %v3630 = vld [vmem:[#allocation10 + $0x10] sm:$0xff]
        %v3631 = vld [vmem:[#allocation10 + $0x18] sm:$0xff]
        %v3632 = vld [vmem:[#allocation10 + $0x20] sm:$0xff]
        %v3633 = vld [vmem:[#allocation10 + $0x28] sm:$0xff]
        %v3634 = vld [vmem:[#allocation10 + $0x30] sm:$0xff]
        %v3635 = vld [vmem:[#allocation10 + $0x38] sm:$0xff]
        %v3636 = vld [vmem:[#allocation10 + $0x40] sm:$0xff]
        %v3637 = vld [vmem:[#allocation10 + $0x48] sm:$0xff]
        %v3638 = vld [vmem:[#allocation10 + $0x50] sm:$0xff]
        %v3639 = vld [vmem:[#allocation10 + $0x58] sm:$0xff]
        %v3640 = vld [vmem:[#allocation10 + $0x60] sm:$0xff]
        %v3641 = vld [vmem:[#allocation10 + $0x68] sm:$0xff]
        %v3642 = vld [vmem:[#allocation10 + $0x70] sm:$0xff]
        %v3643 = vld [vmem:[#allocation10 + $0x78] sm:$0xff]
        %v3644 = vld [vmem:[%s8] sm:$0x3]
        %v3646 = vperm.slane %v3644, 0
        %v3647 = vperm.slane %v3644, 1
        %v3666 = vunpack.c.l.b16 %v3628
        %v3667 = vunpack.c.h.b16 %v3628
        %v3668 = vunpack.c.l.b16 %v3629
        %v3669 = vunpack.c.h.b16 %v3629
        %v3670 = vunpack.c.l.b16 %v3630
        %v3671 = vunpack.c.h.b16 %v3630
        %v3672 = vunpack.c.l.b16 %v3631
        %v3673 = vunpack.c.h.b16 %v3631
        %v3674 = vunpack.c.l.b16 %v3632
        %v3675 = vunpack.c.h.b16 %v3632
        %v3676 = vunpack.c.l.b16 %v3633
        %v3677 = vunpack.c.h.b16 %v3633
        %v3678 = vunpack.c.l.b16 %v3634
        %v3679 = vunpack.c.h.b16 %v3634
        %v3680 = vunpack.c.l.b16 %v3635
        %v3681 = vunpack.c.h.b16 %v3635
        %v3682 = vunpack.c.l.b16 %v3636
        %v3683 = vunpack.c.h.b16 %v3636
        %v3684 = vunpack.c.l.b16 %v3637
        %v3685 = vunpack.c.h.b16 %v3637
        %v3686 = vunpack.c.l.b16 %v3638
        %v3687 = vunpack.c.h.b16 %v3638
        %v3688 = vunpack.c.l.b16 %v3639
        %v3689 = vunpack.c.h.b16 %v3639
        %v3690 = vunpack.c.l.b16 %v3640
        %v3691 = vunpack.c.h.b16 %v3640
        %v3692 = vunpack.c.l.b16 %v3641
        %v3693 = vunpack.c.h.b16 %v3641
        %v3694 = vunpack.c.l.b16 %v3642
        %v3695 = vunpack.c.h.b16 %v3642
        %v3696 = vunpack.c.l.b16 %v3643
        %v3697 = vunpack.c.h.b16 %v3643
        %v3698 = vpack.c.b16 %v3668, %v3666
        %v3699 = vpack.c.b16 %v3669, %v3667
        %v3700 = vpack.c.b16 %v3672, %v3670
        %v3701 = vpack.c.b16 %v3673, %v3671
        %v3702 = vpack.c.b16 %v3676, %v3674
        %v3703 = vpack.c.b16 %v3677, %v3675
        %v3704 = vpack.c.b16 %v3680, %v3678
        %v3705 = vpack.c.b16 %v3681, %v3679
        %v3706 = vpack.c.b16 %v3684, %v3682
        %v3707 = vpack.c.b16 %v3685, %v3683
        %v3708 = vpack.c.b16 %v3688, %v3686
        %v3709 = vpack.c.b16 %v3689, %v3687
        %v3710 = vpack.c.b16 %v3692, %v3690
        %v3711 = vpack.c.b16 %v3693, %v3691
        %v3712 = vpack.c.b16 %v3696, %v3694
        %v3713 = vpack.c.b16 %v3697, %v3695
        %3730 = vmatpush.bf16.msra.mxu0 %v3712
        %3731 = vmatpush.bf16.msra.mxu0 %v3710
        %3732 = vmatpush.bf16.msra.mxu0 %v3708
        %3733 = vmatpush.bf16.msra.mxu0 %v3706
        %3734 = vmatpush.bf16.msra.mxu0 %v3704
        %3735 = vmatpush.bf16.msra.mxu0 %v3702
        %3736 = vmatpush.bf16.msra.mxu0 %v3700
        %3737 = vmatpush.bf16.msra.mxu0 %v3698
        %3738 = vmatmul.bf16.gmra.mxu0 %v3626
        %v3739 = vpop.f32.mrf.mxu0
        %v3740 = vadd.f32 %v3646, %v3739
        %v3741 = vpop.f32.mrf.mxu0
        %v3742 = vadd.f32 %v3646, %v3741
        %3743 = vmatmul.bf16.gmra.mxu0 %v3627
        %v3744 = vpop.f32.mrf.mxu0
        %v3745 = vadd.f32 %v3646, %v3744
        %v3746 = vpop.f32.mrf.mxu0
        %v3747 = vadd.f32 %v3646, %v3746
        %3748 = vdwg.mxu0
        %3749 = vmatpush.bf16.msra.mxu0 %v3713
        %3750 = vmatpush.bf16.msra.mxu0 %v3711
        %3751 = vmatpush.bf16.msra.mxu0 %v3709
        %3752 = vmatpush.bf16.msra.mxu0 %v3707
        %3753 = vmatpush.bf16.msra.mxu0 %v3705
        %3754 = vmatpush.bf16.msra.mxu0 %v3703
        %3755 = vmatpush.bf16.msra.mxu0 %v3701
        %3756 = vmatpush.bf16.msra.mxu0 %v3699
        %3757 = vmatmul.bf16.gmra.mxu0 %v3626
        %v3758 = vpop.f32.mrf.mxu0
        %v3759 = vadd.f32 %v3647, %v3758
        %v3760 = vpop.f32.mrf.mxu0
        %v3761 = vadd.f32 %v3647, %v3760
        %3762 = vmatmul.bf16.gmra.mxu0 %v3627
        %v3763 = vpop.f32.mrf.mxu0
        %v3764 = vadd.f32 %v3647, %v3763
        %v3765 = vpop.f32.mrf.mxu0
        %v3766 = vadd.f32 %v3647, %v3765
        %3767 = vdwg.mxu0
        %v3768 = vmax.f32 %v3740, 0.0
        %v3769 = vmax.f32 %v3759, 0.0
        %v3770 = vmax.f32 %v3742, 0.0
        %v3771 = vmax.f32 %v3761, 0.0
        %v3772 = vmax.f32 %v3745, 0.0
        %v3773 = vmax.f32 %v3764, 0.0
        %v3774 = vmax.f32 %v3747, 0.0
        %v3775 = vmax.f32 %v3766, 0.0
        %v3776 = vpack.c.bf16 %v3770, %v3768
        %v3777 = vpack.c.bf16 %v3771, %v3769
        %v3778 = vpack.c.bf16 %v3774, %v3772
        %v3779 = vpack.c.bf16 %v3775, %v3773
        %v3780 = vld [vmem:[#allocation11] sm:$0xf]
        %v3781 = vld [vmem:[#allocation11 + $0x4] sm:$0xf]
        %v3782 = vld [vmem:[#allocation11 + $0x8] sm:$0xf]
        %v3783 = vld [vmem:[#allocation11 + $0xc] sm:$0xf]
        %v3784 = vld [vmem:[#allocation11 + $0x10] sm:$0xf]
        %v3785 = vld [vmem:[#allocation11 + $0x14] sm:$0xf]
        %v3786 = vld [vmem:[#allocation11 + $0x18] sm:$0xf]
        %v3787 = vld [vmem:[#allocation11 + $0x1c] sm:$0xf]
        %v3788 = vld [vmem:[#allocation11 + $0x20] sm:$0xf]
        %v3789 = vld [vmem:[#allocation11 + $0x24] sm:$0xf]
        %v3790 = vld [vmem:[#allocation11 + $0x28] sm:$0xf]
        %v3791 = vld [vmem:[#allocation11 + $0x2c] sm:$0xf]
        %v3792 = vld [vmem:[#allocation11 + $0x30] sm:$0xf]
        %v3793 = vld [vmem:[#allocation11 + $0x34] sm:$0xf]
        %v3794 = vld [vmem:[#allocation11 + $0x38] sm:$0xf]
        %v3795 = vld [vmem:[#allocation11 + $0x3c] sm:$0xf]
        %v3796 = vld [vmem:[#allocation11 + $0x40] sm:$0xf]
        %v3797 = vld [vmem:[#allocation11 + $0x44] sm:$0xf]
        %v3798 = vld [vmem:[#allocation11 + $0x48] sm:$0xf]
        %v3799 = vld [vmem:[#allocation11 + $0x4c] sm:$0xf]
        %v3800 = vld [vmem:[#allocation11 + $0x50] sm:$0xf]
        %v3801 = vld [vmem:[#allocation11 + $0x54] sm:$0xf]
        %v3802 = vld [vmem:[#allocation11 + $0x58] sm:$0xf]
        %v3803 = vld [vmem:[#allocation11 + $0x5c] sm:$0xf]
        %v3804 = vld [vmem:[#allocation11 + $0x60] sm:$0xf]
        %v3805 = vld [vmem:[#allocation11 + $0x64] sm:$0xf]
        %v3806 = vld [vmem:[#allocation11 + $0x68] sm:$0xf]
        %v3807 = vld [vmem:[#allocation11 + $0x6c] sm:$0xf]
        %v3808 = vld [vmem:[#allocation11 + $0x70] sm:$0xf]
        %v3809 = vld [vmem:[#allocation11 + $0x74] sm:$0xf]
        %v3810 = vld [vmem:[#allocation11 + $0x78] sm:$0xf]
        %v3811 = vld [vmem:[#allocation11 + $0x7c] sm:$0xf]
        %v3812 = vld [vmem:[%s10] sm:$0x1]
        %v3814 = vperm.slane %v3812, 0
        %v3848 = vunpack.c.l.b16 %v3780
        %v3849 = vunpack.c.l.b16 %v3781
        %v3850 = vunpack.c.l.b16 %v3782
        %v3851 = vunpack.c.l.b16 %v3783
        %v3852 = vunpack.c.l.b16 %v3784
        %v3853 = vunpack.c.l.b16 %v3785
        %v3854 = vunpack.c.l.b16 %v3786
        %v3855 = vunpack.c.l.b16 %v3787
        %v3856 = vunpack.c.l.b16 %v3788
        %v3857 = vunpack.c.l.b16 %v3789
        %v3858 = vunpack.c.l.b16 %v3790
        %v3859 = vunpack.c.l.b16 %v3791
        %v3860 = vunpack.c.l.b16 %v3792
        %v3861 = vunpack.c.l.b16 %v3793
        %v3862 = vunpack.c.l.b16 %v3794
        %v3863 = vunpack.c.l.b16 %v3795
        %v3864 = vunpack.c.l.b16 %v3796
        %v3865 = vunpack.c.l.b16 %v3797
        %v3866 = vunpack.c.l.b16 %v3798
        %v3867 = vunpack.c.l.b16 %v3799
        %v3868 = vunpack.c.l.b16 %v3800
        %v3869 = vunpack.c.l.b16 %v3801
        %v3870 = vunpack.c.l.b16 %v3802
        %v3871 = vunpack.c.l.b16 %v3803
        %v3872 = vunpack.c.l.b16 %v3804
        %v3873 = vunpack.c.l.b16 %v3805
        %v3874 = vunpack.c.l.b16 %v3806
        %v3875 = vunpack.c.l.b16 %v3807
        %v3876 = vunpack.c.l.b16 %v3808
        %v3877 = vunpack.c.l.b16 %v3809
        %v3878 = vunpack.c.l.b16 %v3810
        %v3879 = vunpack.c.l.b16 %v3811
        %v3880 = vpack.c.b16 %v3849, %v3848
        %v3881 = vpack.c.b16 %v3851, %v3850
        %v3882 = vpack.c.b16 %v3853, %v3852
        %v3883 = vpack.c.b16 %v3855, %v3854
        %v3884 = vpack.c.b16 %v3857, %v3856
        %v3885 = vpack.c.b16 %v3859, %v3858
        %v3886 = vpack.c.b16 %v3861, %v3860
        %v3887 = vpack.c.b16 %v3863, %v3862
        %v3888 = vpack.c.b16 %v3865, %v3864
        %v3889 = vpack.c.b16 %v3867, %v3866
        %v3890 = vpack.c.b16 %v3869, %v3868
        %v3891 = vpack.c.b16 %v3871, %v3870
        %v3892 = vpack.c.b16 %v3873, %v3872
        %v3893 = vpack.c.b16 %v3875, %v3874
        %v3894 = vpack.c.b16 %v3877, %v3876
        %v3895 = vpack.c.b16 %v3879, %v3878
        %3912 = vmatpush.bf16.msra.mxu0 %v3887
        %3913 = vmatpush.bf16.msra.mxu0 %v3886
        %3914 = vmatpush.bf16.msra.mxu0 %v3885
        %3915 = vmatpush.bf16.msra.mxu0 %v3884
        %3916 = vmatpush.bf16.msra.mxu0 %v3883
        %3917 = vmatpush.bf16.msra.mxu0 %v3882
        %3918 = vmatpush.bf16.msra.mxu0 %v3881
        %3919 = vmatpush.bf16.msra.mxu0 %v3880
        %3920 = vmatmul.bf16.gmra.mxu0 %v3776
        %v3921 = vpop.f32.mrf.mxu0
        %v3922 = vadd.f32 %v3814, %v3921
        %v3923 = vpop.f32.mrf.mxu0
        %v3924 = vadd.f32 %v3814, %v3923
        %3925 = vmatmul.bf16.gmra.mxu0 %v3778
        %v3926 = vpop.f32.mrf.mxu0
        %v3927 = vadd.f32 %v3814, %v3926
        %v3928 = vpop.f32.mrf.mxu0
        %v3929 = vadd.f32 %v3814, %v3928
        %3930 = vdwg.mxu0
        %3931 = vmatpush.bf16.msra.mxu0 %v3895
        %3932 = vmatpush.bf16.msra.mxu0 %v3894
        %3933 = vmatpush.bf16.msra.mxu0 %v3893
        %3934 = vmatpush.bf16.msra.mxu0 %v3892
        %3935 = vmatpush.bf16.msra.mxu0 %v3891
        %3936 = vmatpush.bf16.msra.mxu0 %v3890
        %3937 = vmatpush.bf16.msra.mxu0 %v3889
        %3938 = vmatpush.bf16.msra.mxu0 %v3888
        %3939 = vmatmul.bf16.gmra.mxu0 %v3777
        %v3940 = vpop.f32.mrf.mxu0
        %v3941 = vadd.f32 %v3922, %v3940
        %v3942 = vpop.f32.mrf.mxu0
        %v3943 = vadd.f32 %v3924, %v3942
        %3944 = vmatmul.bf16.gmra.mxu0 %v3779
        %v3945 = vpop.f32.mrf.mxu0
        %v3946 = vadd.f32 %v3927, %v3945
        %v3947 = vpop.f32.mrf.mxu0
        %v3948 = vadd.f32 %v3929, %v3947
        %3949 = vdwg.mxu0
        %v3950 = vadd.f32 %v3622, %v3941
        %v3951 = vadd.f32 %v3623, %v3943
        %v3952 = vadd.f32 %v3624, %v3946
        %v3953 = vadd.f32 %v3625, %v3948
        %v3954 = vld [vmem:[%s11] sm:$0x1]
        %v3955 = vld [vmem:[%s12] sm:$0x1]
        %3956 = vadd.xlane.f32.xlu0 %v3950
        %v3957 = vpop.xlane.xlu0 %3956
        %3958 = vadd.xlane.f32.xlu0 %v3951
        %v3959 = vpop.xlane.xlu0 %3958
        %3960 = vadd.xlane.f32.xlu0 %v3952
        %v3961 = vpop.xlane.xlu0 %3960
        %3962 = vadd.xlane.f32.xlu0 %v3953
        %v3963 = vpop.xlane.xlu0 %3962
        %v3964 = vmul.f32 %v3957, %v3539
        %v3965 = vmul.f32 %v3959, %v3539
        %v3966 = vmul.f32 %v3961, %v3539
        %v3967 = vmul.f32 %v3963, %v3539
        %v3968 = vsub.f32 %v3950, %v3964
        %v3969 = vsub.f32 %v3951, %v3965
        %v3970 = vsub.f32 %v3952, %v3966
        %v3971 = vsub.f32 %v3953, %v3967
        %v3972 = vmul.f32 %v3968, %v3968
        %v3973 = vmul.f32 %v3969, %v3969
        %v3974 = vmul.f32 %v3970, %v3970
        %v3975 = vmul.f32 %v3971, %v3971
        %3976 = vadd.xlane.f32.xlu0 %v3972
        %v3977 = vpop.xlane.xlu0 %3976
        %3978 = vadd.xlane.f32.xlu0 %v3973
        %v3979 = vpop.xlane.xlu0 %3978
        %3980 = vadd.xlane.f32.xlu0 %v3974
        %v3981 = vpop.xlane.xlu0 %3980
        %3982 = vadd.xlane.f32.xlu0 %v3975
        %v3983 = vpop.xlane.xlu0 %3982
        %v3984 = vmul.f32 %v3977, %v3539
        %v3985 = vmul.f32 %v3979, %v3539
        %v3986 = vmul.f32 %v3981, %v3539
        %v3987 = vmul.f32 %v3983, %v3539
        %v3988 = vadd.f32 %v3984, 1e-05
        %v3989 = vadd.f32 %v3985, 1e-05
        %v3990 = vadd.f32 %v3986, 1e-05
        %v3991 = vadd.f32 %v3987, 1e-05
        %v3992 = vrsqrt.pop %v3988
        %v3993 = vmul.f32 %v3992, %v3988
        %v3994 = vmul.f32 %v3993, %v3992
        %v3995 = vmul.f32 0.5, %v3994
        %v3996 = vsub.f32 1.5, %v3995
        %v3997 = vmul.f32 %v3992, %v3996
        %vm3998 = vweird.f32 %v3988
        %vm3999 = vweird.f32 %v3992
        %vm4000 = vmor %vm3998, %vm3999
        %v4001 = vsel %vm4000, %v3992, %v3997
        %v4002 = vrsqrt.pop %v3989
        %v4003 = vmul.f32 %v4002, %v3989
        %v4004 = vmul.f32 %v4003, %v4002
        %v4005 = vmul.f32 0.5, %v4004
        %v4006 = vsub.f32 1.5, %v4005
        %v4007 = vmul.f32 %v4002, %v4006
        %vm4008 = vweird.f32 %v3989
        %vm4009 = vweird.f32 %v4002
        %vm4010 = vmor %vm4008, %vm4009
        %v4011 = vsel %vm4010, %v4002, %v4007
        %v4012 = vrsqrt.pop %v3990
        %v4013 = vmul.f32 %v4012, %v3990
        %v4014 = vmul.f32 %v4013, %v4012
        %v4015 = vmul.f32 0.5, %v4014
        %v4016 = vsub.f32 1.5, %v4015
        %v4017 = vmul.f32 %v4012, %v4016
        %vm4018 = vweird.f32 %v3990
        %vm4019 = vweird.f32 %v4012
        %vm4020 = vmor %vm4018, %vm4019
        %v4021 = vsel %vm4020, %v4012, %v4017
        %v4022 = vrsqrt.pop %v3991
        %v4023 = vmul.f32 %v4022, %v3991
        %v4024 = vmul.f32 %v4023, %v4022
        %v4025 = vmul.f32 0.5, %v4024
        %v4026 = vsub.f32 1.5, %v4025
        %v4027 = vmul.f32 %v4022, %v4026
        %vm4028 = vweird.f32 %v3991
        %vm4029 = vweird.f32 %v4022
        %vm4030 = vmor %vm4028, %vm4029
        %v4031 = vsel %vm4030, %v4022, %v4027
        %v4032 = vmul.f32 %v3968, %v4001
        %v4033 = vmul.f32 %v3969, %v4011
        %v4034 = vmul.f32 %v3970, %v4021
        %v4035 = vmul.f32 %v3971, %v4031
        %v4037 = vperm.slane %v3954, 0
        %v4039 = vmul.f32 %v4032, %v4037
        %v4040 = vmul.f32 %v4033, %v4037
        %v4041 = vmul.f32 %v4034, %v4037
        %v4042 = vmul.f32 %v4035, %v4037
        %v4044 = vperm.slane %v3955, 0
        %v4046 = vadd.f32 %v4039, %v4044
        %v4047 = vadd.f32 %v4040, %v4044
        %v4048 = vadd.f32 %v4041, %v4044
        %v4049 = vadd.f32 %v4042, %v4044
        %4050 = vst [vmem:[%s542] sm:$0xff] %v4046
        %4051 = vst [vmem:[%s542 + $0x8] sm:$0xff] %v4047
        %4052 = vst [vmem:[%s542 + $0x10] sm:$0xff] %v4048
        %4053 = vst [vmem:[%s542 + $0x18] sm:$0xff] %v4049
        %s4054 = sand.u32 %s319, 1
        %s4055 = scalar_lea.sflag [#allocation4], %s4054
        %s4056 = sand.u32 %s319, 1
        %s4057 = smul.addr %s4056, 32
        %s4058 = scalar_lea.vmem [#allocation13], %s4057
        // Predicated region
        $region97: #{tpu_custom_call.1} parent=71 // pred_check
          %p4059 = pneg %p329
        $region98: #{tpu_custom_call.1} parent=71 // pred_check_branch
          %4061 = sbr.rel (%p4059) target = $region100
        $region99: #{tpu_custom_call.1} parent=71 // pred_region
          %s4062 = smul.u32 2, %s33
          %4064 = vsyncadd %s4055, 0
          %s4065 = smul.addr %s4062, 2
          %s4066 = smul.addr %s4065, 8
          %s4067 = scalar_lea.hbm %s13, %s4066
          %s4068 = sshll.u32 %s4058, 4
          %s4069 = int_to_ptr.vmem [resolvable:$true] %s4068
          %s4070 = sshll.u32 %s4067, 4
          %s4071 = int_to_ptr.hbm [resolvable:$true] %s4070
          %4076 = dma.vmem_to_hbm [thread:$0]  %s4069, 512, %s4071, %s4055, 128, 128, 8
        $region100: #{tpu_custom_call.1} parent=71 // pred_fallthru
          _
      $region72: #{tpu_custom_call.1} parent=5 // pred_fallthru
        _
      %p4077 = scmp.le.s32.totalorder 2, %s28
      // Predicated region
      $region101: #{tpu_custom_call.1} parent=5 // pred_check
        %p4078 = pneg %p4077
      $region102: #{tpu_custom_call.1} parent=5 // pred_check_branch
        %4080 = sbr.rel (%p4078) target = $region104
      $region103: #{tpu_custom_call.1} parent=5 // pred_region
        %s4081 = ssub.s32 %s28, 2
        // Predicated region
        $region105: #{tpu_custom_call.1} parent=103 // pred_check
          %p4082 = pneg %p335
        $region106: #{tpu_custom_call.1} parent=103 // pred_check_branch
          %4084 = sbr.rel (%p4082) target = $region108
        $region107: #{tpu_custom_call.1} parent=103 // pred_region
          %s4085 = sand.u32 %s320, 1
          %s4086 = scalar_lea.sflag [#allocation4], %s4085
          %s4087 = sand.u32 %s320, 1
          %s4088 = smul.addr %s4087, 32
          %s4089 = scalar_lea.vmem [#allocation13], %s4088
          %4091 = dma.done %s4086, 512
        $region108: #{tpu_custom_call.1} parent=103 // pred_fallthru
          _
      $region104: #{tpu_custom_call.1} parent=5 // pred_fallthru
        _
    $region6: #{tpu_custom_call.1} parent=1 // loop_footer
      %s32 = sadd.s32 1, %s28
    $region7: #{tpu_custom_call.1} parent=1 // loop_footer_branch
      %27 = sbr.rel target = $region3
    $region8: #{tpu_custom_call.1} parent=1 // loop_exit
      _
    %4092 = vsyncpa [#allocation3], 1
    %s4093 = scalar_lea.sflag [#allocation3], 1
    %4094 = vsyncpa %s4093, 1
    %4095 = vsyncpa [#allocation6], 1
    %4096 = vsyncpa [#allocation9], 1
    %4097 = vsyncpa [#allocation12], 1
    %4098 = vsyncpa [#allocation4], 1
    %s4099 = scalar_lea.sflag [#allocation4], 1
    %4100 = vsyncpa %s4099, 1

</llo_original>
